<compile_context>
chip_gen: v6e
topology: v6e:2x2x1
jax: 0.10.0
libtpu: 0.0.40
codegen_flags: <defaults>
</compile_context>

<pallas_src>
import numpy as np
import jax
import jax.numpy as jnp
from jax.experimental import pallas as pl
from jax.experimental.pallas import tpu as pltpu

HORIZON = 10
INPUT_DIM = 2
STATE_DIM = 3
HIDDEN = 16
NUM_LAYERS = 2

OUT_PAD = 128          # lane-dense padded output width (>= HORIZON*STATE_DIM = 30)
TILE_B = 128           # batch tile: multiple of 8 sublanes, fills the MXU M dimension


def rnn_predictor_kernel(
    x_ref,        # [TB, STATE_DIM + HORIZON*INPUT_DIM]
    wh_ref,       # [STATE_DIM, NUM_LAYERS*HIDDEN]        fc_h weight^T
    bh_ref,       # [1, NUM_LAYERS*HIDDEN]                fc_h bias
    wu_ref,       # [HORIZON*INPUT_DIM, HORIZON*HIDDEN]   block-diag w_ih0^T
    bu_ref,       # [1, HORIZON*HIDDEN]                   tiled (b_ih0 + b_hh0)
    whh0_ref,     # [HIDDEN, HIDDEN]                      w_hh0^T
    w1_ref,       # [2*HIDDEN, HIDDEN]                    [w_ih1^T ; w_hh1^T]
    b1_ref,       # [1, HIDDEN]                           b_ih1 + b_hh1
    wout_ref,     # [HORIZON*HIDDEN, OUT_PAD]             block-diag fc_out_w^T, zero-padded
    bout_ref,     # [1, OUT_PAD]                          tiled fc_out bias, zero-padded
    out_ref,      # [TB, OUT_PAD]
):
    tb = x_ref.shape[0]
    x = x_ref[...]
    init_state = x[:, :STATE_DIM]          # [TB, 3]
    thrust = x[:, STATE_DIM:]              # [TB, HORIZON*INPUT_DIM]

    # h0 = fc_h(init_state), split per layer (PyTorch: view(B, L, H))
    h0_all = (
        jnp.dot(init_state, wh_ref[...], preferred_element_type=jnp.float32)
        + bh_ref[...]
    )                                      # [TB, L*H]
    h_l0 = h0_all[:, :HIDDEN]
    h_l1 = h0_all[:, HIDDEN: 2 * HIDDEN]

    # Hoisted input-to-hidden projection for ALL steps in one MXU push,
    # with layer-0 biases (b_ih0 + b_hh0) pre-folded.
    u_proj = (
        jnp.dot(thrust, wu_ref[...], preferred_element_type=jnp.float32)
        + bu_ref[...]
    )                                      # [TB, HORIZON*HIDDEN]

    whh0 = whh0_ref[...]
    w1 = w1_ref[...]
    b1 = jnp.broadcast_to(b1_ref[...], (tb, HIDDEN))   # hoisted broadcast (no per-iter bcast)

    h1_steps = []
    for t in range(HORIZON):               # small static horizon -> unrolled
        # layer 0: only the recurrent matmul remains on the per-step chain
        h_l0 = jnp.tanh(
            u_proj[:, t * HIDDEN: (t + 1) * HIDDEN]
            + jnp.dot(h_l0, whh0, preferred_element_type=jnp.float32)
        )
        # layer 1: fused ih/hh matmul on [h_l0_new, h_l1_old]
        z = jnp.concatenate([h_l0, h_l1], axis=1)       # [TB, 32]
        h_l1 = jnp.tanh(
            jnp.dot(z, w1, preferred_element_type=jnp.float32) + b1
        )
        h1_steps.append(h_l1)

    # Hoisted fc_out: one block-diagonal matmul producing the full flattened output,
    # lane-dense (128-wide) store; pad lanes are written as exact zeros.
    h_all = jnp.concatenate(h1_steps, axis=1)           # [TB, HORIZON*HIDDEN]
    out_ref[...] = (
        jnp.dot(h_all, wout_ref[...], preferred_element_type=jnp.float32)
        + bout_ref[...]
    )


def _prep_weights(p):
    """One-time param prep: transposes, block-diagonal expansions, bias folding."""
    eye_h = jnp.eye(HORIZON, dtype=jnp.float32)
    npad = OUT_PAD - HORIZON * STATE_DIM

    wh = p["fc_h_w"].T                                           # [3, 32]
    bh = p["fc_h_b"].reshape(1, -1)                              # [1, 32]
    wu = jnp.kron(eye_h, p["w_ih0"].T)                           # [20, 160] block-diag
    bu = jnp.tile((p["b_ih0"] + p["b_hh0"]).reshape(1, -1), (1, HORIZON))   # [1, 160]
    whh0 = p["w_hh0"].T                                          # [16, 16]
    w1 = jnp.concatenate([p["w_ih1"].T, p["w_hh1"].T], axis=0)   # [32, 16]
    b1 = (p["b_ih1"] + p["b_hh1"]).reshape(1, -1)                # [1, 16]
    wout = jnp.pad(jnp.kron(eye_h, p["fc_out_w"].T), ((0, 0), (0, npad)))   # [160, 128]
    bout = jnp.pad(jnp.tile(p["fc_out_b"].reshape(1, -1), (1, HORIZON)),
                   ((0, 0), (0, npad)))                          # [1, 128]
    return (wh, bh, wu, bu, whh0, w1, b1, wout, bout)


def rnn_predictor_forward(x, params, tile_b=TILE_B):
    # NOTE: at tiny batch (B~4) this kernel is dominated by fixed invocation overhead;
    # the tiling pays off for real batch sizes (grid over batch, parallel axis on v7x).
    B, F = x.shape
    b_pad = ((B + tile_b - 1) // tile_b) * tile_b
    if b_pad != B:
        x = jnp.pad(x, ((0, b_pad - B), (0, 0)))
    weights = _prep_weights(params)

    grid = (b_pad // tile_b,)
    in_specs = [pl.BlockSpec((tile_b, F), lambda i: (i, 0))]
    # Weights: full-array, index-invariant blocks -> fetched once, VMEM-resident.
    in_specs += [pl.BlockSpec(w.shape, lambda i: (0, 0)) for w in weights]

    out = pl.pallas_call(
        rnn_predictor_kernel,
        out_shape=jax.ShapeDtypeStruct((b_pad, OUT_PAD), jnp.float32),
        grid=grid,
        in_specs=in_specs,
        out_specs=pl.BlockSpec((tile_b, OUT_PAD), lambda i: (i, 0)),
        compiler_params=pltpu.CompilerParams(dimension_semantics=("parallel",)),
    )(x, *weights)

    return out[:B, :HORIZON * STATE_DIM].reshape(B, HORIZON, STATE_DIM)


def init_params(key):
    """Deterministic synthetic init mirroring the PyTorch module's shapes.
    fc_h / fc_out: xavier-normal weights, zero bias.  RNN: U(-1/sqrt(H), 1/sqrt(H))."""
    ks = jax.random.split(key, 8)
    k_rnn = 1.0 / np.sqrt(HIDDEN)

    def xavier(k, shape):  # shape = (out, in)
        std = np.sqrt(2.0 / (shape[0] + shape[1]))
        return std * jax.random.normal(k, shape, dtype=jnp.float32)

    def uni(k, shape):
        return jax.random.uniform(k, shape, minval=-k_rnn, maxval=k_rnn, dtype=jnp.float32)

    return {
        "fc_h_w": xavier(ks[0], (HIDDEN * NUM_LAYERS, STATE_DIM)),
        "fc_h_b": jnp.zeros((HIDDEN * NUM_LAYERS,), jnp.float32),
        "w_ih0": uni(ks[1], (HIDDEN, INPUT_DIM)),
        "w_hh0": uni(ks[2], (HIDDEN, HIDDEN)),
        "b_ih0": uni(ks[3], (HIDDEN,)),
        "b_hh0": uni(ks[4], (HIDDEN,)),
        "w_ih1": uni(ks[5], (HIDDEN, HIDDEN)),
        "w_hh1": uni(ks[6], (HIDDEN, HIDDEN)),
        "b_ih1": uni(ks[7], (HIDDEN,)),
        "b_hh1": jnp.zeros((HIDDEN,), jnp.float32),
        "fc_out_w": xavier(jax.random.fold_in(key, 99), (STATE_DIM, HIDDEN)),
        "fc_out_b": jnp.zeros((STATE_DIM,), jnp.float32),
    }


def reference_forward(x, p):
    """Pure-JAX reference mirroring the PyTorch forward exactly."""
    B = x.shape[0]
    init_state = x[:, :STATE_DIM]
    thrust = x[:, STATE_DIM:].reshape(B, HORIZON, INPUT_DIM)
    h0_all = init_state @ p["fc_h_w"].T + p["fc_h_b"]
    h0 = h0_all[:, :HIDDEN]
    h1 = h0_all[:, HIDDEN:]
    outs = []
    for t in range(HORIZON):
        u = thrust[:, t, :]
        h0 = jnp.tanh(u @ p["w_ih0"].T + p["b_ih0"] + h0 @ p["w_hh0"].T + p["b_hh0"])
        h1 = jnp.tanh(h0 @ p["w_ih1"].T + p["b_ih1"] + h1 @ p["w_hh1"].T + p["b_hh1"])
        outs.append(h1 @ p["fc_out_w"].T + p["fc_out_b"])
    return jnp.stack(outs, axis=1)


if __name__ == "__main__":
    key = jax.random.PRNGKey(0)
    k_param, k_x1, k_x2 = jax.random.split(key, 3)
    params = init_params(k_param)

    in_features = STATE_DIM + HORIZON * INPUT_DIM  # 3 + 10*2 = 23

    # Small batch (matches the module's typical call; padded to one 128-row tile).
    B1 = 4
    x1 = jax.random.normal(k_x1, (B1, in_features), dtype=jnp.float32)
    out1 = jax.block_until_ready(rnn_predictor_forward(x1, params))
    ref1 = jax.block_until_ready(reference_forward(x1, params))
    assert out1.shape == (B1, HORIZON, STATE_DIM), out1.shape
    np.testing.assert_allclose(np.asarray(out1), np.asarray(ref1), rtol=2e-3, atol=2e-4)

    # Larger batch exercising a multi-step batch grid (grid=(2,)) + padding path.
    B2 = 200
    x2 = jax.random.normal(k_x2, (B2, in_features), dtype=jnp.float32)
    out2 = jax.block_until_ready(rnn_predictor_forward(x2, params))
    ref2 = jax.block_until_ready(reference_forward(x2, params))
    assert out2.shape == (B2, HORIZON, STATE_DIM), out2.shape
    np.testing.assert_allclose(np.asarray(out2), np.asarray(ref2), rtol=2e-3, atol=2e-4)

    print("KERNEL_OK")
</pallas_src>

<mosaic_0001>
module attributes {stable_mosaic.version = 11 : i64} {
  func.func @rnn_predictor_kernel(%arg0: i32, %arg1: memref<128x23xf32, #tpu.memory_space<vmem>>, %arg2: memref<3x32xf32, #tpu.memory_space<vmem>>, %arg3: memref<1x32xf32, #tpu.memory_space<vmem>>, %arg4: memref<20x160xf32, #tpu.memory_space<vmem>>, %arg5: memref<1x160xf32, #tpu.memory_space<vmem>>, %arg6: memref<16x16xf32, #tpu.memory_space<vmem>>, %arg7: memref<32x16xf32, #tpu.memory_space<vmem>>, %arg8: memref<1x16xf32, #tpu.memory_space<vmem>>, %arg9: memref<160x128xf32, #tpu.memory_space<vmem>>, %arg10: memref<1x128xf32, #tpu.memory_space<vmem>>, %arg11: memref<128x128xf32, #tpu.memory_space<vmem>>) attributes {dimension_semantics = [#tpu.dimension_semantics<parallel>], iteration_bounds = array<i64: 1>, scalar_prefetch = 0 : i64, scratch_operands = 0 : i64, tpu.core_type = #tpu.core_type<tc>, window_params = [{transform_indices = @transform_0, window_bounds = array<i64: 128, 23>}, {pipeline_mode = #tpu.pipeline_mode<synchronous>, transform_indices = @transform_1, window_bounds = array<i64: 3, 32>}, {pipeline_mode = #tpu.pipeline_mode<synchronous>, transform_indices = @transform_2, window_bounds = array<i64: 1, 32>}, {pipeline_mode = #tpu.pipeline_mode<synchronous>, transform_indices = @transform_3, window_bounds = array<i64: 20, 160>}, {pipeline_mode = #tpu.pipeline_mode<synchronous>, transform_indices = @transform_4, window_bounds = array<i64: 1, 160>}, {pipeline_mode = #tpu.pipeline_mode<synchronous>, transform_indices = @transform_5, window_bounds = array<i64: 16, 16>}, {pipeline_mode = #tpu.pipeline_mode<synchronous>, transform_indices = @transform_6, window_bounds = array<i64: 32, 16>}, {pipeline_mode = #tpu.pipeline_mode<synchronous>, transform_indices = @transform_7, window_bounds = array<i64: 1, 16>}, {pipeline_mode = #tpu.pipeline_mode<synchronous>, transform_indices = @transform_8, window_bounds = array<i64: 160, 128>}, {pipeline_mode = #tpu.pipeline_mode<synchronous>, transform_indices = @transform_9, window_bounds = array<i64: 1, 128>}, {transform_indices = @transform_10, window_bounds = array<i64: 128, 128>}]} {
    %c0 = arith.constant 0 : index
    %c0_0 = arith.constant 0 : index
    %0 = vector.load %arg1[%c0, %c0_0] : memref<128x23xf32, #tpu.memory_space<vmem>>, vector<128x23xf32>
    %1 = vector.extract_strided_slice %0 {offsets = [0, 0], sizes = [128, 3], strides = [1, 1]} : vector<128x23xf32> to vector<128x3xf32>
    %2 = vector.extract_strided_slice %0 {offsets = [0, 3], sizes = [128, 20], strides = [1, 1]} : vector<128x23xf32> to vector<128x20xf32>
    %c0_1 = arith.constant 0 : index
    %c0_2 = arith.constant 0 : index
    %3 = vector.load %arg2[%c0_1, %c0_2] : memref<3x32xf32, #tpu.memory_space<vmem>>, vector<3x32xf32>
    %cst = arith.constant dense<0.000000e+00> : vector<128x32xf32>
    %4 = tpu.matmul %1, %3, %cst {dimension_numbers = #tpu.dot_dimension_numbers<[1], [0], [0], [1], [0, 0, 1, 1], [], []>} : vector<128x3xf32>, vector<3x32xf32>, vector<128x32xf32> -> vector<128x32xf32>
    %c0_3 = arith.constant 0 : index
    %c0_4 = arith.constant 0 : index
    %5 = vector.load %arg3[%c0_3, %c0_4] : memref<1x32xf32, #tpu.memory_space<vmem>>, vector<1x32xf32>
    %6 = vector.broadcast %5 : vector<1x32xf32> to vector<128x32xf32>
    %7 = arith.addf %4, %6 : vector<128x32xf32>
    %8 = vector.extract_strided_slice %7 {offsets = [0, 0], sizes = [128, 16], strides = [1, 1]} : vector<128x32xf32> to vector<128x16xf32>
    %9 = vector.extract_strided_slice %7 {offsets = [0, 16], sizes = [128, 16], strides = [1, 1]} : vector<128x32xf32> to vector<128x16xf32>
    %c0_5 = arith.constant 0 : index
    %c0_6 = arith.constant 0 : index
    %10 = vector.load %arg4[%c0_5, %c0_6] : memref<20x160xf32, #tpu.memory_space<vmem>>, vector<20x160xf32>
    %cst_7 = arith.constant dense<0.000000e+00> : vector<128x160xf32>
    %11 = tpu.matmul %2, %10, %cst_7 {dimension_numbers = #tpu.dot_dimension_numbers<[1], [0], [0], [1], [0, 0, 1, 1], [], []>} : vector<128x20xf32>, vector<20x160xf32>, vector<128x160xf32> -> vector<128x160xf32>
    %c0_8 = arith.constant 0 : index
    %c0_9 = arith.constant 0 : index
    %12 = vector.load %arg5[%c0_8, %c0_9] : memref<1x160xf32, #tpu.memory_space<vmem>>, vector<1x160xf32>
    %13 = vector.broadcast %12 : vector<1x160xf32> to vector<128x160xf32>
    %14 = arith.addf %11, %13 : vector<128x160xf32>
    %c0_10 = arith.constant 0 : index
    %c0_11 = arith.constant 0 : index
    %15 = vector.load %arg6[%c0_10, %c0_11] : memref<16x16xf32, #tpu.memory_space<vmem>>, vector<16x16xf32>
    %c0_12 = arith.constant 0 : index
    %c0_13 = arith.constant 0 : index
    %16 = vector.load %arg7[%c0_12, %c0_13] : memref<32x16xf32, #tpu.memory_space<vmem>>, vector<32x16xf32>
    %c0_14 = arith.constant 0 : index
    %c0_15 = arith.constant 0 : index
    %17 = vector.load %arg8[%c0_14, %c0_15] : memref<1x16xf32, #tpu.memory_space<vmem>>, vector<1x16xf32>
    %18 = vector.shape_cast %17 : vector<1x16xf32> to vector<1x16xf32>
    %19 = vector.broadcast %18 : vector<1x16xf32> to vector<128x16xf32>
    %20 = vector.extract_strided_slice %14 {offsets = [0, 0], sizes = [128, 16], strides = [1, 1]} : vector<128x160xf32> to vector<128x16xf32>
    %cst_16 = arith.constant dense<0.000000e+00> : vector<128x16xf32>
    %21 = tpu.matmul %8, %15, %cst_16 {dimension_numbers = #tpu.dot_dimension_numbers<[1], [0], [0], [1], [0, 0, 1, 1], [], []>} : vector<128x16xf32>, vector<16x16xf32>, vector<128x16xf32> -> vector<128x16xf32>
    %22 = arith.addf %20, %21 : vector<128x16xf32>
    %23 = math.tanh %22 : vector<128x16xf32>
    %24 = tpu.concatenate %23, %9 in 1 : vector<128x16xf32>, vector<128x16xf32> -> vector<128x32xf32>
    %cst_17 = arith.constant dense<0.000000e+00> : vector<128x16xf32>
    %25 = tpu.matmul %24, %16, %cst_17 {dimension_numbers = #tpu.dot_dimension_numbers<[1], [0], [0], [1], [0, 0, 1, 1], [], []>} : vector<128x32xf32>, vector<32x16xf32>, vector<128x16xf32> -> vector<128x16xf32>
    %26 = arith.addf %25, %19 : vector<128x16xf32>
    %27 = math.tanh %26 : vector<128x16xf32>
    %28 = vector.extract_strided_slice %14 {offsets = [0, 16], sizes = [128, 16], strides = [1, 1]} : vector<128x160xf32> to vector<128x16xf32>
    %cst_18 = arith.constant dense<0.000000e+00> : vector<128x16xf32>
    %29 = tpu.matmul %23, %15, %cst_18 {dimension_numbers = #tpu.dot_dimension_numbers<[1], [0], [0], [1], [0, 0, 1, 1], [], []>} : vector<128x16xf32>, vector<16x16xf32>, vector<128x16xf32> -> vector<128x16xf32>
    %30 = arith.addf %28, %29 : vector<128x16xf32>
    %31 = math.tanh %30 : vector<128x16xf32>
    %32 = tpu.concatenate %31, %27 in 1 : vector<128x16xf32>, vector<128x16xf32> -> vector<128x32xf32>
    %cst_19 = arith.constant dense<0.000000e+00> : vector<128x16xf32>
    %33 = tpu.matmul %32, %16, %cst_19 {dimension_numbers = #tpu.dot_dimension_numbers<[1], [0], [0], [1], [0, 0, 1, 1], [], []>} : vector<128x32xf32>, vector<32x16xf32>, vector<128x16xf32> -> vector<128x16xf32>
    %34 = arith.addf %33, %19 : vector<128x16xf32>
    %35 = math.tanh %34 : vector<128x16xf32>
    %36 = vector.extract_strided_slice %14 {offsets = [0, 32], sizes = [128, 16], strides = [1, 1]} : vector<128x160xf32> to vector<128x16xf32>
    %cst_20 = arith.constant dense<0.000000e+00> : vector<128x16xf32>
    %37 = tpu.matmul %31, %15, %cst_20 {dimension_numbers = #tpu.dot_dimension_numbers<[1], [0], [0], [1], [0, 0, 1, 1], [], []>} : vector<128x16xf32>, vector<16x16xf32>, vector<128x16xf32> -> vector<128x16xf32>
    %38 = arith.addf %36, %37 : vector<128x16xf32>
    %39 = math.tanh %38 : vector<128x16xf32>
    %40 = tpu.concatenate %39, %35 in 1 : vector<128x16xf32>, vector<128x16xf32> -> vector<128x32xf32>
    %cst_21 = arith.constant dense<0.000000e+00> : vector<128x16xf32>
    %41 = tpu.matmul %40, %16, %cst_21 {dimension_numbers = #tpu.dot_dimension_numbers<[1], [0], [0], [1], [0, 0, 1, 1], [], []>} : vector<128x32xf32>, vector<32x16xf32>, vector<128x16xf32> -> vector<128x16xf32>
    %42 = arith.addf %41, %19 : vector<128x16xf32>
    %43 = math.tanh %42 : vector<128x16xf32>
    %44 = vector.extract_strided_slice %14 {offsets = [0, 48], sizes = [128, 16], strides = [1, 1]} : vector<128x160xf32> to vector<128x16xf32>
    %cst_22 = arith.constant dense<0.000000e+00> : vector<128x16xf32>
    %45 = tpu.matmul %39, %15, %cst_22 {dimension_numbers = #tpu.dot_dimension_numbers<[1], [0], [0], [1], [0, 0, 1, 1], [], []>} : vector<128x16xf32>, vector<16x16xf32>, vector<128x16xf32> -> vector<128x16xf32>
    %46 = arith.addf %44, %45 : vector<128x16xf32>
    %47 = math.tanh %46 : vector<128x16xf32>
    %48 = tpu.concatenate %47, %43 in 1 : vector<128x16xf32>, vector<128x16xf32> -> vector<128x32xf32>
    %cst_23 = arith.constant dense<0.000000e+00> : vector<128x16xf32>
    %49 = tpu.matmul %48, %16, %cst_23 {dimension_numbers = #tpu.dot_dimension_numbers<[1], [0], [0], [1], [0, 0, 1, 1], [], []>} : vector<128x32xf32>, vector<32x16xf32>, vector<128x16xf32> -> vector<128x16xf32>
    %50 = arith.addf %49, %19 : vector<128x16xf32>
    %51 = math.tanh %50 : vector<128x16xf32>
    %52 = vector.extract_strided_slice %14 {offsets = [0, 64], sizes = [128, 16], strides = [1, 1]} : vector<128x160xf32> to vector<128x16xf32>
    %cst_24 = arith.constant dense<0.000000e+00> : vector<128x16xf32>
    %53 = tpu.matmul %47, %15, %cst_24 {dimension_numbers = #tpu.dot_dimension_numbers<[1], [0], [0], [1], [0, 0, 1, 1], [], []>} : vector<128x16xf32>, vector<16x16xf32>, vector<128x16xf32> -> vector<128x16xf32>
    %54 = arith.addf %52, %53 : vector<128x16xf32>
    %55 = math.tanh %54 : vector<128x16xf32>
    %56 = tpu.concatenate %55, %51 in 1 : vector<128x16xf32>, vector<128x16xf32> -> vector<128x32xf32>
    %cst_25 = arith.constant dense<0.000000e+00> : vector<128x16xf32>
    %57 = tpu.matmul %56, %16, %cst_25 {dimension_numbers = #tpu.dot_dimension_numbers<[1], [0], [0], [1], [0, 0, 1, 1], [], []>} : vector<128x32xf32>, vector<32x16xf32>, vector<128x16xf32> -> vector<128x16xf32>
    %58 = arith.addf %57, %19 : vector<128x16xf32>
    %59 = math.tanh %58 : vector<128x16xf32>
    %60 = vector.extract_strided_slice %14 {offsets = [0, 80], sizes = [128, 16], strides = [1, 1]} : vector<128x160xf32> to vector<128x16xf32>
    %cst_26 = arith.constant dense<0.000000e+00> : vector<128x16xf32>
    %61 = tpu.matmul %55, %15, %cst_26 {dimension_numbers = #tpu.dot_dimension_numbers<[1], [0], [0], [1], [0, 0, 1, 1], [], []>} : vector<128x16xf32>, vector<16x16xf32>, vector<128x16xf32> -> vector<128x16xf32>
    %62 = arith.addf %60, %61 : vector<128x16xf32>
    %63 = math.tanh %62 : vector<128x16xf32>
    %64 = tpu.concatenate %63, %59 in 1 : vector<128x16xf32>, vector<128x16xf32> -> vector<128x32xf32>
    %cst_27 = arith.constant dense<0.000000e+00> : vector<128x16xf32>
    %65 = tpu.matmul %64, %16, %cst_27 {dimension_numbers = #tpu.dot_dimension_numbers<[1], [0], [0], [1], [0, 0, 1, 1], [], []>} : vector<128x32xf32>, vector<32x16xf32>, vector<128x16xf32> -> vector<128x16xf32>
    %66 = arith.addf %65, %19 : vector<128x16xf32>
    %67 = math.tanh %66 : vector<128x16xf32>
    %68 = vector.extract_strided_slice %14 {offsets = [0, 96], sizes = [128, 16], strides = [1, 1]} : vector<128x160xf32> to vector<128x16xf32>
    %cst_28 = arith.constant dense<0.000000e+00> : vector<128x16xf32>
    %69 = tpu.matmul %63, %15, %cst_28 {dimension_numbers = #tpu.dot_dimension_numbers<[1], [0], [0], [1], [0, 0, 1, 1], [], []>} : vector<128x16xf32>, vector<16x16xf32>, vector<128x16xf32> -> vector<128x16xf32>
    %70 = arith.addf %68, %69 : vector<128x16xf32>
    %71 = math.tanh %70 : vector<128x16xf32>
    %72 = tpu.concatenate %71, %67 in 1 : vector<128x16xf32>, vector<128x16xf32> -> vector<128x32xf32>
    %cst_29 = arith.constant dense<0.000000e+00> : vector<128x16xf32>
    %73 = tpu.matmul %72, %16, %cst_29 {dimension_numbers = #tpu.dot_dimension_numbers<[1], [0], [0], [1], [0, 0, 1, 1], [], []>} : vector<128x32xf32>, vector<32x16xf32>, vector<128x16xf32> -> vector<128x16xf32>
    %74 = arith.addf %73, %19 : vector<128x16xf32>
    %75 = math.tanh %74 : vector<128x16xf32>
    %76 = vector.extract_strided_slice %14 {offsets = [0, 112], sizes = [128, 16], strides = [1, 1]} : vector<128x160xf32> to vector<128x16xf32>
    %cst_30 = arith.constant dense<0.000000e+00> : vector<128x16xf32>
    %77 = tpu.matmul %71, %15, %cst_30 {dimension_numbers = #tpu.dot_dimension_numbers<[1], [0], [0], [1], [0, 0, 1, 1], [], []>} : vector<128x16xf32>, vector<16x16xf32>, vector<128x16xf32> -> vector<128x16xf32>
    %78 = arith.addf %76, %77 : vector<128x16xf32>
    %79 = math.tanh %78 : vector<128x16xf32>
    %80 = tpu.concatenate %79, %75 in 1 : vector<128x16xf32>, vector<128x16xf32> -> vector<128x32xf32>
    %cst_31 = arith.constant dense<0.000000e+00> : vector<128x16xf32>
    %81 = tpu.matmul %80, %16, %cst_31 {dimension_numbers = #tpu.dot_dimension_numbers<[1], [0], [0], [1], [0, 0, 1, 1], [], []>} : vector<128x32xf32>, vector<32x16xf32>, vector<128x16xf32> -> vector<128x16xf32>
    %82 = arith.addf %81, %19 : vector<128x16xf32>
    %83 = math.tanh %82 : vector<128x16xf32>
    %84 = vector.extract_strided_slice %14 {offsets = [0, 128], sizes = [128, 16], strides = [1, 1]} : vector<128x160xf32> to vector<128x16xf32>
    %cst_32 = arith.constant dense<0.000000e+00> : vector<128x16xf32>
    %85 = tpu.matmul %79, %15, %cst_32 {dimension_numbers = #tpu.dot_dimension_numbers<[1], [0], [0], [1], [0, 0, 1, 1], [], []>} : vector<128x16xf32>, vector<16x16xf32>, vector<128x16xf32> -> vector<128x16xf32>
    %86 = arith.addf %84, %85 : vector<128x16xf32>
    %87 = math.tanh %86 : vector<128x16xf32>
    %88 = tpu.concatenate %87, %83 in 1 : vector<128x16xf32>, vector<128x16xf32> -> vector<128x32xf32>
    %cst_33 = arith.constant dense<0.000000e+00> : vector<128x16xf32>
    %89 = tpu.matmul %88, %16, %cst_33 {dimension_numbers = #tpu.dot_dimension_numbers<[1], [0], [0], [1], [0, 0, 1, 1], [], []>} : vector<128x32xf32>, vector<32x16xf32>, vector<128x16xf32> -> vector<128x16xf32>
    %90 = arith.addf %89, %19 : vector<128x16xf32>
    %91 = math.tanh %90 : vector<128x16xf32>
    %92 = vector.extract_strided_slice %14 {offsets = [0, 144], sizes = [128, 16], strides = [1, 1]} : vector<128x160xf32> to vector<128x16xf32>
    %cst_34 = arith.constant dense<0.000000e+00> : vector<128x16xf32>
    %93 = tpu.matmul %87, %15, %cst_34 {dimension_numbers = #tpu.dot_dimension_numbers<[1], [0], [0], [1], [0, 0, 1, 1], [], []>} : vector<128x16xf32>, vector<16x16xf32>, vector<128x16xf32> -> vector<128x16xf32>
    %94 = arith.addf %92, %93 : vector<128x16xf32>
    %95 = math.tanh %94 : vector<128x16xf32>
    %96 = tpu.concatenate %95, %91 in 1 : vector<128x16xf32>, vector<128x16xf32> -> vector<128x32xf32>
    %cst_35 = arith.constant dense<0.000000e+00> : vector<128x16xf32>
    %97 = tpu.matmul %96, %16, %cst_35 {dimension_numbers = #tpu.dot_dimension_numbers<[1], [0], [0], [1], [0, 0, 1, 1], [], []>} : vector<128x32xf32>, vector<32x16xf32>, vector<128x16xf32> -> vector<128x16xf32>
    %98 = arith.addf %97, %19 : vector<128x16xf32>
    %99 = math.tanh %98 : vector<128x16xf32>
    %100 = tpu.concatenate %27, %35, %43, %51, %59, %67, %75, %83, %91, %99 in 1 : vector<128x16xf32>, vector<128x16xf32>, vector<128x16xf32>, vector<128x16xf32>, vector<128x16xf32>, vector<128x16xf32>, vector<128x16xf32>, vector<128x16xf32>, vector<128x16xf32>, vector<128x16xf32> -> vector<128x160xf32>
    %c0_36 = arith.constant 0 : index
    %c0_37 = arith.constant 0 : index
    %101 = vector.load %arg9[%c0_36, %c0_37] : memref<160x128xf32, #tpu.memory_space<vmem>>, vector<160x128xf32>
    %cst_38 = arith.constant dense<0.000000e+00> : vector<128x128xf32>
    %102 = tpu.matmul %100, %101, %cst_38 {dimension_numbers = #tpu.dot_dimension_numbers<[1], [0], [0], [1], [0, 0, 1, 1], [], []>} : vector<128x160xf32>, vector<160x128xf32>, vector<128x128xf32> -> vector<128x128xf32>
    %c0_39 = arith.constant 0 : index
    %c0_40 = arith.constant 0 : index
    %103 = vector.load %arg10[%c0_39, %c0_40] : memref<1x128xf32, #tpu.memory_space<vmem>>, vector<1x128xf32>
    %104 = vector.broadcast %103 : vector<1x128xf32> to vector<128x128xf32>
    %105 = arith.addf %102, %104 : vector<128x128xf32>
    %c0_41 = arith.constant 0 : index
    %c0_42 = arith.constant 0 : index
    %106 = vector.load %arg11[%c0_41, %c0_42] : memref<128x128xf32, #tpu.memory_space<vmem>>, vector<128x128xf32>
    tpu.vector_store %arg11[%c0_41, %c0_42], %105 {strides = array<i32>} : memref<128x128xf32, #tpu.memory_space<vmem>>, vector<128x128xf32>,
    return
  }
  func.func @transform_0(%arg0: i32) -> (i32, i32) {
    %c0_i32 = arith.constant 0 : i32
    %c0_i32_0 = arith.constant 0 : i32
    return %arg0, %c0_i32 : i32, i32
  }
  func.func @transform_1(%arg0: i32) -> (i32, i32) {
    %c0_i32 = arith.constant 0 : i32
    %c0_i32_0 = arith.constant 0 : i32
    %c0_i32_1 = arith.constant 0 : i32
    return %c0_i32, %c0_i32_0 : i32, i32
  }
  func.func @transform_2(%arg0: i32) -> (i32, i32) {
    %c0_i32 = arith.constant 0 : i32
    %c0_i32_0 = arith.constant 0 : i32
    %c0_i32_1 = arith.constant 0 : i32
    return %c0_i32, %c0_i32_0 : i32, i32
  }
  func.func @transform_3(%arg0: i32) -> (i32, i32) {
    %c0_i32 = arith.constant 0 : i32
    %c0_i32_0 = arith.constant 0 : i32
    %c0_i32_1 = arith.constant 0 : i32
    return %c0_i32, %c0_i32_0 : i32, i32
  }
  func.func @transform_4(%arg0: i32) -> (i32, i32) {
    %c0_i32 = arith.constant 0 : i32
    %c0_i32_0 = arith.constant 0 : i32
    %c0_i32_1 = arith.constant 0 : i32
    return %c0_i32, %c0_i32_0 : i32, i32
  }
  func.func @transform_5(%arg0: i32) -> (i32, i32) {
    %c0_i32 = arith.constant 0 : i32
    %c0_i32_0 = arith.constant 0 : i32
    %c0_i32_1 = arith.constant 0 : i32
    return %c0_i32, %c0_i32_0 : i32, i32
  }
  func.func @transform_6(%arg0: i32) -> (i32, i32) {
    %c0_i32 = arith.constant 0 : i32
    %c0_i32_0 = arith.constant 0 : i32
    %c0_i32_1 = arith.constant 0 : i32
    return %c0_i32, %c0_i32_0 : i32, i32
  }
  func.func @transform_7(%arg0: i32) -> (i32, i32) {
    %c0_i32 = arith.constant 0 : i32
    %c0_i32_0 = arith.constant 0 : i32
    %c0_i32_1 = arith.constant 0 : i32
    return %c0_i32, %c0_i32_0 : i32, i32
  }
  func.func @transform_8(%arg0: i32) -> (i32, i32) {
    %c0_i32 = arith.constant 0 : i32
    %c0_i32_0 = arith.constant 0 : i32
    %c0_i32_1 = arith.constant 0 : i32
    return %c0_i32, %c0_i32_0 : i32, i32
  }
  func.func @transform_9(%arg0: i32) -> (i32, i32) {
    %c0_i32 = arith.constant 0 : i32
    %c0_i32_0 = arith.constant 0 : i32
    %c0_i32_1 = arith.constant 0 : i32
    return %c0_i32, %c0_i32_0 : i32, i32
  }
  func.func @transform_10(%arg0: i32) -> (i32, i32) {
    %c0_i32 = arith.constant 0 : i32
    %c0_i32_0 = arith.constant 0 : i32
    return %arg0, %c0_i32 : i32, i32
  }
}

</mosaic_0001>

<llo_original>
// kernel: tpu_custom_call.1
$region0: #{tpu_custom_call.1}
  #allocation0 [shape = 'u32[]', space=smem, size = 0x4, offset = 0x4, fixed_abs, tag = 'smem constant byte address 0x4 - core index']
  #allocation1 [shape = 'u32[144,128]{1,0:T(1,128)}', space=vmem, size = 0x12000, scoped, tag = 'internal scratch']
  %s0 = inlined_call_operand.vmem [shape: f32[128,23], index: 0, kind: input, shape index: {}]
  %s1 = inlined_call_operand.vmem [shape: f32[3,32], index: 1, kind: input, shape index: {}]
  %s2 = inlined_call_operand.hbm [shape: f32[1,32], index: 2, kind: input, shape index: {}]
  %s3 = inlined_call_operand.vmem [shape: f32[20,160], index: 3, kind: input, shape index: {}]
  %s4 = inlined_call_operand.vmem [shape: f32[1,160], index: 4, kind: input, shape index: {}]
  %s5 = inlined_call_operand.hbm [shape: f32[16,16], index: 5, kind: input, shape index: {}]
  %s6 = inlined_call_operand.vmem [shape: f32[32,16], index: 6, kind: input, shape index: {}]
  %s7 = inlined_call_operand.hbm [shape: f32[1,16], index: 7, kind: input, shape index: {}]
  %s8 = inlined_call_operand.vmem [shape: f32[160,128], index: 8, kind: input, shape index: {}]
  %s9 = inlined_call_operand.hbm [shape: f32[1,128], index: 9, kind: input, shape index: {}]
  %s10 = inlined_call_operand.hbm [shape: f32[128,128], index: 10, kind: output, shape index: {}]
  %s11 = sld [smem:[#allocation0]]
  $region66: #{tpu_custom_call.1} parent=0
    _
  %s13 = ssub.s32 1, %s11
  %s14 = scalar_select 0, %s13, %s11
  $region1: #{tpu_custom_call.1} parent=0
    #allocation2 [shape = 'u8[512]{0}', space=vmem, size = 0x400, scoped, tag = 'input window, operand 2, single buffered']
    #allocation3 [shape = 's32[1]{0}', space=sflag, size = 0x4, scoped, tag = 'scoped memory for tpu_custom_call.1']
    #allocation4 [shape = 's32[1]{0}', space=sflag, size = 0x4, scoped, tag = 'scoped memory for tpu_custom_call.1']
    #allocation5 [shape = 'u8[8192]{0}', space=vmem, size = 0x2000, scoped, tag = 'input window, operand 5, single buffered']
    #allocation6 [shape = 's32[1]{0}', space=sflag, size = 0x4, scoped, tag = 'scoped memory for tpu_custom_call.1']
    #allocation7 [shape = 'u8[512]{0}', space=vmem, size = 0x400, scoped, tag = 'input window, operand 7, single buffered']
    #allocation8 [shape = 'u8[512]{0}', space=vmem, size = 0x400, scoped, tag = 'input window, operand 9, single buffered']
    #allocation9 [shape = 's32[1]{0}', space=sflag, size = 0x4, scoped, tag = 'scoped memory for tpu_custom_call.1']
    #allocation10 [shape = 'u8[65536]{0}', space=vmem, size = 0x10000, scoped, tag = 'output window, operand 0, single buffered']
    %15 = vsyncpa [#allocation3], 0
    %16 = vsyncpa [#allocation6], 0
    %17 = vsyncpa [#allocation9], 0
    %18 = vsyncpa [#allocation4], 0
    // Predicated region
    $region2: #{tpu_custom_call.1} parent=1 // pred_check
      _
    $region3: #{tpu_custom_call.1} parent=1 // pred_check_branch
      %20 = sbr.rel (0) target = $region5
    $region4: #{tpu_custom_call.1} parent=1 // pred_region
      _
    $region5: #{tpu_custom_call.1} parent=1 // pred_fallthru
      _
    // Predicated region
    $region6: #{tpu_custom_call.1} parent=1 // pred_check
      _
    $region7: #{tpu_custom_call.1} parent=1 // pred_check_branch
      %22 = sbr.rel (0) target = $region9
    $region8: #{tpu_custom_call.1} parent=1 // pred_region
      _
    $region9: #{tpu_custom_call.1} parent=1 // pred_fallthru
      _
    // Predicated region
    $region10: #{tpu_custom_call.1} parent=1 // pred_check
      _
    $region11: #{tpu_custom_call.1} parent=1 // pred_check_branch
      %24 = sbr.rel (0) target = $region13
    $region12: #{tpu_custom_call.1} parent=1 // pred_region
      %s26 = ssub.s32 16, 16
      %27 = vsyncadd [#allocation3], %s26
      %s29 = sshll.u32 [#allocation2], 4
      %s30 = int_to_ptr.vmem [resolvable:$true] %s29
      %32 = dma.hbm_to_vmem [thread:$0]  %s2, 16, %s30, [#allocation3]
    $region13: #{tpu_custom_call.1} parent=1 // pred_fallthru
      _
    // Predicated region
    $region14: #{tpu_custom_call.1} parent=1 // pred_check
      _
    $region15: #{tpu_custom_call.1} parent=1 // pred_check_branch
      %34 = sbr.rel (0) target = $region17
    $region16: #{tpu_custom_call.1} parent=1 // pred_region
      _
    $region17: #{tpu_custom_call.1} parent=1 // pred_fallthru
      _
    // Predicated region
    $region18: #{tpu_custom_call.1} parent=1 // pred_check
      _
    $region19: #{tpu_custom_call.1} parent=1 // pred_check_branch
      %36 = sbr.rel (0) target = $region21
    $region20: #{tpu_custom_call.1} parent=1 // pred_region
      _
    $region21: #{tpu_custom_call.1} parent=1 // pred_fallthru
      _
    // Predicated region
    $region22: #{tpu_custom_call.1} parent=1 // pred_check
      _
    $region23: #{tpu_custom_call.1} parent=1 // pred_check_branch
      %38 = sbr.rel (0) target = $region25
    $region24: #{tpu_custom_call.1} parent=1 // pred_region
      %s40 = ssub.s32 256, 256
      %41 = vsyncadd [#allocation6], %s40
      %s42 = sshll.u32 [#allocation5], 4
      %s43 = int_to_ptr.vmem [resolvable:$true] %s42
      %48 = dma.hbm_to_vmem [thread:$0]  %s5, 256, %s43, [#allocation6], 128, 128, 8
    $region25: #{tpu_custom_call.1} parent=1 // pred_fallthru
      _
    // Predicated region
    $region26: #{tpu_custom_call.1} parent=1 // pred_check
      _
    $region27: #{tpu_custom_call.1} parent=1 // pred_check_branch
      %50 = sbr.rel (0) target = $region29
    $region28: #{tpu_custom_call.1} parent=1 // pred_region
      _
    $region29: #{tpu_custom_call.1} parent=1 // pred_fallthru
      _
    // Predicated region
    $region30: #{tpu_custom_call.1} parent=1 // pred_check
      _
    $region31: #{tpu_custom_call.1} parent=1 // pred_check_branch
      %52 = sbr.rel (0) target = $region33
    $region32: #{tpu_custom_call.1} parent=1 // pred_region
      %s54 = ssub.s32 16, 16
      %55 = vsyncadd [#allocation6], %s54
      %s57 = sshll.u32 [#allocation7], 4
      %s58 = int_to_ptr.vmem [resolvable:$true] %s57
      %60 = dma.hbm_to_vmem [thread:$0]  %s7, 16, %s58, [#allocation6]
    $region33: #{tpu_custom_call.1} parent=1 // pred_fallthru
      _
    // Predicated region
    $region34: #{tpu_custom_call.1} parent=1 // pred_check
      _
    $region35: #{tpu_custom_call.1} parent=1 // pred_check_branch
      %62 = sbr.rel (0) target = $region37
    $region36: #{tpu_custom_call.1} parent=1 // pred_region
      _
    $region37: #{tpu_custom_call.1} parent=1 // pred_fallthru
      _
    // Predicated region
    $region38: #{tpu_custom_call.1} parent=1 // pred_check
      _
    $region39: #{tpu_custom_call.1} parent=1 // pred_check_branch
      %64 = sbr.rel (0) target = $region41
    $region40: #{tpu_custom_call.1} parent=1 // pred_region
      %s66 = ssub.s32 16, 16
      %67 = vsyncadd [#allocation9], %s66
      %s69 = sshll.u32 [#allocation8], 4
      %s70 = int_to_ptr.vmem [resolvable:$true] %s69
      %72 = dma.hbm_to_vmem [thread:$0]  %s9, 16, %s70, [#allocation9]
    $region41: #{tpu_custom_call.1} parent=1 // pred_fallthru
      _
    // Predicated region
    $region42: #{tpu_custom_call.1} parent=1 // pred_check
      _
    $region43: #{tpu_custom_call.1} parent=1 // pred_check_branch
      %74 = sbr.rel (0) target = $region45
    $region44: #{tpu_custom_call.1} parent=1 // pred_region
      %75 = dma.done [#allocation3], 16
    $region45: #{tpu_custom_call.1} parent=1 // pred_fallthru
      _
    // Predicated region
    $region46: #{tpu_custom_call.1} parent=1 // pred_check
      _
    $region47: #{tpu_custom_call.1} parent=1 // pred_check_branch
      %77 = sbr.rel (0) target = $region49
    $region48: #{tpu_custom_call.1} parent=1 // pred_region
      %78 = dma.done [#allocation6], 256
    $region49: #{tpu_custom_call.1} parent=1 // pred_fallthru
      _
    // Predicated region
    $region50: #{tpu_custom_call.1} parent=1 // pred_check
      _
    $region51: #{tpu_custom_call.1} parent=1 // pred_check_branch
      %80 = sbr.rel (0) target = $region53
    $region52: #{tpu_custom_call.1} parent=1 // pred_region
      %81 = dma.done [#allocation6], 16
    $region53: #{tpu_custom_call.1} parent=1 // pred_fallthru
      _
    // Predicated region
    $region54: #{tpu_custom_call.1} parent=1 // pred_check
      _
    $region55: #{tpu_custom_call.1} parent=1 // pred_check_branch
      %83 = sbr.rel (0) target = $region57
    $region56: #{tpu_custom_call.1} parent=1 // pred_region
      %84 = dma.done [#allocation9], 16
    $region57: #{tpu_custom_call.1} parent=1 // pred_fallthru
      _
    %v85 = vld [vmem:[%s0] sm:$0xff]
    %v86 = vld [vmem:[%s0 + $0x8] sm:$0xff]
    %v87 = vld [vmem:[%s0 + $0x10] sm:$0xff]
    %v88 = vld [vmem:[%s0 + $0x18] sm:$0xff]
    %v89 = vld [vmem:[%s0 + $0x20] sm:$0xff]
    %v90 = vld [vmem:[%s0 + $0x28] sm:$0xff]
    %v91 = vld [vmem:[%s0 + $0x30] sm:$0xff]
    %v92 = vld [vmem:[%s0 + $0x38] sm:$0xff]
    %v93 = vld [vmem:[%s0 + $0x40] sm:$0xff]
    %v94 = vld [vmem:[%s0 + $0x48] sm:$0xff]
    %v95 = vld [vmem:[%s0 + $0x50] sm:$0xff]
    %v96 = vld [vmem:[%s0 + $0x58] sm:$0xff]
    %v97 = vld [vmem:[%s0 + $0x60] sm:$0xff]
    %v98 = vld [vmem:[%s0 + $0x68] sm:$0xff]
    %v99 = vld [vmem:[%s0 + $0x70] sm:$0xff]
    %v100 = vld [vmem:[%s0 + $0x78] sm:$0xff]
    %v101 = vld [vmem:[%s1] sm:$0x7]
    %v102 = vld [vmem:[#allocation2] sm:$0x1]
    %v104 = vlaneseq
    %v105 = vshrl.u32 %v104, 7
    %v106 = vsub.s32 0, %v105
    %v107 = vrot.slane %v102, %v106
    %vm109 = vcmask 23552
    %v111 = vsel %vm109, %v85, 0
    %v114 = vsel %vm109, %v86, 0
    %v117 = vsel %vm109, %v87, 0
    %v120 = vsel %vm109, %v88, 0
    %v123 = vsel %vm109, %v89, 0
    %v126 = vsel %vm109, %v90, 0
    %v129 = vsel %vm109, %v91, 0
    %v132 = vsel %vm109, %v92, 0
    %v135 = vsel %vm109, %v93, 0
    %v138 = vsel %vm109, %v94, 0
    %v141 = vsel %vm109, %v95, 0
    %v144 = vsel %vm109, %v96, 0
    %v147 = vsel %vm109, %v97, 0
    %v150 = vsel %vm109, %v98, 0
    %v153 = vsel %vm109, %v99, 0
    %v156 = vsel %vm109, %v100, 0
    %vm158 = vcmask 1042432
    %v160 = vsel %vm158, %v101, 0
    %162 = vmatprep.subr.mxu0 0.0
    %163 = vmatpush1.msra.mxu0 0.0
    %164 = vmatprep.subr.mxu0 0.0
    %165 = vmatpush1.msra.mxu0 0.0
    %166 = vmatprep.subr.mxu0 0.0
    %167 = vmatpush1.msra.mxu0 0.0
    %168 = vmatprep.subr.mxu0 0.0
    %169 = vmatpush1.msra.mxu0 0.0
    %170 = vmatprep.subr.mxu0 0.0
    %171 = vmatpush1.msra.mxu0 0.0
    %172 = vmatprep.subr.mxu0 0.0
    %173 = vmatpush1.msra.mxu0 0.0
    %174 = vmatprep.subr.mxu0 0.0
    %175 = vmatpush1.msra.mxu0 0.0
    %176 = vmatprep.subr.mxu0 0.0
    %177 = vmatpush1.msra.mxu0 0.0
    %178 = vmatprep.subr.mxu0 0.0
    %179 = vmatpush1.msra.mxu0 0.0
    %180 = vmatprep.subr.mxu0 0.0
    %181 = vmatpush1.msra.mxu0 0.0
    %182 = vmatprep.subr.mxu0 0.0
    %183 = vmatpush1.msra.mxu0 0.0
    %184 = vmatprep.subr.mxu0 0.0
    %185 = vmatpush1.msra.mxu0 0.0
    %186 = vmatprep.subr.mxu0 0.0
    %187 = vmatpush1.msra.mxu0 0.0
    %188 = vmatprep.subr.mxu0 0.0
    %189 = vmatpush1.msra.mxu0 0.0
    %190 = vmatprep.subr.mxu0 0.0
    %191 = vmatpush1.msra.mxu0 0.0
    %192 = vmatprep.subr.mxu0 0.0
    %193 = vmatpush1.msra.mxu0 %v160
    %194 = vmatprep.subr.mxu0 0.0
    %195 = vmatpush2.msra.mxu0 0.0
    %196 = vmatprep.subr.mxu0 0.0
    %197 = vmatpush2.msra.mxu0 0.0
    %198 = vmatprep.subr.mxu0 0.0
    %199 = vmatpush2.msra.mxu0 0.0
    %200 = vmatprep.subr.mxu0 0.0
    %201 = vmatpush2.msra.mxu0 0.0
    %202 = vmatprep.subr.mxu0 0.0
    %203 = vmatpush2.msra.mxu0 0.0
    %204 = vmatprep.subr.mxu0 0.0
    %205 = vmatpush2.msra.mxu0 0.0
    %206 = vmatprep.subr.mxu0 0.0
    %207 = vmatpush2.msra.mxu0 0.0
    %208 = vmatprep.subr.mxu0 0.0
    %209 = vmatpush2.msra.mxu0 0.0
    %210 = vmatprep.subr.mxu0 0.0
    %211 = vmatpush2.msra.mxu0 0.0
    %212 = vmatprep.subr.mxu0 0.0
    %213 = vmatpush2.msra.mxu0 0.0
    %214 = vmatprep.subr.mxu0 0.0
    %215 = vmatpush2.msra.mxu0 0.0
    %216 = vmatprep.subr.mxu0 0.0
    %217 = vmatpush2.msra.mxu0 0.0
    %218 = vmatprep.subr.mxu0 0.0
    %219 = vmatpush2.msra.mxu0 0.0
    %220 = vmatprep.subr.mxu0 0.0
    %221 = vmatpush2.msra.mxu0 0.0
    %222 = vmatprep.subr.mxu0 0.0
    %223 = vmatpush2.msra.mxu0 0.0
    %224 = vmatprep.subr.mxu0 0.0
    %225 = vmatpush2.msra.mxu0 0.0
    %226 = vmatprep.mubr.f32.mxu0 0.0
    %227 = vmatmul.mubr.f32.gmra.mxu0 %v111
    %v228 = vpop.f32.mrf.mxu0
    %v229 = vadd.f32 %v107, %v228
    %v230 = vpop.f32.mrf.mxu0
    %231 = vmatprep.mubr.f32.mxu0 0.0
    %232 = vmatmul.mubr.f32.gmra.mxu0 %v114
    %v233 = vpop.f32.mrf.mxu0
    %v234 = vadd.f32 %v107, %v233
    %v235 = vpop.f32.mrf.mxu0
    %236 = vmatprep.mubr.f32.mxu0 0.0
    %237 = vmatmul.mubr.f32.gmra.mxu0 %v117
    %v238 = vpop.f32.mrf.mxu0
    %v239 = vadd.f32 %v107, %v238
    %v240 = vpop.f32.mrf.mxu0
    %241 = vmatprep.mubr.f32.mxu0 0.0
    %242 = vmatmul.mubr.f32.gmra.mxu0 %v120
    %v243 = vpop.f32.mrf.mxu0
    %v244 = vadd.f32 %v107, %v243
    %v245 = vpop.f32.mrf.mxu0
    %246 = vmatprep.mubr.f32.mxu0 0.0
    %247 = vmatmul.mubr.f32.gmra.mxu0 %v123
    %v248 = vpop.f32.mrf.mxu0
    %v249 = vadd.f32 %v107, %v248
    %v250 = vpop.f32.mrf.mxu0
    %251 = vmatprep.mubr.f32.mxu0 0.0
    %252 = vmatmul.mubr.f32.gmra.mxu0 %v126
    %v253 = vpop.f32.mrf.mxu0
    %v254 = vadd.f32 %v107, %v253
    %v255 = vpop.f32.mrf.mxu0
    %256 = vmatprep.mubr.f32.mxu0 0.0
    %257 = vmatmul.mubr.f32.gmra.mxu0 %v129
    %v258 = vpop.f32.mrf.mxu0
    %v259 = vadd.f32 %v107, %v258
    %v260 = vpop.f32.mrf.mxu0
    %261 = vmatprep.mubr.f32.mxu0 0.0
    %262 = vmatmul.mubr.f32.gmra.mxu0 %v132
    %v263 = vpop.f32.mrf.mxu0
    %v264 = vadd.f32 %v107, %v263
    %v265 = vpop.f32.mrf.mxu0
    %266 = vmatprep.mubr.f32.mxu0 0.0
    %267 = vmatmul.mubr.f32.gmra.mxu0 %v135
    %v268 = vpop.f32.mrf.mxu0
    %v269 = vadd.f32 %v107, %v268
    %v270 = vpop.f32.mrf.mxu0
    %271 = vmatprep.mubr.f32.mxu0 0.0
    %272 = vmatmul.mubr.f32.gmra.mxu0 %v138
    %v273 = vpop.f32.mrf.mxu0
    %v274 = vadd.f32 %v107, %v273
    %v275 = vpop.f32.mrf.mxu0
    %276 = vmatprep.mubr.f32.mxu0 0.0
    %277 = vmatmul.mubr.f32.gmra.mxu0 %v141
    %v278 = vpop.f32.mrf.mxu0
    %v279 = vadd.f32 %v107, %v278
    %v280 = vpop.f32.mrf.mxu0
    %281 = vmatprep.mubr.f32.mxu0 0.0
    %282 = vmatmul.mubr.f32.gmra.mxu0 %v144
    %v283 = vpop.f32.mrf.mxu0
    %v284 = vadd.f32 %v107, %v283
    %v285 = vpop.f32.mrf.mxu0
    %286 = vmatprep.mubr.f32.mxu0 0.0
    %287 = vmatmul.mubr.f32.gmra.mxu0 %v147
    %v288 = vpop.f32.mrf.mxu0
    %v289 = vadd.f32 %v107, %v288
    %v290 = vpop.f32.mrf.mxu0
    %291 = vmatprep.mubr.f32.mxu0 0.0
    %292 = vmatmul.mubr.f32.gmra.mxu0 %v150
    %v293 = vpop.f32.mrf.mxu0
    %v294 = vadd.f32 %v107, %v293
    %v295 = vpop.f32.mrf.mxu0
    %296 = vmatprep.mubr.f32.mxu0 0.0
    %297 = vmatmul.mubr.f32.gmra.mxu0 %v153
    %v298 = vpop.f32.mrf.mxu0
    %v299 = vadd.f32 %v107, %v298
    %v300 = vpop.f32.mrf.mxu0
    %301 = vmatprep.mubr.f32.mxu0 0.0
    %302 = vmatmul.mubr.f32.gmra.mxu0 %v156
    %v303 = vpop.f32.mrf.mxu0
    %v304 = vadd.f32 %v107, %v303
    %v305 = vpop.f32.mrf.mxu0
    %306 = vdwg.mxu0
    %v307 = vld [vmem:[%s3] sm:$0xff]
    %v308 = vld [vmem:[%s3 + $0x8] sm:$0xff]
    %v309 = vld [vmem:[%s3 + $0x10] sm:$0xff]
    %v310 = vld [vmem:[%s3 + $0x18] sm:$0xff]
    %v311 = vld [vmem:[%s3 + $0x20] sm:$0xf]
    %v312 = vld [vmem:[%s3 + $0x28] sm:$0xf]
    %v313 = vld [vmem:[%s4] sm:$0x3]
    %v315 = vlaneseq
    %v316 = vshrl.u32 %v315, 7
    %v317 = vsub.s32 0, %v316
    %v318 = vrot.slane %v313, %v317
    %v319 = vlaneseq
    %v320 = vshrl.u32 %v319, 7
    %v321 = vsub.s32 1, %v320
    %v322 = vrot.slane %v313, %v321
    %325 = vrot.lane.b32.xlu0 %v85, 125
    %v326 = vpop.permute.xlu0 %325
    %327 = vrot.lane.b32.xlu0 %v86, 125
    %v328 = vpop.permute.xlu0 %327
    %329 = vrot.lane.b32.xlu0 %v87, 125
    %v330 = vpop.permute.xlu0 %329
    %331 = vrot.lane.b32.xlu0 %v88, 125
    %v332 = vpop.permute.xlu0 %331
    %333 = vrot.lane.b32.xlu0 %v89, 125
    %v334 = vpop.permute.xlu0 %333
    %335 = vrot.lane.b32.xlu0 %v90, 125
    %v336 = vpop.permute.xlu0 %335
    %337 = vrot.lane.b32.xlu0 %v91, 125
    %v338 = vpop.permute.xlu0 %337
    %339 = vrot.lane.b32.xlu0 %v92, 125
    %v340 = vpop.permute.xlu0 %339
    %341 = vrot.lane.b32.xlu0 %v93, 125
    %v342 = vpop.permute.xlu0 %341
    %343 = vrot.lane.b32.xlu0 %v94, 125
    %v344 = vpop.permute.xlu0 %343
    %345 = vrot.lane.b32.xlu0 %v95, 125
    %v346 = vpop.permute.xlu0 %345
    %347 = vrot.lane.b32.xlu0 %v96, 125
    %v348 = vpop.permute.xlu0 %347
    %349 = vrot.lane.b32.xlu0 %v97, 125
    %v350 = vpop.permute.xlu0 %349
    %351 = vrot.lane.b32.xlu0 %v98, 125
    %v352 = vpop.permute.xlu0 %351
    %353 = vrot.lane.b32.xlu0 %v99, 125
    %v354 = vpop.permute.xlu0 %353
    %355 = vrot.lane.b32.xlu0 %v100, 125
    %v356 = vpop.permute.xlu0 %355
    %vm357 = vcmask 162816
    %v358 = vsel %vm357, %v326, 0
    %v360 = vsel %vm357, %v328, 0
    %v362 = vsel %vm357, %v330, 0
    %v364 = vsel %vm357, %v332, 0
    %v366 = vsel %vm357, %v334, 0
    %v368 = vsel %vm357, %v336, 0
    %v370 = vsel %vm357, %v338, 0
    %v372 = vsel %vm357, %v340, 0
    %v374 = vsel %vm357, %v342, 0
    %v376 = vsel %vm357, %v344, 0
    %v378 = vsel %vm357, %v346, 0
    %v380 = vsel %vm357, %v348, 0
    %v382 = vsel %vm357, %v350, 0
    %v384 = vsel %vm357, %v352, 0
    %v386 = vsel %vm357, %v354, 0
    %v388 = vsel %vm357, %v356, 0
    %vm390 = vcmask 1043456
    %v392 = vsel %vm390, %v311, 0
    %v395 = vsel %vm390, %v312, 0
    %397 = vmatprep.subr.mxu0 0.0
    %398 = vmatpush1.msra.mxu0 0.0
    %399 = vmatprep.subr.mxu0 0.0
    %400 = vmatpush1.msra.mxu0 0.0
    %401 = vmatprep.subr.mxu0 0.0
    %402 = vmatpush1.msra.mxu0 0.0
    %403 = vmatprep.subr.mxu0 0.0
    %404 = vmatpush1.msra.mxu0 0.0
    %405 = vmatprep.subr.mxu0 0.0
    %406 = vmatpush1.msra.mxu0 0.0
    %407 = vmatprep.subr.mxu0 0.0
    %408 = vmatpush1.msra.mxu0 0.0
    %409 = vmatprep.subr.mxu0 0.0
    %410 = vmatpush1.msra.mxu0 0.0
    %411 = vmatprep.subr.mxu0 0.0
    %412 = vmatpush1.msra.mxu0 0.0
    %413 = vmatprep.subr.mxu0 0.0
    %414 = vmatpush1.msra.mxu0 0.0
    %415 = vmatprep.subr.mxu0 0.0
    %416 = vmatpush1.msra.mxu0 0.0
    %417 = vmatprep.subr.mxu0 0.0
    %418 = vmatpush1.msra.mxu0 0.0
    %419 = vmatprep.subr.mxu0 0.0
    %420 = vmatpush1.msra.mxu0 0.0
    %421 = vmatprep.subr.mxu0 0.0
    %422 = vmatpush1.msra.mxu0 0.0
    %423 = vmatprep.subr.mxu0 %v395
    %424 = vmatpush1.msra.mxu0 %v392
    %425 = vmatprep.subr.mxu0 %v310
    %426 = vmatpush1.msra.mxu0 %v309
    %427 = vmatprep.subr.mxu0 %v308
    %428 = vmatpush1.msra.mxu0 %v307
    %429 = vmatprep.subr.mxu0 0.0
    %430 = vmatpush2.msra.mxu0 0.0
    %431 = vmatprep.subr.mxu0 0.0
    %432 = vmatpush2.msra.mxu0 0.0
    %433 = vmatprep.subr.mxu0 0.0
    %434 = vmatpush2.msra.mxu0 0.0
    %435 = vmatprep.subr.mxu0 0.0
    %436 = vmatpush2.msra.mxu0 0.0
    %437 = vmatprep.subr.mxu0 0.0
    %438 = vmatpush2.msra.mxu0 0.0
    %439 = vmatprep.subr.mxu0 0.0
    %440 = vmatpush2.msra.mxu0 0.0
    %441 = vmatprep.subr.mxu0 0.0
    %442 = vmatpush2.msra.mxu0 0.0
    %443 = vmatprep.subr.mxu0 0.0
    %444 = vmatpush2.msra.mxu0 0.0
    %445 = vmatprep.subr.mxu0 0.0
    %446 = vmatpush2.msra.mxu0 0.0
    %447 = vmatprep.subr.mxu0 0.0
    %448 = vmatpush2.msra.mxu0 0.0
    %449 = vmatprep.subr.mxu0 0.0
    %450 = vmatpush2.msra.mxu0 0.0
    %451 = vmatprep.subr.mxu0 0.0
    %452 = vmatpush2.msra.mxu0 0.0
    %453 = vmatprep.subr.mxu0 0.0
    %454 = vmatpush2.msra.mxu0 0.0
    %455 = vmatprep.subr.mxu0 0.0
    %456 = vmatpush2.msra.mxu0 0.0
    %457 = vmatprep.subr.mxu0 0.0
    %458 = vmatpush2.msra.mxu0 0.0
    %459 = vmatprep.subr.mxu0 0.0
    %460 = vmatpush2.msra.mxu0 0.0
    %461 = vmatprep.mubr.f32.mxu0 0.0
    %462 = vmatmul.mubr.f32.gmra.mxu0 %v358
    %v463 = vpop.f32.mrf.mxu0
    %v464 = vadd.f32 %v318, %v463
    %v465 = vpop.f32.mrf.mxu0
    %v466 = vadd.f32 %v322, %v465
    %467 = vmatprep.mubr.f32.mxu0 0.0
    %468 = vmatmul.mubr.f32.gmra.mxu0 %v360
    %v469 = vpop.f32.mrf.mxu0
    %v470 = vadd.f32 %v318, %v469
    %v471 = vpop.f32.mrf.mxu0
    %v472 = vadd.f32 %v322, %v471
    %473 = vmatprep.mubr.f32.mxu0 0.0
    %474 = vmatmul.mubr.f32.gmra.mxu0 %v362
    %v475 = vpop.f32.mrf.mxu0
    %v476 = vadd.f32 %v318, %v475
    %v477 = vpop.f32.mrf.mxu0
    %v478 = vadd.f32 %v322, %v477
    %479 = vmatprep.mubr.f32.mxu0 0.0
    %480 = vmatmul.mubr.f32.gmra.mxu0 %v364
    %v481 = vpop.f32.mrf.mxu0
    %v482 = vadd.f32 %v318, %v481
    %v483 = vpop.f32.mrf.mxu0
    %v484 = vadd.f32 %v322, %v483
    %485 = vmatprep.mubr.f32.mxu0 0.0
    %486 = vmatmul.mubr.f32.gmra.mxu0 %v366
    %v487 = vpop.f32.mrf.mxu0
    %v488 = vadd.f32 %v318, %v487
    %v489 = vpop.f32.mrf.mxu0
    %v490 = vadd.f32 %v322, %v489
    %491 = vmatprep.mubr.f32.mxu0 0.0
    %492 = vmatmul.mubr.f32.gmra.mxu0 %v368
    %v493 = vpop.f32.mrf.mxu0
    %v494 = vadd.f32 %v318, %v493
    %v495 = vpop.f32.mrf.mxu0
    %v496 = vadd.f32 %v322, %v495
    %497 = vmatprep.mubr.f32.mxu0 0.0
    %498 = vmatmul.mubr.f32.gmra.mxu0 %v370
    %v499 = vpop.f32.mrf.mxu0
    %v500 = vadd.f32 %v318, %v499
    %v501 = vpop.f32.mrf.mxu0
    %v502 = vadd.f32 %v322, %v501
    %503 = vmatprep.mubr.f32.mxu0 0.0
    %504 = vmatmul.mubr.f32.gmra.mxu0 %v372
    %v505 = vpop.f32.mrf.mxu0
    %v506 = vadd.f32 %v318, %v505
    %v507 = vpop.f32.mrf.mxu0
    %v508 = vadd.f32 %v322, %v507
    %509 = vmatprep.mubr.f32.mxu0 0.0
    %510 = vmatmul.mubr.f32.gmra.mxu0 %v374
    %v511 = vpop.f32.mrf.mxu0
    %v512 = vadd.f32 %v318, %v511
    %v513 = vpop.f32.mrf.mxu0
    %v514 = vadd.f32 %v322, %v513
    %515 = vmatprep.mubr.f32.mxu0 0.0
    %516 = vmatmul.mubr.f32.gmra.mxu0 %v376
    %v517 = vpop.f32.mrf.mxu0
    %v518 = vadd.f32 %v318, %v517
    %v519 = vpop.f32.mrf.mxu0
    %v520 = vadd.f32 %v322, %v519
    %521 = vmatprep.mubr.f32.mxu0 0.0
    %522 = vmatmul.mubr.f32.gmra.mxu0 %v378
    %v523 = vpop.f32.mrf.mxu0
    %v524 = vadd.f32 %v318, %v523
    %v525 = vpop.f32.mrf.mxu0
    %v526 = vadd.f32 %v322, %v525
    %527 = vmatprep.mubr.f32.mxu0 0.0
    %528 = vmatmul.mubr.f32.gmra.mxu0 %v380
    %v529 = vpop.f32.mrf.mxu0
    %v530 = vadd.f32 %v318, %v529
    %v531 = vpop.f32.mrf.mxu0
    %v532 = vadd.f32 %v322, %v531
    %533 = vmatprep.mubr.f32.mxu0 0.0
    %534 = vmatmul.mubr.f32.gmra.mxu0 %v382
    %v535 = vpop.f32.mrf.mxu0
    %v536 = vadd.f32 %v318, %v535
    %v537 = vpop.f32.mrf.mxu0
    %v538 = vadd.f32 %v322, %v537
    %539 = vmatprep.mubr.f32.mxu0 0.0
    %540 = vmatmul.mubr.f32.gmra.mxu0 %v384
    %v541 = vpop.f32.mrf.mxu0
    %v542 = vadd.f32 %v318, %v541
    %v543 = vpop.f32.mrf.mxu0
    %v544 = vadd.f32 %v322, %v543
    %545 = vmatprep.mubr.f32.mxu0 0.0
    %546 = vmatmul.mubr.f32.gmra.mxu0 %v386
    %v547 = vpop.f32.mrf.mxu0
    %v548 = vadd.f32 %v318, %v547
    %v549 = vpop.f32.mrf.mxu0
    %v550 = vadd.f32 %v322, %v549
    %551 = vmatprep.mubr.f32.mxu0 0.0
    %552 = vmatmul.mubr.f32.gmra.mxu0 %v388
    %v553 = vpop.f32.mrf.mxu0
    %v554 = vadd.f32 %v318, %v553
    %v555 = vpop.f32.mrf.mxu0
    %v556 = vadd.f32 %v322, %v555
    %557 = vdwg.mxu0
    %v558 = vld [vmem:[#allocation5] sm:$0xff]
    %v559 = vld [vmem:[#allocation5 + $0x8] sm:$0xff]
    %v560 = vld [vmem:[%s6] sm:$0xff]
    %v561 = vld [vmem:[%s6 + $0x8] sm:$0xff]
    %v562 = vld [vmem:[%s6 + $0x10] sm:$0xff]
    %v563 = vld [vmem:[%s6 + $0x18] sm:$0xff]
    %v564 = vld [vmem:[#allocation7] sm:$0x1]
    %v566 = vlaneseq
    %v567 = vshrl.u32 %v566, 7
    %v568 = vsub.s32 0, %v567
    %v569 = vrot.slane %v564, %v568
    %vm571 = vcmask 130048
    %v573 = vsel %vm571, %v229, 0
    %v576 = vsel %vm571, %v234, 0
    %v579 = vsel %vm571, %v239, 0
    %v582 = vsel %vm571, %v244, 0
    %v585 = vsel %vm571, %v249, 0
    %v588 = vsel %vm571, %v254, 0
    %v591 = vsel %vm571, %v259, 0
    %v594 = vsel %vm571, %v264, 0
    %v597 = vsel %vm571, %v269, 0
    %v600 = vsel %vm571, %v274, 0
    %v603 = vsel %vm571, %v279, 0
    %v606 = vsel %vm571, %v284, 0
    %v609 = vsel %vm571, %v289, 0
    %v612 = vsel %vm571, %v294, 0
    %v615 = vsel %vm571, %v299, 0
    %v618 = vsel %vm571, %v304, 0
    %620 = vmatprep.subr.mxu0 0.0
    %621 = vmatpush1.msra.mxu0 0.0
    %622 = vmatprep.subr.mxu0 0.0
    %623 = vmatpush1.msra.mxu0 0.0
    %624 = vmatprep.subr.mxu0 0.0
    %625 = vmatpush1.msra.mxu0 0.0
    %626 = vmatprep.subr.mxu0 0.0
    %627 = vmatpush1.msra.mxu0 0.0
    %628 = vmatprep.subr.mxu0 0.0
    %629 = vmatpush1.msra.mxu0 0.0
    %630 = vmatprep.subr.mxu0 0.0
    %631 = vmatpush1.msra.mxu0 0.0
    %632 = vmatprep.subr.mxu0 0.0
    %633 = vmatpush1.msra.mxu0 0.0
    %634 = vmatprep.subr.mxu0 0.0
    %635 = vmatpush1.msra.mxu0 0.0
    %636 = vmatprep.subr.mxu0 0.0
    %637 = vmatpush1.msra.mxu0 0.0
    %638 = vmatprep.subr.mxu0 0.0
    %639 = vmatpush1.msra.mxu0 0.0
    %640 = vmatprep.subr.mxu0 0.0
    %641 = vmatpush1.msra.mxu0 0.0
    %642 = vmatprep.subr.mxu0 0.0
    %643 = vmatpush1.msra.mxu0 0.0
    %644 = vmatprep.subr.mxu0 0.0
    %645 = vmatpush1.msra.mxu0 0.0
    %646 = vmatprep.subr.mxu0 0.0
    %647 = vmatpush1.msra.mxu0 0.0
    %648 = vmatprep.subr.mxu0 0.0
    %649 = vmatpush1.msra.mxu0 %v559
    %650 = vmatprep.subr.mxu0 0.0
    %651 = vmatpush1.msra.mxu0 %v558
    %652 = vmatprep.subr.mxu0 0.0
    %653 = vmatpush2.msra.mxu0 0.0
    %654 = vmatprep.subr.mxu0 0.0
    %655 = vmatpush2.msra.mxu0 0.0
    %656 = vmatprep.subr.mxu0 0.0
    %657 = vmatpush2.msra.mxu0 0.0
    %658 = vmatprep.subr.mxu0 0.0
    %659 = vmatpush2.msra.mxu0 0.0
    %660 = vmatprep.subr.mxu0 0.0
    %661 = vmatpush2.msra.mxu0 0.0
    %662 = vmatprep.subr.mxu0 0.0
    %663 = vmatpush2.msra.mxu0 0.0
    %664 = vmatprep.subr.mxu0 0.0
    %665 = vmatpush2.msra.mxu0 0.0
    %666 = vmatprep.subr.mxu0 0.0
    %667 = vmatpush2.msra.mxu0 0.0
    %668 = vmatprep.subr.mxu0 0.0
    %669 = vmatpush2.msra.mxu0 0.0
    %670 = vmatprep.subr.mxu0 0.0
    %671 = vmatpush2.msra.mxu0 0.0
    %672 = vmatprep.subr.mxu0 0.0
    %673 = vmatpush2.msra.mxu0 0.0
    %674 = vmatprep.subr.mxu0 0.0
    %675 = vmatpush2.msra.mxu0 0.0
    %676 = vmatprep.subr.mxu0 0.0
    %677 = vmatpush2.msra.mxu0 0.0
    %678 = vmatprep.subr.mxu0 0.0
    %679 = vmatpush2.msra.mxu0 0.0
    %680 = vmatprep.subr.mxu0 0.0
    %681 = vmatpush2.msra.mxu0 0.0
    %682 = vmatprep.subr.mxu0 0.0
    %683 = vmatpush2.msra.mxu0 0.0
    %684 = vmatprep.mubr.f32.mxu0 0.0
    %685 = vmatmul.mubr.f32.gmra.mxu0 %v573
    %v686 = vpop.f32.mrf.mxu0
    %v687 = vadd.f32 0.0, %v686
    %v688 = vpop.f32.mrf.mxu0
    %689 = vmatprep.mubr.f32.mxu0 0.0
    %690 = vmatmul.mubr.f32.gmra.mxu0 %v576
    %v691 = vpop.f32.mrf.mxu0
    %v692 = vadd.f32 0.0, %v691
    %v693 = vpop.f32.mrf.mxu0
    %694 = vmatprep.mubr.f32.mxu0 0.0
    %695 = vmatmul.mubr.f32.gmra.mxu0 %v579
    %v696 = vpop.f32.mrf.mxu0
    %v697 = vadd.f32 0.0, %v696
    %v698 = vpop.f32.mrf.mxu0
    %699 = vmatprep.mubr.f32.mxu0 0.0
    %700 = vmatmul.mubr.f32.gmra.mxu0 %v582
    %v701 = vpop.f32.mrf.mxu0
    %v702 = vadd.f32 0.0, %v701
    %v703 = vpop.f32.mrf.mxu0
    %704 = vmatprep.mubr.f32.mxu0 0.0
    %705 = vmatmul.mubr.f32.gmra.mxu0 %v585
    %v706 = vpop.f32.mrf.mxu0
    %v707 = vadd.f32 0.0, %v706
    %v708 = vpop.f32.mrf.mxu0
    %709 = vmatprep.mubr.f32.mxu0 0.0
    %710 = vmatmul.mubr.f32.gmra.mxu0 %v588
    %v711 = vpop.f32.mrf.mxu0
    %v712 = vadd.f32 0.0, %v711
    %v713 = vpop.f32.mrf.mxu0
    %714 = vmatprep.mubr.f32.mxu0 0.0
    %715 = vmatmul.mubr.f32.gmra.mxu0 %v591
    %v716 = vpop.f32.mrf.mxu0
    %v717 = vadd.f32 0.0, %v716
    %v718 = vpop.f32.mrf.mxu0
    %719 = vmatprep.mubr.f32.mxu0 0.0
    %720 = vmatmul.mubr.f32.gmra.mxu0 %v594
    %v721 = vpop.f32.mrf.mxu0
    %v722 = vadd.f32 0.0, %v721
    %v723 = vpop.f32.mrf.mxu0
    %724 = vmatprep.mubr.f32.mxu0 0.0
    %725 = vmatmul.mubr.f32.gmra.mxu0 %v597
    %v726 = vpop.f32.mrf.mxu0
    %v727 = vadd.f32 0.0, %v726
    %v728 = vpop.f32.mrf.mxu0
    %729 = vmatprep.mubr.f32.mxu0 0.0
    %730 = vmatmul.mubr.f32.gmra.mxu0 %v600
    %v731 = vpop.f32.mrf.mxu0
    %v732 = vadd.f32 0.0, %v731
    %v733 = vpop.f32.mrf.mxu0
    %734 = vmatprep.mubr.f32.mxu0 0.0
    %735 = vmatmul.mubr.f32.gmra.mxu0 %v603
    %v736 = vpop.f32.mrf.mxu0
    %v737 = vadd.f32 0.0, %v736
    %v738 = vpop.f32.mrf.mxu0
    %739 = vmatprep.mubr.f32.mxu0 0.0
    %740 = vmatmul.mubr.f32.gmra.mxu0 %v606
    %v741 = vpop.f32.mrf.mxu0
    %v742 = vadd.f32 0.0, %v741
    %v743 = vpop.f32.mrf.mxu0
    %744 = vmatprep.mubr.f32.mxu0 0.0
    %745 = vmatmul.mubr.f32.gmra.mxu0 %v609
    %v746 = vpop.f32.mrf.mxu0
    %v747 = vadd.f32 0.0, %v746
    %v748 = vpop.f32.mrf.mxu0
    %749 = vmatprep.mubr.f32.mxu0 0.0
    %750 = vmatmul.mubr.f32.gmra.mxu0 %v612
    %v751 = vpop.f32.mrf.mxu0
    %v752 = vadd.f32 0.0, %v751
    %v753 = vpop.f32.mrf.mxu0
    %754 = vmatprep.mubr.f32.mxu0 0.0
    %755 = vmatmul.mubr.f32.gmra.mxu0 %v615
    %v756 = vpop.f32.mrf.mxu0
    %v757 = vadd.f32 0.0, %v756
    %v758 = vpop.f32.mrf.mxu0
    %759 = vmatprep.mubr.f32.mxu0 0.0
    %760 = vmatmul.mubr.f32.gmra.mxu0 %v618
    %v761 = vpop.f32.mrf.mxu0
    %v762 = vadd.f32 0.0, %v761
    %v763 = vpop.f32.mrf.mxu0
    %764 = vdwg.mxu0
    %v765 = vadd.f32 %v464, %v687
    %v766 = vadd.f32 %v470, %v692
    %v767 = vadd.f32 %v476, %v697
    %v768 = vadd.f32 %v482, %v702
    %v769 = vadd.f32 %v488, %v707
    %v770 = vadd.f32 %v494, %v712
    %v771 = vadd.f32 %v500, %v717
    %v772 = vadd.f32 %v506, %v722
    %v773 = vadd.f32 %v512, %v727
    %v774 = vadd.f32 %v518, %v732
    %v775 = vadd.f32 %v524, %v737
    %v776 = vadd.f32 %v530, %v742
    %v777 = vadd.f32 %v536, %v747
    %v778 = vadd.f32 %v542, %v752
    %v779 = vadd.f32 %v548, %v757
    %v780 = vadd.f32 %v554, %v762
    %v781 = vtanh.pop %v765
    %v782 = vtanh.pop %v766
    %v783 = vtanh.pop %v767
    %v784 = vtanh.pop %v768
    %v785 = vtanh.pop %v769
    %v786 = vtanh.pop %v770
    %v787 = vtanh.pop %v771
    %v788 = vtanh.pop %v772
    %v789 = vtanh.pop %v773
    %v790 = vtanh.pop %v774
    %v791 = vtanh.pop %v775
    %v792 = vtanh.pop %v776
    %v793 = vtanh.pop %v777
    %v794 = vtanh.pop %v778
    %v795 = vtanh.pop %v779
    %v796 = vtanh.pop %v780
    %v797 = vsel %vm571, %v781, %v229
    %v798 = vsel %vm571, %v782, %v234
    %v799 = vsel %vm571, %v783, %v239
    %v800 = vsel %vm571, %v784, %v244
    %v801 = vsel %vm571, %v785, %v249
    %v802 = vsel %vm571, %v786, %v254
    %v803 = vsel %vm571, %v787, %v259
    %v804 = vsel %vm571, %v788, %v264
    %v805 = vsel %vm571, %v789, %v269
    %v806 = vsel %vm571, %v790, %v274
    %v807 = vsel %vm571, %v791, %v279
    %v808 = vsel %vm571, %v792, %v284
    %v809 = vsel %vm571, %v793, %v289
    %v810 = vsel %vm571, %v794, %v294
    %v811 = vsel %vm571, %v795, %v299
    %v812 = vsel %vm571, %v796, %v304
    %vm813 = vcmask 261120
    %v815 = vsel %vm813, %v797, 0
    %v818 = vsel %vm813, %v798, 0
    %v821 = vsel %vm813, %v799, 0
    %v824 = vsel %vm813, %v800, 0
    %v827 = vsel %vm813, %v801, 0
    %v830 = vsel %vm813, %v802, 0
    %v833 = vsel %vm813, %v803, 0
    %v836 = vsel %vm813, %v804, 0
    %v839 = vsel %vm813, %v805, 0
    %v842 = vsel %vm813, %v806, 0
    %v845 = vsel %vm813, %v807, 0
    %v848 = vsel %vm813, %v808, 0
    %v851 = vsel %vm813, %v809, 0
    %v854 = vsel %vm813, %v810, 0
    %v857 = vsel %vm813, %v811, 0
    %v860 = vsel %vm813, %v812, 0
    %862 = vmatprep.subr.mxu0 0.0
    %863 = vmatpush1.msra.mxu0 0.0
    %864 = vmatprep.subr.mxu0 0.0
    %865 = vmatpush1.msra.mxu0 0.0
    %866 = vmatprep.subr.mxu0 0.0
    %867 = vmatpush1.msra.mxu0 0.0
    %868 = vmatprep.subr.mxu0 0.0
    %869 = vmatpush1.msra.mxu0 0.0
    %870 = vmatprep.subr.mxu0 0.0
    %871 = vmatpush1.msra.mxu0 0.0
    %872 = vmatprep.subr.mxu0 0.0
    %873 = vmatpush1.msra.mxu0 0.0
    %874 = vmatprep.subr.mxu0 0.0
    %875 = vmatpush1.msra.mxu0 0.0
    %876 = vmatprep.subr.mxu0 0.0
    %877 = vmatpush1.msra.mxu0 0.0
    %878 = vmatprep.subr.mxu0 0.0
    %879 = vmatpush1.msra.mxu0 0.0
    %880 = vmatprep.subr.mxu0 0.0
    %881 = vmatpush1.msra.mxu0 0.0
    %882 = vmatprep.subr.mxu0 0.0
    %883 = vmatpush1.msra.mxu0 0.0
    %884 = vmatprep.subr.mxu0 0.0
    %885 = vmatpush1.msra.mxu0 0.0
    %886 = vmatprep.subr.mxu0 0.0
    %887 = vmatpush1.msra.mxu0 %v563
    %888 = vmatprep.subr.mxu0 0.0
    %889 = vmatpush1.msra.mxu0 %v562
    %890 = vmatprep.subr.mxu0 0.0
    %891 = vmatpush1.msra.mxu0 %v561
    %892 = vmatprep.subr.mxu0 0.0
    %893 = vmatpush1.msra.mxu0 %v560
    %894 = vmatprep.subr.mxu0 0.0
    %895 = vmatpush2.msra.mxu0 0.0
    %896 = vmatprep.subr.mxu0 0.0
    %897 = vmatpush2.msra.mxu0 0.0
    %898 = vmatprep.subr.mxu0 0.0
    %899 = vmatpush2.msra.mxu0 0.0
    %900 = vmatprep.subr.mxu0 0.0
    %901 = vmatpush2.msra.mxu0 0.0
    %902 = vmatprep.subr.mxu0 0.0
    %903 = vmatpush2.msra.mxu0 0.0
    %904 = vmatprep.subr.mxu0 0.0
    %905 = vmatpush2.msra.mxu0 0.0
    %906 = vmatprep.subr.mxu0 0.0
    %907 = vmatpush2.msra.mxu0 0.0
    %908 = vmatprep.subr.mxu0 0.0
    %909 = vmatpush2.msra.mxu0 0.0
    %910 = vmatprep.subr.mxu0 0.0
    %911 = vmatpush2.msra.mxu0 0.0
    %912 = vmatprep.subr.mxu0 0.0
    %913 = vmatpush2.msra.mxu0 0.0
    %914 = vmatprep.subr.mxu0 0.0
    %915 = vmatpush2.msra.mxu0 0.0
    %916 = vmatprep.subr.mxu0 0.0
    %917 = vmatpush2.msra.mxu0 0.0
    %918 = vmatprep.subr.mxu0 0.0
    %919 = vmatpush2.msra.mxu0 0.0
    %920 = vmatprep.subr.mxu0 0.0
    %921 = vmatpush2.msra.mxu0 0.0
    %922 = vmatprep.subr.mxu0 0.0
    %923 = vmatpush2.msra.mxu0 0.0
    %924 = vmatprep.subr.mxu0 0.0
    %925 = vmatpush2.msra.mxu0 0.0
    %926 = vmatprep.mubr.f32.mxu0 0.0
    %927 = vmatmul.mubr.f32.gmra.mxu0 %v815
    %v928 = vpop.f32.mrf.mxu0
    %v929 = vadd.f32 %v569, %v928
    %v930 = vpop.f32.mrf.mxu0
    %931 = vmatprep.mubr.f32.mxu0 0.0
    %932 = vmatmul.mubr.f32.gmra.mxu0 %v818
    %v933 = vpop.f32.mrf.mxu0
    %v934 = vadd.f32 %v569, %v933
    %v935 = vpop.f32.mrf.mxu0
    %936 = vmatprep.mubr.f32.mxu0 0.0
    %937 = vmatmul.mubr.f32.gmra.mxu0 %v821
    %v938 = vpop.f32.mrf.mxu0
    %v939 = vadd.f32 %v569, %v938
    %v940 = vpop.f32.mrf.mxu0
    %941 = vmatprep.mubr.f32.mxu0 0.0
    %942 = vmatmul.mubr.f32.gmra.mxu0 %v824
    %v943 = vpop.f32.mrf.mxu0
    %v944 = vadd.f32 %v569, %v943
    %v945 = vpop.f32.mrf.mxu0
    %946 = vmatprep.mubr.f32.mxu0 0.0
    %947 = vmatmul.mubr.f32.gmra.mxu0 %v827
    %v948 = vpop.f32.mrf.mxu0
    %v949 = vadd.f32 %v569, %v948
    %v950 = vpop.f32.mrf.mxu0
    %951 = vmatprep.mubr.f32.mxu0 0.0
    %952 = vmatmul.mubr.f32.gmra.mxu0 %v830
    %v953 = vpop.f32.mrf.mxu0
    %v954 = vadd.f32 %v569, %v953
    %v955 = vpop.f32.mrf.mxu0
    %956 = vmatprep.mubr.f32.mxu0 0.0
    %957 = vmatmul.mubr.f32.gmra.mxu0 %v833
    %v958 = vpop.f32.mrf.mxu0
    %v959 = vadd.f32 %v569, %v958
    %v960 = vpop.f32.mrf.mxu0
    %961 = vmatprep.mubr.f32.mxu0 0.0
    %962 = vmatmul.mubr.f32.gmra.mxu0 %v836
    %v963 = vpop.f32.mrf.mxu0
    %v964 = vadd.f32 %v569, %v963
    %v965 = vpop.f32.mrf.mxu0
    %966 = vmatprep.mubr.f32.mxu0 0.0
    %967 = vmatmul.mubr.f32.gmra.mxu0 %v839
    %v968 = vpop.f32.mrf.mxu0
    %v969 = vadd.f32 %v569, %v968
    %v970 = vpop.f32.mrf.mxu0
    %971 = vmatprep.mubr.f32.mxu0 0.0
    %972 = vmatmul.mubr.f32.gmra.mxu0 %v842
    %v973 = vpop.f32.mrf.mxu0
    %v974 = vadd.f32 %v569, %v973
    %v975 = vpop.f32.mrf.mxu0
    %976 = vmatprep.mubr.f32.mxu0 0.0
    %977 = vmatmul.mubr.f32.gmra.mxu0 %v845
    %v978 = vpop.f32.mrf.mxu0
    %v979 = vadd.f32 %v569, %v978
    %v980 = vpop.f32.mrf.mxu0
    %981 = vmatprep.mubr.f32.mxu0 0.0
    %982 = vmatmul.mubr.f32.gmra.mxu0 %v848
    %v983 = vpop.f32.mrf.mxu0
    %v984 = vadd.f32 %v569, %v983
    %v985 = vpop.f32.mrf.mxu0
    %986 = vmatprep.mubr.f32.mxu0 0.0
    %987 = vmatmul.mubr.f32.gmra.mxu0 %v851
    %v988 = vpop.f32.mrf.mxu0
    %v989 = vadd.f32 %v569, %v988
    %v990 = vpop.f32.mrf.mxu0
    %991 = vmatprep.mubr.f32.mxu0 0.0
    %992 = vmatmul.mubr.f32.gmra.mxu0 %v854
    %v993 = vpop.f32.mrf.mxu0
    %v994 = vadd.f32 %v569, %v993
    %v995 = vpop.f32.mrf.mxu0
    %996 = vmatprep.mubr.f32.mxu0 0.0
    %997 = vmatmul.mubr.f32.gmra.mxu0 %v857
    %v998 = vpop.f32.mrf.mxu0
    %v999 = vadd.f32 %v569, %v998
    %v1000 = vpop.f32.mrf.mxu0
    %1001 = vmatprep.mubr.f32.mxu0 0.0
    %1002 = vmatmul.mubr.f32.gmra.mxu0 %v860
    %v1003 = vpop.f32.mrf.mxu0
    %v1004 = vadd.f32 %v569, %v1003
    %v1005 = vpop.f32.mrf.mxu0
    %1006 = vdwg.mxu0
    %v1007 = vtanh.pop %v929
    %v1008 = vtanh.pop %v934
    %v1009 = vtanh.pop %v939
    %v1010 = vtanh.pop %v944
    %v1011 = vtanh.pop %v949
    %v1012 = vtanh.pop %v954
    %v1013 = vtanh.pop %v959
    %v1014 = vtanh.pop %v964
    %v1015 = vtanh.pop %v969
    %v1016 = vtanh.pop %v974
    %v1017 = vtanh.pop %v979
    %v1018 = vtanh.pop %v984
    %v1019 = vtanh.pop %v989
    %v1020 = vtanh.pop %v994
    %v1021 = vtanh.pop %v999
    %v1022 = vtanh.pop %v1004
    %v1024 = vsel %vm571, %v781, 0
    %v1027 = vsel %vm571, %v782, 0
    %v1030 = vsel %vm571, %v783, 0
    %v1033 = vsel %vm571, %v784, 0
    %v1036 = vsel %vm571, %v785, 0
    %v1039 = vsel %vm571, %v786, 0
    %v1042 = vsel %vm571, %v787, 0
    %v1045 = vsel %vm571, %v788, 0
    %v1048 = vsel %vm571, %v789, 0
    %v1051 = vsel %vm571, %v790, 0
    %v1054 = vsel %vm571, %v791, 0
    %v1057 = vsel %vm571, %v792, 0
    %v1060 = vsel %vm571, %v793, 0
    %v1063 = vsel %vm571, %v794, 0
    %v1066 = vsel %vm571, %v795, 0
    %v1069 = vsel %vm571, %v796, 0
    %1071 = vmatprep.subr.mxu0 0.0
    %1072 = vmatpush1.msra.mxu0 0.0
    %1073 = vmatprep.subr.mxu0 0.0
    %1074 = vmatpush1.msra.mxu0 0.0
    %1075 = vmatprep.subr.mxu0 0.0
    %1076 = vmatpush1.msra.mxu0 0.0
    %1077 = vmatprep.subr.mxu0 0.0
    %1078 = vmatpush1.msra.mxu0 0.0
    %1079 = vmatprep.subr.mxu0 0.0
    %1080 = vmatpush1.msra.mxu0 0.0
    %1081 = vmatprep.subr.mxu0 0.0
    %1082 = vmatpush1.msra.mxu0 0.0
    %1083 = vmatprep.subr.mxu0 0.0
    %1084 = vmatpush1.msra.mxu0 0.0
    %1085 = vmatprep.subr.mxu0 0.0
    %1086 = vmatpush1.msra.mxu0 0.0
    %1087 = vmatprep.subr.mxu0 0.0
    %1088 = vmatpush1.msra.mxu0 0.0
    %1089 = vmatprep.subr.mxu0 0.0
    %1090 = vmatpush1.msra.mxu0 0.0
    %1091 = vmatprep.subr.mxu0 0.0
    %1092 = vmatpush1.msra.mxu0 0.0
    %1093 = vmatprep.subr.mxu0 0.0
    %1094 = vmatpush1.msra.mxu0 0.0
    %1095 = vmatprep.subr.mxu0 0.0
    %1096 = vmatpush1.msra.mxu0 0.0
    %1097 = vmatprep.subr.mxu0 0.0
    %1098 = vmatpush1.msra.mxu0 0.0
    %1099 = vmatprep.subr.mxu0 0.0
    %1100 = vmatpush1.msra.mxu0 %v559
    %1101 = vmatprep.subr.mxu0 0.0
    %1102 = vmatpush1.msra.mxu0 %v558
    %1103 = vmatprep.subr.mxu0 0.0
    %1104 = vmatpush2.msra.mxu0 0.0
    %1105 = vmatprep.subr.mxu0 0.0
    %1106 = vmatpush2.msra.mxu0 0.0
    %1107 = vmatprep.subr.mxu0 0.0
    %1108 = vmatpush2.msra.mxu0 0.0
    %1109 = vmatprep.subr.mxu0 0.0
    %1110 = vmatpush2.msra.mxu0 0.0
    %1111 = vmatprep.subr.mxu0 0.0
    %1112 = vmatpush2.msra.mxu0 0.0
    %1113 = vmatprep.subr.mxu0 0.0
    %1114 = vmatpush2.msra.mxu0 0.0
    %1115 = vmatprep.subr.mxu0 0.0
    %1116 = vmatpush2.msra.mxu0 0.0
    %1117 = vmatprep.subr.mxu0 0.0
    %1118 = vmatpush2.msra.mxu0 0.0
    %1119 = vmatprep.subr.mxu0 0.0
    %1120 = vmatpush2.msra.mxu0 0.0
    %1121 = vmatprep.subr.mxu0 0.0
    %1122 = vmatpush2.msra.mxu0 0.0
    %1123 = vmatprep.subr.mxu0 0.0
    %1124 = vmatpush2.msra.mxu0 0.0
    %1125 = vmatprep.subr.mxu0 0.0
    %1126 = vmatpush2.msra.mxu0 0.0
    %1127 = vmatprep.subr.mxu0 0.0
    %1128 = vmatpush2.msra.mxu0 0.0
    %1129 = vmatprep.subr.mxu0 0.0
    %1130 = vmatpush2.msra.mxu0 0.0
    %1131 = vmatprep.subr.mxu0 0.0
    %1132 = vmatpush2.msra.mxu0 0.0
    %1133 = vmatprep.subr.mxu0 0.0
    %1134 = vmatpush2.msra.mxu0 0.0
    %1135 = vmatprep.mubr.f32.mxu0 0.0
    %1136 = vmatmul.mubr.f32.gmra.mxu0 %v1024
    %v1137 = vpop.f32.mrf.mxu0
    %v1138 = vadd.f32 0.0, %v1137
    %v1139 = vpop.f32.mrf.mxu0
    %1140 = vmatprep.mubr.f32.mxu0 0.0
    %1141 = vmatmul.mubr.f32.gmra.mxu0 %v1027
    %v1142 = vpop.f32.mrf.mxu0
    %v1143 = vadd.f32 0.0, %v1142
    %v1144 = vpop.f32.mrf.mxu0
    %1145 = vmatprep.mubr.f32.mxu0 0.0
    %1146 = vmatmul.mubr.f32.gmra.mxu0 %v1030
    %v1147 = vpop.f32.mrf.mxu0
    %v1148 = vadd.f32 0.0, %v1147
    %v1149 = vpop.f32.mrf.mxu0
    %1150 = vmatprep.mubr.f32.mxu0 0.0
    %1151 = vmatmul.mubr.f32.gmra.mxu0 %v1033
    %v1152 = vpop.f32.mrf.mxu0
    %v1153 = vadd.f32 0.0, %v1152
    %v1154 = vpop.f32.mrf.mxu0
    %1155 = vmatprep.mubr.f32.mxu0 0.0
    %1156 = vmatmul.mubr.f32.gmra.mxu0 %v1036
    %v1157 = vpop.f32.mrf.mxu0
    %v1158 = vadd.f32 0.0, %v1157
    %v1159 = vpop.f32.mrf.mxu0
    %1160 = vmatprep.mubr.f32.mxu0 0.0
    %1161 = vmatmul.mubr.f32.gmra.mxu0 %v1039
    %v1162 = vpop.f32.mrf.mxu0
    %v1163 = vadd.f32 0.0, %v1162
    %v1164 = vpop.f32.mrf.mxu0
    %1165 = vmatprep.mubr.f32.mxu0 0.0
    %1166 = vmatmul.mubr.f32.gmra.mxu0 %v1042
    %v1167 = vpop.f32.mrf.mxu0
    %v1168 = vadd.f32 0.0, %v1167
    %v1169 = vpop.f32.mrf.mxu0
    %1170 = vmatprep.mubr.f32.mxu0 0.0
    %1171 = vmatmul.mubr.f32.gmra.mxu0 %v1045
    %v1172 = vpop.f32.mrf.mxu0
    %v1173 = vadd.f32 0.0, %v1172
    %v1174 = vpop.f32.mrf.mxu0
    %1175 = vmatprep.mubr.f32.mxu0 0.0
    %1176 = vmatmul.mubr.f32.gmra.mxu0 %v1048
    %v1177 = vpop.f32.mrf.mxu0
    %v1178 = vadd.f32 0.0, %v1177
    %v1179 = vpop.f32.mrf.mxu0
    %1180 = vmatprep.mubr.f32.mxu0 0.0
    %1181 = vmatmul.mubr.f32.gmra.mxu0 %v1051
    %v1182 = vpop.f32.mrf.mxu0
    %v1183 = vadd.f32 0.0, %v1182
    %v1184 = vpop.f32.mrf.mxu0
    %1185 = vmatprep.mubr.f32.mxu0 0.0
    %1186 = vmatmul.mubr.f32.gmra.mxu0 %v1054
    %v1187 = vpop.f32.mrf.mxu0
    %v1188 = vadd.f32 0.0, %v1187
    %v1189 = vpop.f32.mrf.mxu0
    %1190 = vmatprep.mubr.f32.mxu0 0.0
    %1191 = vmatmul.mubr.f32.gmra.mxu0 %v1057
    %v1192 = vpop.f32.mrf.mxu0
    %v1193 = vadd.f32 0.0, %v1192
    %v1194 = vpop.f32.mrf.mxu0
    %1195 = vmatprep.mubr.f32.mxu0 0.0
    %1196 = vmatmul.mubr.f32.gmra.mxu0 %v1060
    %v1197 = vpop.f32.mrf.mxu0
    %v1198 = vadd.f32 0.0, %v1197
    %v1199 = vpop.f32.mrf.mxu0
    %1200 = vmatprep.mubr.f32.mxu0 0.0
    %1201 = vmatmul.mubr.f32.gmra.mxu0 %v1063
    %v1202 = vpop.f32.mrf.mxu0
    %v1203 = vadd.f32 0.0, %v1202
    %v1204 = vpop.f32.mrf.mxu0
    %1205 = vmatprep.mubr.f32.mxu0 0.0
    %1206 = vmatmul.mubr.f32.gmra.mxu0 %v1066
    %v1207 = vpop.f32.mrf.mxu0
    %v1208 = vadd.f32 0.0, %v1207
    %v1209 = vpop.f32.mrf.mxu0
    %1210 = vmatprep.mubr.f32.mxu0 0.0
    %1211 = vmatmul.mubr.f32.gmra.mxu0 %v1069
    %v1212 = vpop.f32.mrf.mxu0
    %v1213 = vadd.f32 0.0, %v1212
    %v1214 = vpop.f32.mrf.mxu0
    %1215 = vdwg.mxu0
    %1232 = vrot.lane.b32.xlu0 %v1138, 16
    %v1233 = vpop.permute.xlu0 %1232
    %1234 = vrot.lane.b32.xlu0 %v1143, 16
    %v1235 = vpop.permute.xlu0 %1234
    %1236 = vrot.lane.b32.xlu0 %v1148, 16
    %v1237 = vpop.permute.xlu0 %1236
    %1238 = vrot.lane.b32.xlu0 %v1153, 16
    %v1239 = vpop.permute.xlu0 %1238
    %1240 = vrot.lane.b32.xlu0 %v1158, 16
    %v1241 = vpop.permute.xlu0 %1240
    %1242 = vrot.lane.b32.xlu0 %v1163, 16
    %v1243 = vpop.permute.xlu0 %1242
    %1244 = vrot.lane.b32.xlu0 %v1168, 16
    %v1245 = vpop.permute.xlu0 %1244
    %1246 = vrot.lane.b32.xlu0 %v1173, 16
    %v1247 = vpop.permute.xlu0 %1246
    %1248 = vrot.lane.b32.xlu0 %v1178, 16
    %v1249 = vpop.permute.xlu0 %1248
    %1250 = vrot.lane.b32.xlu0 %v1183, 16
    %v1251 = vpop.permute.xlu0 %1250
    %1252 = vrot.lane.b32.xlu0 %v1188, 16
    %v1253 = vpop.permute.xlu0 %1252
    %1254 = vrot.lane.b32.xlu0 %v1193, 16
    %v1255 = vpop.permute.xlu0 %1254
    %1256 = vrot.lane.b32.xlu0 %v1198, 16
    %v1257 = vpop.permute.xlu0 %1256
    %1258 = vrot.lane.b32.xlu0 %v1203, 16
    %v1259 = vpop.permute.xlu0 %1258
    %1260 = vrot.lane.b32.xlu0 %v1208, 16
    %v1261 = vpop.permute.xlu0 %1260
    %1262 = vrot.lane.b32.xlu0 %v1213, 16
    %v1263 = vpop.permute.xlu0 %1262
    %v1280 = vadd.f32 %v464, %v1233
    %v1281 = vadd.f32 %v470, %v1235
    %v1282 = vadd.f32 %v476, %v1237
    %v1283 = vadd.f32 %v482, %v1239
    %v1284 = vadd.f32 %v488, %v1241
    %v1285 = vadd.f32 %v494, %v1243
    %v1286 = vadd.f32 %v500, %v1245
    %v1287 = vadd.f32 %v506, %v1247
    %v1288 = vadd.f32 %v512, %v1249
    %v1289 = vadd.f32 %v518, %v1251
    %v1290 = vadd.f32 %v524, %v1253
    %v1291 = vadd.f32 %v530, %v1255
    %v1292 = vadd.f32 %v536, %v1257
    %v1293 = vadd.f32 %v542, %v1259
    %v1294 = vadd.f32 %v548, %v1261
    %v1295 = vadd.f32 %v554, %v1263
    %v1296 = vtanh.pop %v1280
    %v1297 = vtanh.pop %v1281
    %v1298 = vtanh.pop %v1282
    %v1299 = vtanh.pop %v1283
    %v1300 = vtanh.pop %v1284
    %v1301 = vtanh.pop %v1285
    %v1302 = vtanh.pop %v1286
    %v1303 = vtanh.pop %v1287
    %v1304 = vtanh.pop %v1288
    %v1305 = vtanh.pop %v1289
    %v1306 = vtanh.pop %v1290
    %v1307 = vtanh.pop %v1291
    %v1308 = vtanh.pop %v1292
    %v1309 = vtanh.pop %v1293
    %v1310 = vtanh.pop %v1294
    %v1311 = vtanh.pop %v1295
    %1328 = vrot.lane.b32.xlu0 %v1296, 112
    %v1329 = vpop.permute.xlu0 %1328
    %1330 = vrot.lane.b32.xlu0 %v1297, 112
    %v1331 = vpop.permute.xlu0 %1330
    %1332 = vrot.lane.b32.xlu0 %v1298, 112
    %v1333 = vpop.permute.xlu0 %1332
    %1334 = vrot.lane.b32.xlu0 %v1299, 112
    %v1335 = vpop.permute.xlu0 %1334
    %1336 = vrot.lane.b32.xlu0 %v1300, 112
    %v1337 = vpop.permute.xlu0 %1336
    %1338 = vrot.lane.b32.xlu0 %v1301, 112
    %v1339 = vpop.permute.xlu0 %1338
    %1340 = vrot.lane.b32.xlu0 %v1302, 112
    %v1341 = vpop.permute.xlu0 %1340
    %1342 = vrot.lane.b32.xlu0 %v1303, 112
    %v1343 = vpop.permute.xlu0 %1342
    %1344 = vrot.lane.b32.xlu0 %v1304, 112
    %v1345 = vpop.permute.xlu0 %1344
    %1346 = vrot.lane.b32.xlu0 %v1305, 112
    %v1347 = vpop.permute.xlu0 %1346
    %1348 = vrot.lane.b32.xlu0 %v1306, 112
    %v1349 = vpop.permute.xlu0 %1348
    %1350 = vrot.lane.b32.xlu0 %v1307, 112
    %v1351 = vpop.permute.xlu0 %1350
    %1352 = vrot.lane.b32.xlu0 %v1308, 112
    %v1353 = vpop.permute.xlu0 %1352
    %1354 = vrot.lane.b32.xlu0 %v1309, 112
    %v1355 = vpop.permute.xlu0 %1354
    %1356 = vrot.lane.b32.xlu0 %v1310, 112
    %v1357 = vpop.permute.xlu0 %1356
    %1358 = vrot.lane.b32.xlu0 %v1311, 112
    %v1359 = vpop.permute.xlu0 %1358
    %1392 = vrot.lane.b32.xlu0 %v1007, 16
    %v1393 = vpop.permute.xlu0 %1392
    %1394 = vrot.lane.b32.xlu0 %v1008, 16
    %v1395 = vpop.permute.xlu0 %1394
    %1396 = vrot.lane.b32.xlu0 %v1009, 16
    %v1397 = vpop.permute.xlu0 %1396
    %1398 = vrot.lane.b32.xlu0 %v1010, 16
    %v1399 = vpop.permute.xlu0 %1398
    %1400 = vrot.lane.b32.xlu0 %v1011, 16
    %v1401 = vpop.permute.xlu0 %1400
    %1402 = vrot.lane.b32.xlu0 %v1012, 16
    %v1403 = vpop.permute.xlu0 %1402
    %1404 = vrot.lane.b32.xlu0 %v1013, 16
    %v1405 = vpop.permute.xlu0 %1404
    %1406 = vrot.lane.b32.xlu0 %v1014, 16
    %v1407 = vpop.permute.xlu0 %1406
    %1408 = vrot.lane.b32.xlu0 %v1015, 16
    %v1409 = vpop.permute.xlu0 %1408
    %1410 = vrot.lane.b32.xlu0 %v1016, 16
    %v1411 = vpop.permute.xlu0 %1410
    %1412 = vrot.lane.b32.xlu0 %v1017, 16
    %v1413 = vpop.permute.xlu0 %1412
    %1414 = vrot.lane.b32.xlu0 %v1018, 16
    %v1415 = vpop.permute.xlu0 %1414
    %1416 = vrot.lane.b32.xlu0 %v1019, 16
    %v1417 = vpop.permute.xlu0 %1416
    %1418 = vrot.lane.b32.xlu0 %v1020, 16
    %v1419 = vpop.permute.xlu0 %1418
    %1420 = vrot.lane.b32.xlu0 %v1021, 16
    %v1421 = vpop.permute.xlu0 %1420
    %1422 = vrot.lane.b32.xlu0 %v1022, 16
    %v1423 = vpop.permute.xlu0 %1422
    %v1440 = vsel %vm571, %v1329, %v1393
    %v1441 = vsel %vm571, %v1331, %v1395
    %v1442 = vsel %vm571, %v1333, %v1397
    %v1443 = vsel %vm571, %v1335, %v1399
    %v1444 = vsel %vm571, %v1337, %v1401
    %v1445 = vsel %vm571, %v1339, %v1403
    %v1446 = vsel %vm571, %v1341, %v1405
    %v1447 = vsel %vm571, %v1343, %v1407
    %v1448 = vsel %vm571, %v1345, %v1409
    %v1449 = vsel %vm571, %v1347, %v1411
    %v1450 = vsel %vm571, %v1349, %v1413
    %v1451 = vsel %vm571, %v1351, %v1415
    %v1452 = vsel %vm571, %v1353, %v1417
    %v1453 = vsel %vm571, %v1355, %v1419
    %v1454 = vsel %vm571, %v1357, %v1421
    %v1455 = vsel %vm571, %v1359, %v1423
    %v1457 = vsel %vm813, %v1440, 0
    %v1460 = vsel %vm813, %v1441, 0
    %v1463 = vsel %vm813, %v1442, 0
    %v1466 = vsel %vm813, %v1443, 0
    %v1469 = vsel %vm813, %v1444, 0
    %v1472 = vsel %vm813, %v1445, 0
    %v1475 = vsel %vm813, %v1446, 0
    %v1478 = vsel %vm813, %v1447, 0
    %v1481 = vsel %vm813, %v1448, 0
    %v1484 = vsel %vm813, %v1449, 0
    %v1487 = vsel %vm813, %v1450, 0
    %v1490 = vsel %vm813, %v1451, 0
    %v1493 = vsel %vm813, %v1452, 0
    %v1496 = vsel %vm813, %v1453, 0
    %v1499 = vsel %vm813, %v1454, 0
    %v1502 = vsel %vm813, %v1455, 0
    %1504 = vmatprep.subr.mxu0 0.0
    %1505 = vmatpush1.msra.mxu0 0.0
    %1506 = vmatprep.subr.mxu0 0.0
    %1507 = vmatpush1.msra.mxu0 0.0
    %1508 = vmatprep.subr.mxu0 0.0
    %1509 = vmatpush1.msra.mxu0 0.0
    %1510 = vmatprep.subr.mxu0 0.0
    %1511 = vmatpush1.msra.mxu0 0.0
    %1512 = vmatprep.subr.mxu0 0.0
    %1513 = vmatpush1.msra.mxu0 0.0
    %1514 = vmatprep.subr.mxu0 0.0
    %1515 = vmatpush1.msra.mxu0 0.0
    %1516 = vmatprep.subr.mxu0 0.0
    %1517 = vmatpush1.msra.mxu0 0.0
    %1518 = vmatprep.subr.mxu0 0.0
    %1519 = vmatpush1.msra.mxu0 0.0
    %1520 = vmatprep.subr.mxu0 0.0
    %1521 = vmatpush1.msra.mxu0 0.0
    %1522 = vmatprep.subr.mxu0 0.0
    %1523 = vmatpush1.msra.mxu0 0.0
    %1524 = vmatprep.subr.mxu0 0.0
    %1525 = vmatpush1.msra.mxu0 0.0
    %1526 = vmatprep.subr.mxu0 0.0
    %1527 = vmatpush1.msra.mxu0 0.0
    %1528 = vmatprep.subr.mxu0 0.0
    %1529 = vmatpush1.msra.mxu0 %v563
    %1530 = vmatprep.subr.mxu0 0.0
    %1531 = vmatpush1.msra.mxu0 %v562
    %1532 = vmatprep.subr.mxu0 0.0
    %1533 = vmatpush1.msra.mxu0 %v561
    %1534 = vmatprep.subr.mxu0 0.0
    %1535 = vmatpush1.msra.mxu0 %v560
    %1536 = vmatprep.subr.mxu0 0.0
    %1537 = vmatpush2.msra.mxu0 0.0
    %1538 = vmatprep.subr.mxu0 0.0
    %1539 = vmatpush2.msra.mxu0 0.0
    %1540 = vmatprep.subr.mxu0 0.0
    %1541 = vmatpush2.msra.mxu0 0.0
    %1542 = vmatprep.subr.mxu0 0.0
    %1543 = vmatpush2.msra.mxu0 0.0
    %1544 = vmatprep.subr.mxu0 0.0
    %1545 = vmatpush2.msra.mxu0 0.0
    %1546 = vmatprep.subr.mxu0 0.0
    %1547 = vmatpush2.msra.mxu0 0.0
    %1548 = vmatprep.subr.mxu0 0.0
    %1549 = vmatpush2.msra.mxu0 0.0
    %1550 = vmatprep.subr.mxu0 0.0
    %1551 = vmatpush2.msra.mxu0 0.0
    %1552 = vmatprep.subr.mxu0 0.0
    %1553 = vmatpush2.msra.mxu0 0.0
    %1554 = vmatprep.subr.mxu0 0.0
    %1555 = vmatpush2.msra.mxu0 0.0
    %1556 = vmatprep.subr.mxu0 0.0
    %1557 = vmatpush2.msra.mxu0 0.0
    %1558 = vmatprep.subr.mxu0 0.0
    %1559 = vmatpush2.msra.mxu0 0.0
    %1560 = vmatprep.subr.mxu0 0.0
    %1561 = vmatpush2.msra.mxu0 0.0
    %1562 = vmatprep.subr.mxu0 0.0
    %1563 = vmatpush2.msra.mxu0 0.0
    %1564 = vmatprep.subr.mxu0 0.0
    %1565 = vmatpush2.msra.mxu0 0.0
    %1566 = vmatprep.subr.mxu0 0.0
    %1567 = vmatpush2.msra.mxu0 0.0
    %1568 = vmatprep.mubr.f32.mxu0 0.0
    %1569 = vmatmul.mubr.f32.gmra.mxu0 %v1457
    %v1570 = vpop.f32.mrf.mxu0
    %v1571 = vadd.f32 %v569, %v1570
    %v1572 = vpop.f32.mrf.mxu0
    %1573 = vmatprep.mubr.f32.mxu0 0.0
    %1574 = vmatmul.mubr.f32.gmra.mxu0 %v1460
    %v1575 = vpop.f32.mrf.mxu0
    %v1576 = vadd.f32 %v569, %v1575
    %v1577 = vpop.f32.mrf.mxu0
    %1578 = vmatprep.mubr.f32.mxu0 0.0
    %1579 = vmatmul.mubr.f32.gmra.mxu0 %v1463
    %v1580 = vpop.f32.mrf.mxu0
    %v1581 = vadd.f32 %v569, %v1580
    %v1582 = vpop.f32.mrf.mxu0
    %1583 = vmatprep.mubr.f32.mxu0 0.0
    %1584 = vmatmul.mubr.f32.gmra.mxu0 %v1466
    %v1585 = vpop.f32.mrf.mxu0
    %v1586 = vadd.f32 %v569, %v1585
    %v1587 = vpop.f32.mrf.mxu0
    %1588 = vmatprep.mubr.f32.mxu0 0.0
    %1589 = vmatmul.mubr.f32.gmra.mxu0 %v1469
    %v1590 = vpop.f32.mrf.mxu0
    %v1591 = vadd.f32 %v569, %v1590
    %v1592 = vpop.f32.mrf.mxu0
    %1593 = vmatprep.mubr.f32.mxu0 0.0
    %1594 = vmatmul.mubr.f32.gmra.mxu0 %v1472
    %v1595 = vpop.f32.mrf.mxu0
    %v1596 = vadd.f32 %v569, %v1595
    %v1597 = vpop.f32.mrf.mxu0
    %1598 = vmatprep.mubr.f32.mxu0 0.0
    %1599 = vmatmul.mubr.f32.gmra.mxu0 %v1475
    %v1600 = vpop.f32.mrf.mxu0
    %v1601 = vadd.f32 %v569, %v1600
    %v1602 = vpop.f32.mrf.mxu0
    %1603 = vmatprep.mubr.f32.mxu0 0.0
    %1604 = vmatmul.mubr.f32.gmra.mxu0 %v1478
    %v1605 = vpop.f32.mrf.mxu0
    %v1606 = vadd.f32 %v569, %v1605
    %v1607 = vpop.f32.mrf.mxu0
    %1608 = vmatprep.mubr.f32.mxu0 0.0
    %1609 = vmatmul.mubr.f32.gmra.mxu0 %v1481
    %v1610 = vpop.f32.mrf.mxu0
    %v1611 = vadd.f32 %v569, %v1610
    %v1612 = vpop.f32.mrf.mxu0
    %1613 = vmatprep.mubr.f32.mxu0 0.0
    %1614 = vmatmul.mubr.f32.gmra.mxu0 %v1484
    %v1615 = vpop.f32.mrf.mxu0
    %v1616 = vadd.f32 %v569, %v1615
    %v1617 = vpop.f32.mrf.mxu0
    %1618 = vmatprep.mubr.f32.mxu0 0.0
    %1619 = vmatmul.mubr.f32.gmra.mxu0 %v1487
    %v1620 = vpop.f32.mrf.mxu0
    %v1621 = vadd.f32 %v569, %v1620
    %v1622 = vpop.f32.mrf.mxu0
    %1623 = vmatprep.mubr.f32.mxu0 0.0
    %1624 = vmatmul.mubr.f32.gmra.mxu0 %v1490
    %v1625 = vpop.f32.mrf.mxu0
    %v1626 = vadd.f32 %v569, %v1625
    %v1627 = vpop.f32.mrf.mxu0
    %1628 = vmatprep.mubr.f32.mxu0 0.0
    %1629 = vmatmul.mubr.f32.gmra.mxu0 %v1493
    %v1630 = vpop.f32.mrf.mxu0
    %v1631 = vadd.f32 %v569, %v1630
    %v1632 = vpop.f32.mrf.mxu0
    %1633 = vmatprep.mubr.f32.mxu0 0.0
    %1634 = vmatmul.mubr.f32.gmra.mxu0 %v1496
    %v1635 = vpop.f32.mrf.mxu0
    %v1636 = vadd.f32 %v569, %v1635
    %v1637 = vpop.f32.mrf.mxu0
    %1638 = vmatprep.mubr.f32.mxu0 0.0
    %1639 = vmatmul.mubr.f32.gmra.mxu0 %v1499
    %v1640 = vpop.f32.mrf.mxu0
    %v1641 = vadd.f32 %v569, %v1640
    %v1642 = vpop.f32.mrf.mxu0
    %1643 = vmatprep.mubr.f32.mxu0 0.0
    %1644 = vmatmul.mubr.f32.gmra.mxu0 %v1502
    %v1645 = vpop.f32.mrf.mxu0
    %v1646 = vadd.f32 %v569, %v1645
    %v1647 = vpop.f32.mrf.mxu0
    %1648 = vdwg.mxu0
    %v1649 = vtanh.pop %v1571
    %v1650 = vtanh.pop %v1576
    %v1651 = vtanh.pop %v1581
    %v1652 = vtanh.pop %v1586
    %v1653 = vtanh.pop %v1591
    %v1654 = vtanh.pop %v1596
    %v1655 = vtanh.pop %v1601
    %v1656 = vtanh.pop %v1606
    %v1657 = vtanh.pop %v1611
    %v1658 = vtanh.pop %v1616
    %v1659 = vtanh.pop %v1621
    %v1660 = vtanh.pop %v1626
    %v1661 = vtanh.pop %v1631
    %v1662 = vtanh.pop %v1636
    %v1663 = vtanh.pop %v1641
    %v1664 = vtanh.pop %v1646
    %v1665 = vsel %vm571, %v1329, 0
    %v1667 = vsel %vm571, %v1331, 0
    %v1669 = vsel %vm571, %v1333, 0
    %v1671 = vsel %vm571, %v1335, 0
    %v1673 = vsel %vm571, %v1337, 0
    %v1675 = vsel %vm571, %v1339, 0
    %v1677 = vsel %vm571, %v1341, 0
    %v1679 = vsel %vm571, %v1343, 0
    %v1681 = vsel %vm571, %v1345, 0
    %v1683 = vsel %vm571, %v1347, 0
    %v1685 = vsel %vm571, %v1349, 0
    %v1687 = vsel %vm571, %v1351, 0
    %v1689 = vsel %vm571, %v1353, 0
    %v1691 = vsel %vm571, %v1355, 0
    %v1693 = vsel %vm571, %v1357, 0
    %v1695 = vsel %vm571, %v1359, 0
    %1697 = vmatprep.subr.mxu0 0.0
    %1698 = vmatpush1.msra.mxu0 0.0
    %1699 = vmatprep.subr.mxu0 0.0
    %1700 = vmatpush1.msra.mxu0 0.0
    %1701 = vmatprep.subr.mxu0 0.0
    %1702 = vmatpush1.msra.mxu0 0.0
    %1703 = vmatprep.subr.mxu0 0.0
    %1704 = vmatpush1.msra.mxu0 0.0
    %1705 = vmatprep.subr.mxu0 0.0
    %1706 = vmatpush1.msra.mxu0 0.0
    %1707 = vmatprep.subr.mxu0 0.0
    %1708 = vmatpush1.msra.mxu0 0.0
    %1709 = vmatprep.subr.mxu0 0.0
    %1710 = vmatpush1.msra.mxu0 0.0
    %1711 = vmatprep.subr.mxu0 0.0
    %1712 = vmatpush1.msra.mxu0 0.0
    %1713 = vmatprep.subr.mxu0 0.0
    %1714 = vmatpush1.msra.mxu0 0.0
    %1715 = vmatprep.subr.mxu0 0.0
    %1716 = vmatpush1.msra.mxu0 0.0
    %1717 = vmatprep.subr.mxu0 0.0
    %1718 = vmatpush1.msra.mxu0 0.0
    %1719 = vmatprep.subr.mxu0 0.0
    %1720 = vmatpush1.msra.mxu0 0.0
    %1721 = vmatprep.subr.mxu0 0.0
    %1722 = vmatpush1.msra.mxu0 0.0
    %1723 = vmatprep.subr.mxu0 0.0
    %1724 = vmatpush1.msra.mxu0 0.0
    %1725 = vmatprep.subr.mxu0 0.0
    %1726 = vmatpush1.msra.mxu0 %v559
    %1727 = vmatprep.subr.mxu0 0.0
    %1728 = vmatpush1.msra.mxu0 %v558
    %1729 = vmatprep.subr.mxu0 0.0
    %1730 = vmatpush2.msra.mxu0 0.0
    %1731 = vmatprep.subr.mxu0 0.0
    %1732 = vmatpush2.msra.mxu0 0.0
    %1733 = vmatprep.subr.mxu0 0.0
    %1734 = vmatpush2.msra.mxu0 0.0
    %1735 = vmatprep.subr.mxu0 0.0
    %1736 = vmatpush2.msra.mxu0 0.0
    %1737 = vmatprep.subr.mxu0 0.0
    %1738 = vmatpush2.msra.mxu0 0.0
    %1739 = vmatprep.subr.mxu0 0.0
    %1740 = vmatpush2.msra.mxu0 0.0
    %1741 = vmatprep.subr.mxu0 0.0
    %1742 = vmatpush2.msra.mxu0 0.0
    %1743 = vmatprep.subr.mxu0 0.0
    %1744 = vmatpush2.msra.mxu0 0.0
    %1745 = vmatprep.subr.mxu0 0.0
    %1746 = vmatpush2.msra.mxu0 0.0
    %1747 = vmatprep.subr.mxu0 0.0
    %1748 = vmatpush2.msra.mxu0 0.0
    %1749 = vmatprep.subr.mxu0 0.0
    %1750 = vmatpush2.msra.mxu0 0.0
    %1751 = vmatprep.subr.mxu0 0.0
    %1752 = vmatpush2.msra.mxu0 0.0
    %1753 = vmatprep.subr.mxu0 0.0
    %1754 = vmatpush2.msra.mxu0 0.0
    %1755 = vmatprep.subr.mxu0 0.0
    %1756 = vmatpush2.msra.mxu0 0.0
    %1757 = vmatprep.subr.mxu0 0.0
    %1758 = vmatpush2.msra.mxu0 0.0
    %1759 = vmatprep.subr.mxu0 0.0
    %1760 = vmatpush2.msra.mxu0 0.0
    %1761 = vmatprep.mubr.f32.mxu0 0.0
    %1762 = vmatmul.mubr.f32.gmra.mxu0 %v1665
    %v1763 = vpop.f32.mrf.mxu0
    %v1764 = vadd.f32 0.0, %v1763
    %v1765 = vpop.f32.mrf.mxu0
    %1766 = vmatprep.mubr.f32.mxu0 0.0
    %1767 = vmatmul.mubr.f32.gmra.mxu0 %v1667
    %v1768 = vpop.f32.mrf.mxu0
    %v1769 = vadd.f32 0.0, %v1768
    %v1770 = vpop.f32.mrf.mxu0
    %1771 = vmatprep.mubr.f32.mxu0 0.0
    %1772 = vmatmul.mubr.f32.gmra.mxu0 %v1669
    %v1773 = vpop.f32.mrf.mxu0
    %v1774 = vadd.f32 0.0, %v1773
    %v1775 = vpop.f32.mrf.mxu0
    %1776 = vmatprep.mubr.f32.mxu0 0.0
    %1777 = vmatmul.mubr.f32.gmra.mxu0 %v1671
    %v1778 = vpop.f32.mrf.mxu0
    %v1779 = vadd.f32 0.0, %v1778
    %v1780 = vpop.f32.mrf.mxu0
    %1781 = vmatprep.mubr.f32.mxu0 0.0
    %1782 = vmatmul.mubr.f32.gmra.mxu0 %v1673
    %v1783 = vpop.f32.mrf.mxu0
    %v1784 = vadd.f32 0.0, %v1783
    %v1785 = vpop.f32.mrf.mxu0
    %1786 = vmatprep.mubr.f32.mxu0 0.0
    %1787 = vmatmul.mubr.f32.gmra.mxu0 %v1675
    %v1788 = vpop.f32.mrf.mxu0
    %v1789 = vadd.f32 0.0, %v1788
    %v1790 = vpop.f32.mrf.mxu0
    %1791 = vmatprep.mubr.f32.mxu0 0.0
    %1792 = vmatmul.mubr.f32.gmra.mxu0 %v1677
    %v1793 = vpop.f32.mrf.mxu0
    %v1794 = vadd.f32 0.0, %v1793
    %v1795 = vpop.f32.mrf.mxu0
    %1796 = vmatprep.mubr.f32.mxu0 0.0
    %1797 = vmatmul.mubr.f32.gmra.mxu0 %v1679
    %v1798 = vpop.f32.mrf.mxu0
    %v1799 = vadd.f32 0.0, %v1798
    %v1800 = vpop.f32.mrf.mxu0
    %1801 = vmatprep.mubr.f32.mxu0 0.0
    %1802 = vmatmul.mubr.f32.gmra.mxu0 %v1681
    %v1803 = vpop.f32.mrf.mxu0
    %v1804 = vadd.f32 0.0, %v1803
    %v1805 = vpop.f32.mrf.mxu0
    %1806 = vmatprep.mubr.f32.mxu0 0.0
    %1807 = vmatmul.mubr.f32.gmra.mxu0 %v1683
    %v1808 = vpop.f32.mrf.mxu0
    %v1809 = vadd.f32 0.0, %v1808
    %v1810 = vpop.f32.mrf.mxu0
    %1811 = vmatprep.mubr.f32.mxu0 0.0
    %1812 = vmatmul.mubr.f32.gmra.mxu0 %v1685
    %v1813 = vpop.f32.mrf.mxu0
    %v1814 = vadd.f32 0.0, %v1813
    %v1815 = vpop.f32.mrf.mxu0
    %1816 = vmatprep.mubr.f32.mxu0 0.0
    %1817 = vmatmul.mubr.f32.gmra.mxu0 %v1687
    %v1818 = vpop.f32.mrf.mxu0
    %v1819 = vadd.f32 0.0, %v1818
    %v1820 = vpop.f32.mrf.mxu0
    %1821 = vmatprep.mubr.f32.mxu0 0.0
    %1822 = vmatmul.mubr.f32.gmra.mxu0 %v1689
    %v1823 = vpop.f32.mrf.mxu0
    %v1824 = vadd.f32 0.0, %v1823
    %v1825 = vpop.f32.mrf.mxu0
    %1826 = vmatprep.mubr.f32.mxu0 0.0
    %1827 = vmatmul.mubr.f32.gmra.mxu0 %v1691
    %v1828 = vpop.f32.mrf.mxu0
    %v1829 = vadd.f32 0.0, %v1828
    %v1830 = vpop.f32.mrf.mxu0
    %1831 = vmatprep.mubr.f32.mxu0 0.0
    %1832 = vmatmul.mubr.f32.gmra.mxu0 %v1693
    %v1833 = vpop.f32.mrf.mxu0
    %v1834 = vadd.f32 0.0, %v1833
    %v1835 = vpop.f32.mrf.mxu0
    %1836 = vmatprep.mubr.f32.mxu0 0.0
    %1837 = vmatmul.mubr.f32.gmra.mxu0 %v1695
    %v1838 = vpop.f32.mrf.mxu0
    %v1839 = vadd.f32 0.0, %v1838
    %v1840 = vpop.f32.mrf.mxu0
    %1841 = vdwg.mxu0
    %1858 = vrot.lane.b32.xlu0 %v1764, 32
    %v1859 = vpop.permute.xlu0 %1858
    %1860 = vrot.lane.b32.xlu0 %v1769, 32
    %v1861 = vpop.permute.xlu0 %1860
    %1862 = vrot.lane.b32.xlu0 %v1774, 32
    %v1863 = vpop.permute.xlu0 %1862
    %1864 = vrot.lane.b32.xlu0 %v1779, 32
    %v1865 = vpop.permute.xlu0 %1864
    %1866 = vrot.lane.b32.xlu0 %v1784, 32
    %v1867 = vpop.permute.xlu0 %1866
    %1868 = vrot.lane.b32.xlu0 %v1789, 32
    %v1869 = vpop.permute.xlu0 %1868
    %1870 = vrot.lane.b32.xlu0 %v1794, 32
    %v1871 = vpop.permute.xlu0 %1870
    %1872 = vrot.lane.b32.xlu0 %v1799, 32
    %v1873 = vpop.permute.xlu0 %1872
    %1874 = vrot.lane.b32.xlu0 %v1804, 32
    %v1875 = vpop.permute.xlu0 %1874
    %1876 = vrot.lane.b32.xlu0 %v1809, 32
    %v1877 = vpop.permute.xlu0 %1876
    %1878 = vrot.lane.b32.xlu0 %v1814, 32
    %v1879 = vpop.permute.xlu0 %1878
    %1880 = vrot.lane.b32.xlu0 %v1819, 32
    %v1881 = vpop.permute.xlu0 %1880
    %1882 = vrot.lane.b32.xlu0 %v1824, 32
    %v1883 = vpop.permute.xlu0 %1882
    %1884 = vrot.lane.b32.xlu0 %v1829, 32
    %v1885 = vpop.permute.xlu0 %1884
    %1886 = vrot.lane.b32.xlu0 %v1834, 32
    %v1887 = vpop.permute.xlu0 %1886
    %1888 = vrot.lane.b32.xlu0 %v1839, 32
    %v1889 = vpop.permute.xlu0 %1888
    %v1906 = vadd.f32 %v464, %v1859
    %v1907 = vadd.f32 %v470, %v1861
    %v1908 = vadd.f32 %v476, %v1863
    %v1909 = vadd.f32 %v482, %v1865
    %v1910 = vadd.f32 %v488, %v1867
    %v1911 = vadd.f32 %v494, %v1869
    %v1912 = vadd.f32 %v500, %v1871
    %v1913 = vadd.f32 %v506, %v1873
    %v1914 = vadd.f32 %v512, %v1875
    %v1915 = vadd.f32 %v518, %v1877
    %v1916 = vadd.f32 %v524, %v1879
    %v1917 = vadd.f32 %v530, %v1881
    %v1918 = vadd.f32 %v536, %v1883
    %v1919 = vadd.f32 %v542, %v1885
    %v1920 = vadd.f32 %v548, %v1887
    %v1921 = vadd.f32 %v554, %v1889
    %v1922 = vtanh.pop %v1906
    %v1923 = vtanh.pop %v1907
    %v1924 = vtanh.pop %v1908
    %v1925 = vtanh.pop %v1909
    %v1926 = vtanh.pop %v1910
    %v1927 = vtanh.pop %v1911
    %v1928 = vtanh.pop %v1912
    %v1929 = vtanh.pop %v1913
    %v1930 = vtanh.pop %v1914
    %v1931 = vtanh.pop %v1915
    %v1932 = vtanh.pop %v1916
    %v1933 = vtanh.pop %v1917
    %v1934 = vtanh.pop %v1918
    %v1935 = vtanh.pop %v1919
    %v1936 = vtanh.pop %v1920
    %v1937 = vtanh.pop %v1921
    %1954 = vrot.lane.b32.xlu0 %v1922, 96
    %v1955 = vpop.permute.xlu0 %1954
    %1956 = vrot.lane.b32.xlu0 %v1923, 96
    %v1957 = vpop.permute.xlu0 %1956
    %1958 = vrot.lane.b32.xlu0 %v1924, 96
    %v1959 = vpop.permute.xlu0 %1958
    %1960 = vrot.lane.b32.xlu0 %v1925, 96
    %v1961 = vpop.permute.xlu0 %1960
    %1962 = vrot.lane.b32.xlu0 %v1926, 96
    %v1963 = vpop.permute.xlu0 %1962
    %1964 = vrot.lane.b32.xlu0 %v1927, 96
    %v1965 = vpop.permute.xlu0 %1964
    %1966 = vrot.lane.b32.xlu0 %v1928, 96
    %v1967 = vpop.permute.xlu0 %1966
    %1968 = vrot.lane.b32.xlu0 %v1929, 96
    %v1969 = vpop.permute.xlu0 %1968
    %1970 = vrot.lane.b32.xlu0 %v1930, 96
    %v1971 = vpop.permute.xlu0 %1970
    %1972 = vrot.lane.b32.xlu0 %v1931, 96
    %v1973 = vpop.permute.xlu0 %1972
    %1974 = vrot.lane.b32.xlu0 %v1932, 96
    %v1975 = vpop.permute.xlu0 %1974
    %1976 = vrot.lane.b32.xlu0 %v1933, 96
    %v1977 = vpop.permute.xlu0 %1976
    %1978 = vrot.lane.b32.xlu0 %v1934, 96
    %v1979 = vpop.permute.xlu0 %1978
    %1980 = vrot.lane.b32.xlu0 %v1935, 96
    %v1981 = vpop.permute.xlu0 %1980
    %1982 = vrot.lane.b32.xlu0 %v1936, 96
    %v1983 = vpop.permute.xlu0 %1982
    %1984 = vrot.lane.b32.xlu0 %v1937, 96
    %v1985 = vpop.permute.xlu0 %1984
    %2018 = vrot.lane.b32.xlu0 %v1649, 16
    %v2019 = vpop.permute.xlu0 %2018
    %2020 = vrot.lane.b32.xlu0 %v1650, 16
    %v2021 = vpop.permute.xlu0 %2020
    %2022 = vrot.lane.b32.xlu0 %v1651, 16
    %v2023 = vpop.permute.xlu0 %2022
    %2024 = vrot.lane.b32.xlu0 %v1652, 16
    %v2025 = vpop.permute.xlu0 %2024
    %2026 = vrot.lane.b32.xlu0 %v1653, 16
    %v2027 = vpop.permute.xlu0 %2026
    %2028 = vrot.lane.b32.xlu0 %v1654, 16
    %v2029 = vpop.permute.xlu0 %2028
    %2030 = vrot.lane.b32.xlu0 %v1655, 16
    %v2031 = vpop.permute.xlu0 %2030
    %2032 = vrot.lane.b32.xlu0 %v1656, 16
    %v2033 = vpop.permute.xlu0 %2032
    %2034 = vrot.lane.b32.xlu0 %v1657, 16
    %v2035 = vpop.permute.xlu0 %2034
    %2036 = vrot.lane.b32.xlu0 %v1658, 16
    %v2037 = vpop.permute.xlu0 %2036
    %2038 = vrot.lane.b32.xlu0 %v1659, 16
    %v2039 = vpop.permute.xlu0 %2038
    %2040 = vrot.lane.b32.xlu0 %v1660, 16
    %v2041 = vpop.permute.xlu0 %2040
    %2042 = vrot.lane.b32.xlu0 %v1661, 16
    %v2043 = vpop.permute.xlu0 %2042
    %2044 = vrot.lane.b32.xlu0 %v1662, 16
    %v2045 = vpop.permute.xlu0 %2044
    %2046 = vrot.lane.b32.xlu0 %v1663, 16
    %v2047 = vpop.permute.xlu0 %2046
    %2048 = vrot.lane.b32.xlu0 %v1664, 16
    %v2049 = vpop.permute.xlu0 %2048
    %v2066 = vsel %vm571, %v1955, %v2019
    %v2067 = vsel %vm571, %v1957, %v2021
    %v2068 = vsel %vm571, %v1959, %v2023
    %v2069 = vsel %vm571, %v1961, %v2025
    %v2070 = vsel %vm571, %v1963, %v2027
    %v2071 = vsel %vm571, %v1965, %v2029
    %v2072 = vsel %vm571, %v1967, %v2031
    %v2073 = vsel %vm571, %v1969, %v2033
    %v2074 = vsel %vm571, %v1971, %v2035
    %v2075 = vsel %vm571, %v1973, %v2037
    %v2076 = vsel %vm571, %v1975, %v2039
    %v2077 = vsel %vm571, %v1977, %v2041
    %v2078 = vsel %vm571, %v1979, %v2043
    %v2079 = vsel %vm571, %v1981, %v2045
    %v2080 = vsel %vm571, %v1983, %v2047
    %v2081 = vsel %vm571, %v1985, %v2049
    %v2083 = vsel %vm813, %v2066, 0
    %v2086 = vsel %vm813, %v2067, 0
    %v2089 = vsel %vm813, %v2068, 0
    %v2092 = vsel %vm813, %v2069, 0
    %v2095 = vsel %vm813, %v2070, 0
    %v2098 = vsel %vm813, %v2071, 0
    %v2101 = vsel %vm813, %v2072, 0
    %v2104 = vsel %vm813, %v2073, 0
    %v2107 = vsel %vm813, %v2074, 0
    %v2110 = vsel %vm813, %v2075, 0
    %v2113 = vsel %vm813, %v2076, 0
    %v2116 = vsel %vm813, %v2077, 0
    %v2119 = vsel %vm813, %v2078, 0
    %v2122 = vsel %vm813, %v2079, 0
    %v2125 = vsel %vm813, %v2080, 0
    %v2128 = vsel %vm813, %v2081, 0
    %2130 = vmatprep.subr.mxu0 0.0
    %2131 = vmatpush1.msra.mxu0 0.0
    %2132 = vmatprep.subr.mxu0 0.0
    %2133 = vmatpush1.msra.mxu0 0.0
    %2134 = vmatprep.subr.mxu0 0.0
    %2135 = vmatpush1.msra.mxu0 0.0
    %2136 = vmatprep.subr.mxu0 0.0
    %2137 = vmatpush1.msra.mxu0 0.0
    %2138 = vmatprep.subr.mxu0 0.0
    %2139 = vmatpush1.msra.mxu0 0.0
    %2140 = vmatprep.subr.mxu0 0.0
    %2141 = vmatpush1.msra.mxu0 0.0
    %2142 = vmatprep.subr.mxu0 0.0
    %2143 = vmatpush1.msra.mxu0 0.0
    %2144 = vmatprep.subr.mxu0 0.0
    %2145 = vmatpush1.msra.mxu0 0.0
    %2146 = vmatprep.subr.mxu0 0.0
    %2147 = vmatpush1.msra.mxu0 0.0
    %2148 = vmatprep.subr.mxu0 0.0
    %2149 = vmatpush1.msra.mxu0 0.0
    %2150 = vmatprep.subr.mxu0 0.0
    %2151 = vmatpush1.msra.mxu0 0.0
    %2152 = vmatprep.subr.mxu0 0.0
    %2153 = vmatpush1.msra.mxu0 0.0
    %2154 = vmatprep.subr.mxu0 0.0
    %2155 = vmatpush1.msra.mxu0 %v563
    %2156 = vmatprep.subr.mxu0 0.0
    %2157 = vmatpush1.msra.mxu0 %v562
    %2158 = vmatprep.subr.mxu0 0.0
    %2159 = vmatpush1.msra.mxu0 %v561
    %2160 = vmatprep.subr.mxu0 0.0
    %2161 = vmatpush1.msra.mxu0 %v560
    %2162 = vmatprep.subr.mxu0 0.0
    %2163 = vmatpush2.msra.mxu0 0.0
    %2164 = vmatprep.subr.mxu0 0.0
    %2165 = vmatpush2.msra.mxu0 0.0
    %2166 = vmatprep.subr.mxu0 0.0
    %2167 = vmatpush2.msra.mxu0 0.0
    %2168 = vmatprep.subr.mxu0 0.0
    %2169 = vmatpush2.msra.mxu0 0.0
    %2170 = vmatprep.subr.mxu0 0.0
    %2171 = vmatpush2.msra.mxu0 0.0
    %2172 = vmatprep.subr.mxu0 0.0
    %2173 = vmatpush2.msra.mxu0 0.0
    %2174 = vmatprep.subr.mxu0 0.0
    %2175 = vmatpush2.msra.mxu0 0.0
    %2176 = vmatprep.subr.mxu0 0.0
    %2177 = vmatpush2.msra.mxu0 0.0
    %2178 = vmatprep.subr.mxu0 0.0
    %2179 = vmatpush2.msra.mxu0 0.0
    %2180 = vmatprep.subr.mxu0 0.0
    %2181 = vmatpush2.msra.mxu0 0.0
    %2182 = vmatprep.subr.mxu0 0.0
    %2183 = vmatpush2.msra.mxu0 0.0
    %2184 = vmatprep.subr.mxu0 0.0
    %2185 = vmatpush2.msra.mxu0 0.0
    %2186 = vmatprep.subr.mxu0 0.0
    %2187 = vmatpush2.msra.mxu0 0.0
    %2188 = vmatprep.subr.mxu0 0.0
    %2189 = vmatpush2.msra.mxu0 0.0
    %2190 = vmatprep.subr.mxu0 0.0
    %2191 = vmatpush2.msra.mxu0 0.0
    %2192 = vmatprep.subr.mxu0 0.0
    %2193 = vmatpush2.msra.mxu0 0.0
    %2194 = vmatprep.mubr.f32.mxu0 0.0
    %2195 = vmatmul.mubr.f32.gmra.mxu0 %v2083
    %v2196 = vpop.f32.mrf.mxu0
    %v2197 = vadd.f32 %v569, %v2196
    %v2198 = vpop.f32.mrf.mxu0
    %2199 = vmatprep.mubr.f32.mxu0 0.0
    %2200 = vmatmul.mubr.f32.gmra.mxu0 %v2086
    %v2201 = vpop.f32.mrf.mxu0
    %v2202 = vadd.f32 %v569, %v2201
    %v2203 = vpop.f32.mrf.mxu0
    %2204 = vmatprep.mubr.f32.mxu0 0.0
    %2205 = vmatmul.mubr.f32.gmra.mxu0 %v2089
    %v2206 = vpop.f32.mrf.mxu0
    %v2207 = vadd.f32 %v569, %v2206
    %v2208 = vpop.f32.mrf.mxu0
    %2209 = vmatprep.mubr.f32.mxu0 0.0
    %2210 = vmatmul.mubr.f32.gmra.mxu0 %v2092
    %v2211 = vpop.f32.mrf.mxu0
    %v2212 = vadd.f32 %v569, %v2211
    %v2213 = vpop.f32.mrf.mxu0
    %2214 = vmatprep.mubr.f32.mxu0 0.0
    %2215 = vmatmul.mubr.f32.gmra.mxu0 %v2095
    %v2216 = vpop.f32.mrf.mxu0
    %v2217 = vadd.f32 %v569, %v2216
    %v2218 = vpop.f32.mrf.mxu0
    %2219 = vmatprep.mubr.f32.mxu0 0.0
    %2220 = vmatmul.mubr.f32.gmra.mxu0 %v2098
    %v2221 = vpop.f32.mrf.mxu0
    %v2222 = vadd.f32 %v569, %v2221
    %v2223 = vpop.f32.mrf.mxu0
    %2224 = vmatprep.mubr.f32.mxu0 0.0
    %2225 = vmatmul.mubr.f32.gmra.mxu0 %v2101
    %v2226 = vpop.f32.mrf.mxu0
    %v2227 = vadd.f32 %v569, %v2226
    %v2228 = vpop.f32.mrf.mxu0
    %2229 = vmatprep.mubr.f32.mxu0 0.0
    %2230 = vmatmul.mubr.f32.gmra.mxu0 %v2104
    %v2231 = vpop.f32.mrf.mxu0
    %v2232 = vadd.f32 %v569, %v2231
    %v2233 = vpop.f32.mrf.mxu0
    %2234 = vmatprep.mubr.f32.mxu0 0.0
    %2235 = vmatmul.mubr.f32.gmra.mxu0 %v2107
    %v2236 = vpop.f32.mrf.mxu0
    %v2237 = vadd.f32 %v569, %v2236
    %v2238 = vpop.f32.mrf.mxu0
    %2239 = vmatprep.mubr.f32.mxu0 0.0
    %2240 = vmatmul.mubr.f32.gmra.mxu0 %v2110
    %v2241 = vpop.f32.mrf.mxu0
    %v2242 = vadd.f32 %v569, %v2241
    %v2243 = vpop.f32.mrf.mxu0
    %2244 = vmatprep.mubr.f32.mxu0 0.0
    %2245 = vmatmul.mubr.f32.gmra.mxu0 %v2113
    %v2246 = vpop.f32.mrf.mxu0
    %v2247 = vadd.f32 %v569, %v2246
    %v2248 = vpop.f32.mrf.mxu0
    %2249 = vmatprep.mubr.f32.mxu0 0.0
    %2250 = vmatmul.mubr.f32.gmra.mxu0 %v2116
    %v2251 = vpop.f32.mrf.mxu0
    %v2252 = vadd.f32 %v569, %v2251
    %v2253 = vpop.f32.mrf.mxu0
    %2254 = vmatprep.mubr.f32.mxu0 0.0
    %2255 = vmatmul.mubr.f32.gmra.mxu0 %v2119
    %v2256 = vpop.f32.mrf.mxu0
    %v2257 = vadd.f32 %v569, %v2256
    %v2258 = vpop.f32.mrf.mxu0
    %2259 = vmatprep.mubr.f32.mxu0 0.0
    %2260 = vmatmul.mubr.f32.gmra.mxu0 %v2122
    %v2261 = vpop.f32.mrf.mxu0
    %v2262 = vadd.f32 %v569, %v2261
    %v2263 = vpop.f32.mrf.mxu0
    %2264 = vmatprep.mubr.f32.mxu0 0.0
    %2265 = vmatmul.mubr.f32.gmra.mxu0 %v2125
    %v2266 = vpop.f32.mrf.mxu0
    %v2267 = vadd.f32 %v569, %v2266
    %v2268 = vpop.f32.mrf.mxu0
    %2269 = vmatprep.mubr.f32.mxu0 0.0
    %2270 = vmatmul.mubr.f32.gmra.mxu0 %v2128
    %v2271 = vpop.f32.mrf.mxu0
    %v2272 = vadd.f32 %v569, %v2271
    %v2273 = vpop.f32.mrf.mxu0
    %2274 = vdwg.mxu0
    %v2275 = vtanh.pop %v2197
    %v2276 = vtanh.pop %v2202
    %v2277 = vtanh.pop %v2207
    %v2278 = vtanh.pop %v2212
    %v2279 = vtanh.pop %v2217
    %v2280 = vtanh.pop %v2222
    %v2281 = vtanh.pop %v2227
    %v2282 = vtanh.pop %v2232
    %v2283 = vtanh.pop %v2237
    %v2284 = vtanh.pop %v2242
    %v2285 = vtanh.pop %v2247
    %v2286 = vtanh.pop %v2252
    %v2287 = vtanh.pop %v2257
    %v2288 = vtanh.pop %v2262
    %v2289 = vtanh.pop %v2267
    %v2290 = vtanh.pop %v2272
    %v2291 = vsel %vm571, %v1955, 0
    %v2293 = vsel %vm571, %v1957, 0
    %v2295 = vsel %vm571, %v1959, 0
    %v2297 = vsel %vm571, %v1961, 0
    %v2299 = vsel %vm571, %v1963, 0
    %v2301 = vsel %vm571, %v1965, 0
    %v2303 = vsel %vm571, %v1967, 0
    %v2305 = vsel %vm571, %v1969, 0
    %v2307 = vsel %vm571, %v1971, 0
    %v2309 = vsel %vm571, %v1973, 0
    %v2311 = vsel %vm571, %v1975, 0
    %v2313 = vsel %vm571, %v1977, 0
    %v2315 = vsel %vm571, %v1979, 0
    %v2317 = vsel %vm571, %v1981, 0
    %v2319 = vsel %vm571, %v1983, 0
    %v2321 = vsel %vm571, %v1985, 0
    %2323 = vmatprep.subr.mxu0 0.0
    %2324 = vmatpush1.msra.mxu0 0.0
    %2325 = vmatprep.subr.mxu0 0.0
    %2326 = vmatpush1.msra.mxu0 0.0
    %2327 = vmatprep.subr.mxu0 0.0
    %2328 = vmatpush1.msra.mxu0 0.0
    %2329 = vmatprep.subr.mxu0 0.0
    %2330 = vmatpush1.msra.mxu0 0.0
    %2331 = vmatprep.subr.mxu0 0.0
    %2332 = vmatpush1.msra.mxu0 0.0
    %2333 = vmatprep.subr.mxu0 0.0
    %2334 = vmatpush1.msra.mxu0 0.0
    %2335 = vmatprep.subr.mxu0 0.0
    %2336 = vmatpush1.msra.mxu0 0.0
    %2337 = vmatprep.subr.mxu0 0.0
    %2338 = vmatpush1.msra.mxu0 0.0
    %2339 = vmatprep.subr.mxu0 0.0
    %2340 = vmatpush1.msra.mxu0 0.0
    %2341 = vmatprep.subr.mxu0 0.0
    %2342 = vmatpush1.msra.mxu0 0.0
    %2343 = vmatprep.subr.mxu0 0.0
    %2344 = vmatpush1.msra.mxu0 0.0
    %2345 = vmatprep.subr.mxu0 0.0
    %2346 = vmatpush1.msra.mxu0 0.0
    %2347 = vmatprep.subr.mxu0 0.0
    %2348 = vmatpush1.msra.mxu0 0.0
    %2349 = vmatprep.subr.mxu0 0.0
    %2350 = vmatpush1.msra.mxu0 0.0
    %2351 = vmatprep.subr.mxu0 0.0
    %2352 = vmatpush1.msra.mxu0 %v559
    %2353 = vmatprep.subr.mxu0 0.0
    %2354 = vmatpush1.msra.mxu0 %v558
    %2355 = vmatprep.subr.mxu0 0.0
    %2356 = vmatpush2.msra.mxu0 0.0
    %2357 = vmatprep.subr.mxu0 0.0
    %2358 = vmatpush2.msra.mxu0 0.0
    %2359 = vmatprep.subr.mxu0 0.0
    %2360 = vmatpush2.msra.mxu0 0.0
    %2361 = vmatprep.subr.mxu0 0.0
    %2362 = vmatpush2.msra.mxu0 0.0
    %2363 = vmatprep.subr.mxu0 0.0
    %2364 = vmatpush2.msra.mxu0 0.0
    %2365 = vmatprep.subr.mxu0 0.0
    %2366 = vmatpush2.msra.mxu0 0.0
    %2367 = vmatprep.subr.mxu0 0.0
    %2368 = vmatpush2.msra.mxu0 0.0
    %2369 = vmatprep.subr.mxu0 0.0
    %2370 = vmatpush2.msra.mxu0 0.0
    %2371 = vmatprep.subr.mxu0 0.0
    %2372 = vmatpush2.msra.mxu0 0.0
    %2373 = vmatprep.subr.mxu0 0.0
    %2374 = vmatpush2.msra.mxu0 0.0
    %2375 = vmatprep.subr.mxu0 0.0
    %2376 = vmatpush2.msra.mxu0 0.0
    %2377 = vmatprep.subr.mxu0 0.0
    %2378 = vmatpush2.msra.mxu0 0.0
    %2379 = vmatprep.subr.mxu0 0.0
    %2380 = vmatpush2.msra.mxu0 0.0
    %2381 = vmatprep.subr.mxu0 0.0
    %2382 = vmatpush2.msra.mxu0 0.0
    %2383 = vmatprep.subr.mxu0 0.0
    %2384 = vmatpush2.msra.mxu0 0.0
    %2385 = vmatprep.subr.mxu0 0.0
    %2386 = vmatpush2.msra.mxu0 0.0
    %2387 = vmatprep.mubr.f32.mxu0 0.0
    %2388 = vmatmul.mubr.f32.gmra.mxu0 %v2291
    %v2389 = vpop.f32.mrf.mxu0
    %v2390 = vadd.f32 0.0, %v2389
    %v2391 = vpop.f32.mrf.mxu0
    %2392 = vmatprep.mubr.f32.mxu0 0.0
    %2393 = vmatmul.mubr.f32.gmra.mxu0 %v2293
    %v2394 = vpop.f32.mrf.mxu0
    %v2395 = vadd.f32 0.0, %v2394
    %v2396 = vpop.f32.mrf.mxu0
    %2397 = vmatprep.mubr.f32.mxu0 0.0
    %2398 = vmatmul.mubr.f32.gmra.mxu0 %v2295
    %v2399 = vpop.f32.mrf.mxu0
    %v2400 = vadd.f32 0.0, %v2399
    %v2401 = vpop.f32.mrf.mxu0
    %2402 = vmatprep.mubr.f32.mxu0 0.0
    %2403 = vmatmul.mubr.f32.gmra.mxu0 %v2297
    %v2404 = vpop.f32.mrf.mxu0
    %v2405 = vadd.f32 0.0, %v2404
    %v2406 = vpop.f32.mrf.mxu0
    %2407 = vmatprep.mubr.f32.mxu0 0.0
    %2408 = vmatmul.mubr.f32.gmra.mxu0 %v2299
    %v2409 = vpop.f32.mrf.mxu0
    %v2410 = vadd.f32 0.0, %v2409
    %v2411 = vpop.f32.mrf.mxu0
    %2412 = vmatprep.mubr.f32.mxu0 0.0
    %2413 = vmatmul.mubr.f32.gmra.mxu0 %v2301
    %v2414 = vpop.f32.mrf.mxu0
    %v2415 = vadd.f32 0.0, %v2414
    %v2416 = vpop.f32.mrf.mxu0
    %2417 = vmatprep.mubr.f32.mxu0 0.0
    %2418 = vmatmul.mubr.f32.gmra.mxu0 %v2303
    %v2419 = vpop.f32.mrf.mxu0
    %v2420 = vadd.f32 0.0, %v2419
    %v2421 = vpop.f32.mrf.mxu0
    %2422 = vmatprep.mubr.f32.mxu0 0.0
    %2423 = vmatmul.mubr.f32.gmra.mxu0 %v2305
    %v2424 = vpop.f32.mrf.mxu0
    %v2425 = vadd.f32 0.0, %v2424
    %v2426 = vpop.f32.mrf.mxu0
    %2427 = vmatprep.mubr.f32.mxu0 0.0
    %2428 = vmatmul.mubr.f32.gmra.mxu0 %v2307
    %v2429 = vpop.f32.mrf.mxu0
    %v2430 = vadd.f32 0.0, %v2429
    %v2431 = vpop.f32.mrf.mxu0
    %2432 = vmatprep.mubr.f32.mxu0 0.0
    %2433 = vmatmul.mubr.f32.gmra.mxu0 %v2309
    %v2434 = vpop.f32.mrf.mxu0
    %v2435 = vadd.f32 0.0, %v2434
    %v2436 = vpop.f32.mrf.mxu0
    %2437 = vmatprep.mubr.f32.mxu0 0.0
    %2438 = vmatmul.mubr.f32.gmra.mxu0 %v2311
    %v2439 = vpop.f32.mrf.mxu0
    %v2440 = vadd.f32 0.0, %v2439
    %v2441 = vpop.f32.mrf.mxu0
    %2442 = vmatprep.mubr.f32.mxu0 0.0
    %2443 = vmatmul.mubr.f32.gmra.mxu0 %v2313
    %v2444 = vpop.f32.mrf.mxu0
    %v2445 = vadd.f32 0.0, %v2444
    %v2446 = vpop.f32.mrf.mxu0
    %2447 = vmatprep.mubr.f32.mxu0 0.0
    %2448 = vmatmul.mubr.f32.gmra.mxu0 %v2315
    %v2449 = vpop.f32.mrf.mxu0
    %v2450 = vadd.f32 0.0, %v2449
    %v2451 = vpop.f32.mrf.mxu0
    %2452 = vmatprep.mubr.f32.mxu0 0.0
    %2453 = vmatmul.mubr.f32.gmra.mxu0 %v2317
    %v2454 = vpop.f32.mrf.mxu0
    %v2455 = vadd.f32 0.0, %v2454
    %v2456 = vpop.f32.mrf.mxu0
    %2457 = vmatprep.mubr.f32.mxu0 0.0
    %2458 = vmatmul.mubr.f32.gmra.mxu0 %v2319
    %v2459 = vpop.f32.mrf.mxu0
    %v2460 = vadd.f32 0.0, %v2459
    %v2461 = vpop.f32.mrf.mxu0
    %2462 = vmatprep.mubr.f32.mxu0 0.0
    %2463 = vmatmul.mubr.f32.gmra.mxu0 %v2321
    %v2464 = vpop.f32.mrf.mxu0
    %v2465 = vadd.f32 0.0, %v2464
    %v2466 = vpop.f32.mrf.mxu0
    %2467 = vdwg.mxu0
    %2484 = vrot.lane.b32.xlu0 %v2390, 48
    %v2485 = vpop.permute.xlu0 %2484
    %2486 = vrot.lane.b32.xlu0 %v2395, 48
    %v2487 = vpop.permute.xlu0 %2486
    %2488 = vrot.lane.b32.xlu0 %v2400, 48
    %v2489 = vpop.permute.xlu0 %2488
    %2490 = vrot.lane.b32.xlu0 %v2405, 48
    %v2491 = vpop.permute.xlu0 %2490
    %2492 = vrot.lane.b32.xlu0 %v2410, 48
    %v2493 = vpop.permute.xlu0 %2492
    %2494 = vrot.lane.b32.xlu0 %v2415, 48
    %v2495 = vpop.permute.xlu0 %2494
    %2496 = vrot.lane.b32.xlu0 %v2420, 48
    %v2497 = vpop.permute.xlu0 %2496
    %2498 = vrot.lane.b32.xlu0 %v2425, 48
    %v2499 = vpop.permute.xlu0 %2498
    %2500 = vrot.lane.b32.xlu0 %v2430, 48
    %v2501 = vpop.permute.xlu0 %2500
    %2502 = vrot.lane.b32.xlu0 %v2435, 48
    %v2503 = vpop.permute.xlu0 %2502
    %2504 = vrot.lane.b32.xlu0 %v2440, 48
    %v2505 = vpop.permute.xlu0 %2504
    %2506 = vrot.lane.b32.xlu0 %v2445, 48
    %v2507 = vpop.permute.xlu0 %2506
    %2508 = vrot.lane.b32.xlu0 %v2450, 48
    %v2509 = vpop.permute.xlu0 %2508
    %2510 = vrot.lane.b32.xlu0 %v2455, 48
    %v2511 = vpop.permute.xlu0 %2510
    %2512 = vrot.lane.b32.xlu0 %v2460, 48
    %v2513 = vpop.permute.xlu0 %2512
    %2514 = vrot.lane.b32.xlu0 %v2465, 48
    %v2515 = vpop.permute.xlu0 %2514
    %v2532 = vadd.f32 %v464, %v2485
    %v2533 = vadd.f32 %v470, %v2487
    %v2534 = vadd.f32 %v476, %v2489
    %v2535 = vadd.f32 %v482, %v2491
    %v2536 = vadd.f32 %v488, %v2493
    %v2537 = vadd.f32 %v494, %v2495
    %v2538 = vadd.f32 %v500, %v2497
    %v2539 = vadd.f32 %v506, %v2499
    %v2540 = vadd.f32 %v512, %v2501
    %v2541 = vadd.f32 %v518, %v2503
    %v2542 = vadd.f32 %v524, %v2505
    %v2543 = vadd.f32 %v530, %v2507
    %v2544 = vadd.f32 %v536, %v2509
    %v2545 = vadd.f32 %v542, %v2511
    %v2546 = vadd.f32 %v548, %v2513
    %v2547 = vadd.f32 %v554, %v2515
    %v2548 = vtanh.pop %v2532
    %v2549 = vtanh.pop %v2533
    %v2550 = vtanh.pop %v2534
    %v2551 = vtanh.pop %v2535
    %v2552 = vtanh.pop %v2536
    %v2553 = vtanh.pop %v2537
    %v2554 = vtanh.pop %v2538
    %v2555 = vtanh.pop %v2539
    %v2556 = vtanh.pop %v2540
    %v2557 = vtanh.pop %v2541
    %v2558 = vtanh.pop %v2542
    %v2559 = vtanh.pop %v2543
    %v2560 = vtanh.pop %v2544
    %v2561 = vtanh.pop %v2545
    %v2562 = vtanh.pop %v2546
    %v2563 = vtanh.pop %v2547
    %2580 = vrot.lane.b32.xlu0 %v2548, 80
    %v2581 = vpop.permute.xlu0 %2580
    %2582 = vrot.lane.b32.xlu0 %v2549, 80
    %v2583 = vpop.permute.xlu0 %2582
    %2584 = vrot.lane.b32.xlu0 %v2550, 80
    %v2585 = vpop.permute.xlu0 %2584
    %2586 = vrot.lane.b32.xlu0 %v2551, 80
    %v2587 = vpop.permute.xlu0 %2586
    %2588 = vrot.lane.b32.xlu0 %v2552, 80
    %v2589 = vpop.permute.xlu0 %2588
    %2590 = vrot.lane.b32.xlu0 %v2553, 80
    %v2591 = vpop.permute.xlu0 %2590
    %2592 = vrot.lane.b32.xlu0 %v2554, 80
    %v2593 = vpop.permute.xlu0 %2592
    %2594 = vrot.lane.b32.xlu0 %v2555, 80
    %v2595 = vpop.permute.xlu0 %2594
    %2596 = vrot.lane.b32.xlu0 %v2556, 80
    %v2597 = vpop.permute.xlu0 %2596
    %2598 = vrot.lane.b32.xlu0 %v2557, 80
    %v2599 = vpop.permute.xlu0 %2598
    %2600 = vrot.lane.b32.xlu0 %v2558, 80
    %v2601 = vpop.permute.xlu0 %2600
    %2602 = vrot.lane.b32.xlu0 %v2559, 80
    %v2603 = vpop.permute.xlu0 %2602
    %2604 = vrot.lane.b32.xlu0 %v2560, 80
    %v2605 = vpop.permute.xlu0 %2604
    %2606 = vrot.lane.b32.xlu0 %v2561, 80
    %v2607 = vpop.permute.xlu0 %2606
    %2608 = vrot.lane.b32.xlu0 %v2562, 80
    %v2609 = vpop.permute.xlu0 %2608
    %2610 = vrot.lane.b32.xlu0 %v2563, 80
    %v2611 = vpop.permute.xlu0 %2610
    %2644 = vrot.lane.b32.xlu0 %v2275, 16
    %v2645 = vpop.permute.xlu0 %2644
    %2646 = vrot.lane.b32.xlu0 %v2276, 16
    %v2647 = vpop.permute.xlu0 %2646
    %2648 = vrot.lane.b32.xlu0 %v2277, 16
    %v2649 = vpop.permute.xlu0 %2648
    %2650 = vrot.lane.b32.xlu0 %v2278, 16
    %v2651 = vpop.permute.xlu0 %2650
    %2652 = vrot.lane.b32.xlu0 %v2279, 16
    %v2653 = vpop.permute.xlu0 %2652
    %2654 = vrot.lane.b32.xlu0 %v2280, 16
    %v2655 = vpop.permute.xlu0 %2654
    %2656 = vrot.lane.b32.xlu0 %v2281, 16
    %v2657 = vpop.permute.xlu0 %2656
    %2658 = vrot.lane.b32.xlu0 %v2282, 16
    %v2659 = vpop.permute.xlu0 %2658
    %2660 = vrot.lane.b32.xlu0 %v2283, 16
    %v2661 = vpop.permute.xlu0 %2660
    %2662 = vrot.lane.b32.xlu0 %v2284, 16
    %v2663 = vpop.permute.xlu0 %2662
    %2664 = vrot.lane.b32.xlu0 %v2285, 16
    %v2665 = vpop.permute.xlu0 %2664
    %2666 = vrot.lane.b32.xlu0 %v2286, 16
    %v2667 = vpop.permute.xlu0 %2666
    %2668 = vrot.lane.b32.xlu0 %v2287, 16
    %v2669 = vpop.permute.xlu0 %2668
    %2670 = vrot.lane.b32.xlu0 %v2288, 16
    %v2671 = vpop.permute.xlu0 %2670
    %2672 = vrot.lane.b32.xlu0 %v2289, 16
    %v2673 = vpop.permute.xlu0 %2672
    %2674 = vrot.lane.b32.xlu0 %v2290, 16
    %v2675 = vpop.permute.xlu0 %2674
    %v2692 = vsel %vm571, %v2581, %v2645
    %v2693 = vsel %vm571, %v2583, %v2647
    %v2694 = vsel %vm571, %v2585, %v2649
    %v2695 = vsel %vm571, %v2587, %v2651
    %v2696 = vsel %vm571, %v2589, %v2653
    %v2697 = vsel %vm571, %v2591, %v2655
    %v2698 = vsel %vm571, %v2593, %v2657
    %v2699 = vsel %vm571, %v2595, %v2659
    %v2700 = vsel %vm571, %v2597, %v2661
    %v2701 = vsel %vm571, %v2599, %v2663
    %v2702 = vsel %vm571, %v2601, %v2665
    %v2703 = vsel %vm571, %v2603, %v2667
    %v2704 = vsel %vm571, %v2605, %v2669
    %v2705 = vsel %vm571, %v2607, %v2671
    %v2706 = vsel %vm571, %v2609, %v2673
    %v2707 = vsel %vm571, %v2611, %v2675
    %v2709 = vsel %vm813, %v2692, 0
    %v2712 = vsel %vm813, %v2693, 0
    %v2715 = vsel %vm813, %v2694, 0
    %v2718 = vsel %vm813, %v2695, 0
    %v2721 = vsel %vm813, %v2696, 0
    %v2724 = vsel %vm813, %v2697, 0
    %v2727 = vsel %vm813, %v2698, 0
    %v2730 = vsel %vm813, %v2699, 0
    %v2733 = vsel %vm813, %v2700, 0
    %v2736 = vsel %vm813, %v2701, 0
    %v2739 = vsel %vm813, %v2702, 0
    %v2742 = vsel %vm813, %v2703, 0
    %v2745 = vsel %vm813, %v2704, 0
    %v2748 = vsel %vm813, %v2705, 0
    %v2751 = vsel %vm813, %v2706, 0
    %v2754 = vsel %vm813, %v2707, 0
    %2756 = vmatprep.subr.mxu0 0.0
    %2757 = vmatpush1.msra.mxu0 0.0
    %2758 = vmatprep.subr.mxu0 0.0
    %2759 = vmatpush1.msra.mxu0 0.0
    %2760 = vmatprep.subr.mxu0 0.0
    %2761 = vmatpush1.msra.mxu0 0.0
    %2762 = vmatprep.subr.mxu0 0.0
    %2763 = vmatpush1.msra.mxu0 0.0
    %2764 = vmatprep.subr.mxu0 0.0
    %2765 = vmatpush1.msra.mxu0 0.0
    %2766 = vmatprep.subr.mxu0 0.0
    %2767 = vmatpush1.msra.mxu0 0.0
    %2768 = vmatprep.subr.mxu0 0.0
    %2769 = vmatpush1.msra.mxu0 0.0
    %2770 = vmatprep.subr.mxu0 0.0
    %2771 = vmatpush1.msra.mxu0 0.0
    %2772 = vmatprep.subr.mxu0 0.0
    %2773 = vmatpush1.msra.mxu0 0.0
    %2774 = vmatprep.subr.mxu0 0.0
    %2775 = vmatpush1.msra.mxu0 0.0
    %2776 = vmatprep.subr.mxu0 0.0
    %2777 = vmatpush1.msra.mxu0 0.0
    %2778 = vmatprep.subr.mxu0 0.0
    %2779 = vmatpush1.msra.mxu0 0.0
    %2780 = vmatprep.subr.mxu0 0.0
    %2781 = vmatpush1.msra.mxu0 %v563
    %2782 = vmatprep.subr.mxu0 0.0
    %2783 = vmatpush1.msra.mxu0 %v562
    %2784 = vmatprep.subr.mxu0 0.0
    %2785 = vmatpush1.msra.mxu0 %v561
    %2786 = vmatprep.subr.mxu0 0.0
    %2787 = vmatpush1.msra.mxu0 %v560
    %2788 = vmatprep.subr.mxu0 0.0
    %2789 = vmatpush2.msra.mxu0 0.0
    %2790 = vmatprep.subr.mxu0 0.0
    %2791 = vmatpush2.msra.mxu0 0.0
    %2792 = vmatprep.subr.mxu0 0.0
    %2793 = vmatpush2.msra.mxu0 0.0
    %2794 = vmatprep.subr.mxu0 0.0
    %2795 = vmatpush2.msra.mxu0 0.0
    %2796 = vmatprep.subr.mxu0 0.0
    %2797 = vmatpush2.msra.mxu0 0.0
    %2798 = vmatprep.subr.mxu0 0.0
    %2799 = vmatpush2.msra.mxu0 0.0
    %2800 = vmatprep.subr.mxu0 0.0
    %2801 = vmatpush2.msra.mxu0 0.0
    %2802 = vmatprep.subr.mxu0 0.0
    %2803 = vmatpush2.msra.mxu0 0.0
    %2804 = vmatprep.subr.mxu0 0.0
    %2805 = vmatpush2.msra.mxu0 0.0
    %2806 = vmatprep.subr.mxu0 0.0
    %2807 = vmatpush2.msra.mxu0 0.0
    %2808 = vmatprep.subr.mxu0 0.0
    %2809 = vmatpush2.msra.mxu0 0.0
    %2810 = vmatprep.subr.mxu0 0.0
    %2811 = vmatpush2.msra.mxu0 0.0
    %2812 = vmatprep.subr.mxu0 0.0
    %2813 = vmatpush2.msra.mxu0 0.0
    %2814 = vmatprep.subr.mxu0 0.0
    %2815 = vmatpush2.msra.mxu0 0.0
    %2816 = vmatprep.subr.mxu0 0.0
    %2817 = vmatpush2.msra.mxu0 0.0
    %2818 = vmatprep.subr.mxu0 0.0
    %2819 = vmatpush2.msra.mxu0 0.0
    %2820 = vmatprep.mubr.f32.mxu0 0.0
    %2821 = vmatmul.mubr.f32.gmra.mxu0 %v2709
    %v2822 = vpop.f32.mrf.mxu0
    %v2823 = vadd.f32 %v569, %v2822
    %v2824 = vpop.f32.mrf.mxu0
    %2825 = vmatprep.mubr.f32.mxu0 0.0
    %2826 = vmatmul.mubr.f32.gmra.mxu0 %v2712
    %v2827 = vpop.f32.mrf.mxu0
    %v2828 = vadd.f32 %v569, %v2827
    %v2829 = vpop.f32.mrf.mxu0
    %2830 = vmatprep.mubr.f32.mxu0 0.0
    %2831 = vmatmul.mubr.f32.gmra.mxu0 %v2715
    %v2832 = vpop.f32.mrf.mxu0
    %v2833 = vadd.f32 %v569, %v2832
    %v2834 = vpop.f32.mrf.mxu0
    %2835 = vmatprep.mubr.f32.mxu0 0.0
    %2836 = vmatmul.mubr.f32.gmra.mxu0 %v2718
    %v2837 = vpop.f32.mrf.mxu0
    %v2838 = vadd.f32 %v569, %v2837
    %v2839 = vpop.f32.mrf.mxu0
    %2840 = vmatprep.mubr.f32.mxu0 0.0
    %2841 = vmatmul.mubr.f32.gmra.mxu0 %v2721
    %v2842 = vpop.f32.mrf.mxu0
    %v2843 = vadd.f32 %v569, %v2842
    %v2844 = vpop.f32.mrf.mxu0
    %2845 = vmatprep.mubr.f32.mxu0 0.0
    %2846 = vmatmul.mubr.f32.gmra.mxu0 %v2724
    %v2847 = vpop.f32.mrf.mxu0
    %v2848 = vadd.f32 %v569, %v2847
    %v2849 = vpop.f32.mrf.mxu0
    %2850 = vmatprep.mubr.f32.mxu0 0.0
    %2851 = vmatmul.mubr.f32.gmra.mxu0 %v2727
    %v2852 = vpop.f32.mrf.mxu0
    %v2853 = vadd.f32 %v569, %v2852
    %v2854 = vpop.f32.mrf.mxu0
    %2855 = vmatprep.mubr.f32.mxu0 0.0
    %2856 = vmatmul.mubr.f32.gmra.mxu0 %v2730
    %v2857 = vpop.f32.mrf.mxu0
    %v2858 = vadd.f32 %v569, %v2857
    %v2859 = vpop.f32.mrf.mxu0
    %2860 = vmatprep.mubr.f32.mxu0 0.0
    %2861 = vmatmul.mubr.f32.gmra.mxu0 %v2733
    %v2862 = vpop.f32.mrf.mxu0
    %v2863 = vadd.f32 %v569, %v2862
    %v2864 = vpop.f32.mrf.mxu0
    %2865 = vmatprep.mubr.f32.mxu0 0.0
    %2866 = vmatmul.mubr.f32.gmra.mxu0 %v2736
    %v2867 = vpop.f32.mrf.mxu0
    %v2868 = vadd.f32 %v569, %v2867
    %v2869 = vpop.f32.mrf.mxu0
    %2870 = vmatprep.mubr.f32.mxu0 0.0
    %2871 = vmatmul.mubr.f32.gmra.mxu0 %v2739
    %v2872 = vpop.f32.mrf.mxu0
    %v2873 = vadd.f32 %v569, %v2872
    %v2874 = vpop.f32.mrf.mxu0
    %2875 = vmatprep.mubr.f32.mxu0 0.0
    %2876 = vmatmul.mubr.f32.gmra.mxu0 %v2742
    %v2877 = vpop.f32.mrf.mxu0
    %v2878 = vadd.f32 %v569, %v2877
    %v2879 = vpop.f32.mrf.mxu0
    %2880 = vmatprep.mubr.f32.mxu0 0.0
    %2881 = vmatmul.mubr.f32.gmra.mxu0 %v2745
    %v2882 = vpop.f32.mrf.mxu0
    %v2883 = vadd.f32 %v569, %v2882
    %v2884 = vpop.f32.mrf.mxu0
    %2885 = vmatprep.mubr.f32.mxu0 0.0
    %2886 = vmatmul.mubr.f32.gmra.mxu0 %v2748
    %v2887 = vpop.f32.mrf.mxu0
    %v2888 = vadd.f32 %v569, %v2887
    %v2889 = vpop.f32.mrf.mxu0
    %2890 = vmatprep.mubr.f32.mxu0 0.0
    %2891 = vmatmul.mubr.f32.gmra.mxu0 %v2751
    %v2892 = vpop.f32.mrf.mxu0
    %v2893 = vadd.f32 %v569, %v2892
    %v2894 = vpop.f32.mrf.mxu0
    %2895 = vmatprep.mubr.f32.mxu0 0.0
    %2896 = vmatmul.mubr.f32.gmra.mxu0 %v2754
    %v2897 = vpop.f32.mrf.mxu0
    %v2898 = vadd.f32 %v569, %v2897
    %v2899 = vpop.f32.mrf.mxu0
    %2900 = vdwg.mxu0
    %v2901 = vtanh.pop %v2823
    %v2902 = vtanh.pop %v2828
    %v2903 = vtanh.pop %v2833
    %v2904 = vtanh.pop %v2838
    %v2905 = vtanh.pop %v2843
    %v2906 = vtanh.pop %v2848
    %v2907 = vtanh.pop %v2853
    %v2908 = vtanh.pop %v2858
    %v2909 = vtanh.pop %v2863
    %v2910 = vtanh.pop %v2868
    %v2911 = vtanh.pop %v2873
    %v2912 = vtanh.pop %v2878
    %v2913 = vtanh.pop %v2883
    %v2914 = vtanh.pop %v2888
    %v2915 = vtanh.pop %v2893
    %v2916 = vtanh.pop %v2898
    %v2917 = vsel %vm571, %v2581, 0
    %v2919 = vsel %vm571, %v2583, 0
    %v2921 = vsel %vm571, %v2585, 0
    %v2923 = vsel %vm571, %v2587, 0
    %v2925 = vsel %vm571, %v2589, 0
    %v2927 = vsel %vm571, %v2591, 0
    %v2929 = vsel %vm571, %v2593, 0
    %v2931 = vsel %vm571, %v2595, 0
    %v2933 = vsel %vm571, %v2597, 0
    %v2935 = vsel %vm571, %v2599, 0
    %v2937 = vsel %vm571, %v2601, 0
    %v2939 = vsel %vm571, %v2603, 0
    %v2941 = vsel %vm571, %v2605, 0
    %v2943 = vsel %vm571, %v2607, 0
    %v2945 = vsel %vm571, %v2609, 0
    %v2947 = vsel %vm571, %v2611, 0
    %2949 = vmatprep.subr.mxu0 0.0
    %2950 = vmatpush1.msra.mxu0 0.0
    %2951 = vmatprep.subr.mxu0 0.0
    %2952 = vmatpush1.msra.mxu0 0.0
    %2953 = vmatprep.subr.mxu0 0.0
    %2954 = vmatpush1.msra.mxu0 0.0
    %2955 = vmatprep.subr.mxu0 0.0
    %2956 = vmatpush1.msra.mxu0 0.0
    %2957 = vmatprep.subr.mxu0 0.0
    %2958 = vmatpush1.msra.mxu0 0.0
    %2959 = vmatprep.subr.mxu0 0.0
    %2960 = vmatpush1.msra.mxu0 0.0
    %2961 = vmatprep.subr.mxu0 0.0
    %2962 = vmatpush1.msra.mxu0 0.0
    %2963 = vmatprep.subr.mxu0 0.0
    %2964 = vmatpush1.msra.mxu0 0.0
    %2965 = vmatprep.subr.mxu0 0.0
    %2966 = vmatpush1.msra.mxu0 0.0
    %2967 = vmatprep.subr.mxu0 0.0
    %2968 = vmatpush1.msra.mxu0 0.0
    %2969 = vmatprep.subr.mxu0 0.0
    %2970 = vmatpush1.msra.mxu0 0.0
    %2971 = vmatprep.subr.mxu0 0.0
    %2972 = vmatpush1.msra.mxu0 0.0
    %2973 = vmatprep.subr.mxu0 0.0
    %2974 = vmatpush1.msra.mxu0 0.0
    %2975 = vmatprep.subr.mxu0 0.0
    %2976 = vmatpush1.msra.mxu0 0.0
    %2977 = vmatprep.subr.mxu0 0.0
    %2978 = vmatpush1.msra.mxu0 %v559
    %2979 = vmatprep.subr.mxu0 0.0
    %2980 = vmatpush1.msra.mxu0 %v558
    %2981 = vmatprep.subr.mxu0 0.0
    %2982 = vmatpush2.msra.mxu0 0.0
    %2983 = vmatprep.subr.mxu0 0.0
    %2984 = vmatpush2.msra.mxu0 0.0
    %2985 = vmatprep.subr.mxu0 0.0
    %2986 = vmatpush2.msra.mxu0 0.0
    %2987 = vmatprep.subr.mxu0 0.0
    %2988 = vmatpush2.msra.mxu0 0.0
    %2989 = vmatprep.subr.mxu0 0.0
    %2990 = vmatpush2.msra.mxu0 0.0
    %2991 = vmatprep.subr.mxu0 0.0
    %2992 = vmatpush2.msra.mxu0 0.0
    %2993 = vmatprep.subr.mxu0 0.0
    %2994 = vmatpush2.msra.mxu0 0.0
    %2995 = vmatprep.subr.mxu0 0.0
    %2996 = vmatpush2.msra.mxu0 0.0
    %2997 = vmatprep.subr.mxu0 0.0
    %2998 = vmatpush2.msra.mxu0 0.0
    %2999 = vmatprep.subr.mxu0 0.0
    %3000 = vmatpush2.msra.mxu0 0.0
    %3001 = vmatprep.subr.mxu0 0.0
    %3002 = vmatpush2.msra.mxu0 0.0
    %3003 = vmatprep.subr.mxu0 0.0
    %3004 = vmatpush2.msra.mxu0 0.0
    %3005 = vmatprep.subr.mxu0 0.0
    %3006 = vmatpush2.msra.mxu0 0.0
    %3007 = vmatprep.subr.mxu0 0.0
    %3008 = vmatpush2.msra.mxu0 0.0
    %3009 = vmatprep.subr.mxu0 0.0
    %3010 = vmatpush2.msra.mxu0 0.0
    %3011 = vmatprep.subr.mxu0 0.0
    %3012 = vmatpush2.msra.mxu0 0.0
    %3013 = vmatprep.mubr.f32.mxu0 0.0
    %3014 = vmatmul.mubr.f32.gmra.mxu0 %v2917
    %v3015 = vpop.f32.mrf.mxu0
    %v3016 = vadd.f32 0.0, %v3015
    %v3017 = vpop.f32.mrf.mxu0
    %3018 = vmatprep.mubr.f32.mxu0 0.0
    %3019 = vmatmul.mubr.f32.gmra.mxu0 %v2919
    %v3020 = vpop.f32.mrf.mxu0
    %v3021 = vadd.f32 0.0, %v3020
    %v3022 = vpop.f32.mrf.mxu0
    %3023 = vmatprep.mubr.f32.mxu0 0.0
    %3024 = vmatmul.mubr.f32.gmra.mxu0 %v2921
    %v3025 = vpop.f32.mrf.mxu0
    %v3026 = vadd.f32 0.0, %v3025
    %v3027 = vpop.f32.mrf.mxu0
    %3028 = vmatprep.mubr.f32.mxu0 0.0
    %3029 = vmatmul.mubr.f32.gmra.mxu0 %v2923
    %v3030 = vpop.f32.mrf.mxu0
    %v3031 = vadd.f32 0.0, %v3030
    %v3032 = vpop.f32.mrf.mxu0
    %3033 = vmatprep.mubr.f32.mxu0 0.0
    %3034 = vmatmul.mubr.f32.gmra.mxu0 %v2925
    %v3035 = vpop.f32.mrf.mxu0
    %v3036 = vadd.f32 0.0, %v3035
    %v3037 = vpop.f32.mrf.mxu0
    %3038 = vmatprep.mubr.f32.mxu0 0.0
    %3039 = vmatmul.mubr.f32.gmra.mxu0 %v2927
    %v3040 = vpop.f32.mrf.mxu0
    %v3041 = vadd.f32 0.0, %v3040
    %v3042 = vpop.f32.mrf.mxu0
    %3043 = vmatprep.mubr.f32.mxu0 0.0
    %3044 = vmatmul.mubr.f32.gmra.mxu0 %v2929
    %v3045 = vpop.f32.mrf.mxu0
    %v3046 = vadd.f32 0.0, %v3045
    %v3047 = vpop.f32.mrf.mxu0
    %3048 = vmatprep.mubr.f32.mxu0 0.0
    %3049 = vmatmul.mubr.f32.gmra.mxu0 %v2931
    %v3050 = vpop.f32.mrf.mxu0
    %v3051 = vadd.f32 0.0, %v3050
    %v3052 = vpop.f32.mrf.mxu0
    %3053 = vmatprep.mubr.f32.mxu0 0.0
    %3054 = vmatmul.mubr.f32.gmra.mxu0 %v2933
    %v3055 = vpop.f32.mrf.mxu0
    %v3056 = vadd.f32 0.0, %v3055
    %v3057 = vpop.f32.mrf.mxu0
    %3058 = vmatprep.mubr.f32.mxu0 0.0
    %3059 = vmatmul.mubr.f32.gmra.mxu0 %v2935
    %v3060 = vpop.f32.mrf.mxu0
    %v3061 = vadd.f32 0.0, %v3060
    %v3062 = vpop.f32.mrf.mxu0
    %3063 = vmatprep.mubr.f32.mxu0 0.0
    %3064 = vmatmul.mubr.f32.gmra.mxu0 %v2937
    %v3065 = vpop.f32.mrf.mxu0
    %v3066 = vadd.f32 0.0, %v3065
    %v3067 = vpop.f32.mrf.mxu0
    %3068 = vmatprep.mubr.f32.mxu0 0.0
    %3069 = vmatmul.mubr.f32.gmra.mxu0 %v2939
    %v3070 = vpop.f32.mrf.mxu0
    %v3071 = vadd.f32 0.0, %v3070
    %v3072 = vpop.f32.mrf.mxu0
    %3073 = vmatprep.mubr.f32.mxu0 0.0
    %3074 = vmatmul.mubr.f32.gmra.mxu0 %v2941
    %v3075 = vpop.f32.mrf.mxu0
    %v3076 = vadd.f32 0.0, %v3075
    %v3077 = vpop.f32.mrf.mxu0
    %3078 = vmatprep.mubr.f32.mxu0 0.0
    %3079 = vmatmul.mubr.f32.gmra.mxu0 %v2943
    %v3080 = vpop.f32.mrf.mxu0
    %v3081 = vadd.f32 0.0, %v3080
    %v3082 = vpop.f32.mrf.mxu0
    %3083 = vmatprep.mubr.f32.mxu0 0.0
    %3084 = vmatmul.mubr.f32.gmra.mxu0 %v2945
    %v3085 = vpop.f32.mrf.mxu0
    %v3086 = vadd.f32 0.0, %v3085
    %v3087 = vpop.f32.mrf.mxu0
    %3088 = vmatprep.mubr.f32.mxu0 0.0
    %3089 = vmatmul.mubr.f32.gmra.mxu0 %v2947
    %v3090 = vpop.f32.mrf.mxu0
    %v3091 = vadd.f32 0.0, %v3090
    %v3092 = vpop.f32.mrf.mxu0
    %3093 = vdwg.mxu0
    %3110 = vrot.lane.b32.xlu0 %v3016, 64
    %v3111 = vpop.permute.xlu0 %3110
    %3112 = vrot.lane.b32.xlu0 %v3021, 64
    %v3113 = vpop.permute.xlu0 %3112
    %3114 = vrot.lane.b32.xlu0 %v3026, 64
    %v3115 = vpop.permute.xlu0 %3114
    %3116 = vrot.lane.b32.xlu0 %v3031, 64
    %v3117 = vpop.permute.xlu0 %3116
    %3118 = vrot.lane.b32.xlu0 %v3036, 64
    %v3119 = vpop.permute.xlu0 %3118
    %3120 = vrot.lane.b32.xlu0 %v3041, 64
    %v3121 = vpop.permute.xlu0 %3120
    %3122 = vrot.lane.b32.xlu0 %v3046, 64
    %v3123 = vpop.permute.xlu0 %3122
    %3124 = vrot.lane.b32.xlu0 %v3051, 64
    %v3125 = vpop.permute.xlu0 %3124
    %3126 = vrot.lane.b32.xlu0 %v3056, 64
    %v3127 = vpop.permute.xlu0 %3126
    %3128 = vrot.lane.b32.xlu0 %v3061, 64
    %v3129 = vpop.permute.xlu0 %3128
    %3130 = vrot.lane.b32.xlu0 %v3066, 64
    %v3131 = vpop.permute.xlu0 %3130
    %3132 = vrot.lane.b32.xlu0 %v3071, 64
    %v3133 = vpop.permute.xlu0 %3132
    %3134 = vrot.lane.b32.xlu0 %v3076, 64
    %v3135 = vpop.permute.xlu0 %3134
    %3136 = vrot.lane.b32.xlu0 %v3081, 64
    %v3137 = vpop.permute.xlu0 %3136
    %3138 = vrot.lane.b32.xlu0 %v3086, 64
    %v3139 = vpop.permute.xlu0 %3138
    %3140 = vrot.lane.b32.xlu0 %v3091, 64
    %v3141 = vpop.permute.xlu0 %3140
    %v3158 = vadd.f32 %v464, %v3111
    %v3159 = vadd.f32 %v470, %v3113
    %v3160 = vadd.f32 %v476, %v3115
    %v3161 = vadd.f32 %v482, %v3117
    %v3162 = vadd.f32 %v488, %v3119
    %v3163 = vadd.f32 %v494, %v3121
    %v3164 = vadd.f32 %v500, %v3123
    %v3165 = vadd.f32 %v506, %v3125
    %v3166 = vadd.f32 %v512, %v3127
    %v3167 = vadd.f32 %v518, %v3129
    %v3168 = vadd.f32 %v524, %v3131
    %v3169 = vadd.f32 %v530, %v3133
    %v3170 = vadd.f32 %v536, %v3135
    %v3171 = vadd.f32 %v542, %v3137
    %v3172 = vadd.f32 %v548, %v3139
    %v3173 = vadd.f32 %v554, %v3141
    %v3174 = vtanh.pop %v3158
    %v3175 = vtanh.pop %v3159
    %v3176 = vtanh.pop %v3160
    %v3177 = vtanh.pop %v3161
    %v3178 = vtanh.pop %v3162
    %v3179 = vtanh.pop %v3163
    %v3180 = vtanh.pop %v3164
    %v3181 = vtanh.pop %v3165
    %v3182 = vtanh.pop %v3166
    %v3183 = vtanh.pop %v3167
    %v3184 = vtanh.pop %v3168
    %v3185 = vtanh.pop %v3169
    %v3186 = vtanh.pop %v3170
    %v3187 = vtanh.pop %v3171
    %v3188 = vtanh.pop %v3172
    %v3189 = vtanh.pop %v3173
    %3206 = vrot.lane.b32.xlu0 %v3174, 64
    %v3207 = vpop.permute.xlu0 %3206
    %3208 = vrot.lane.b32.xlu0 %v3175, 64
    %v3209 = vpop.permute.xlu0 %3208
    %3210 = vrot.lane.b32.xlu0 %v3176, 64
    %v3211 = vpop.permute.xlu0 %3210
    %3212 = vrot.lane.b32.xlu0 %v3177, 64
    %v3213 = vpop.permute.xlu0 %3212
    %3214 = vrot.lane.b32.xlu0 %v3178, 64
    %v3215 = vpop.permute.xlu0 %3214
    %3216 = vrot.lane.b32.xlu0 %v3179, 64
    %v3217 = vpop.permute.xlu0 %3216
    %3218 = vrot.lane.b32.xlu0 %v3180, 64
    %v3219 = vpop.permute.xlu0 %3218
    %3220 = vrot.lane.b32.xlu0 %v3181, 64
    %v3221 = vpop.permute.xlu0 %3220
    %3222 = vrot.lane.b32.xlu0 %v3182, 64
    %v3223 = vpop.permute.xlu0 %3222
    %3224 = vrot.lane.b32.xlu0 %v3183, 64
    %v3225 = vpop.permute.xlu0 %3224
    %3226 = vrot.lane.b32.xlu0 %v3184, 64
    %v3227 = vpop.permute.xlu0 %3226
    %3228 = vrot.lane.b32.xlu0 %v3185, 64
    %v3229 = vpop.permute.xlu0 %3228
    %3230 = vrot.lane.b32.xlu0 %v3186, 64
    %v3231 = vpop.permute.xlu0 %3230
    %3232 = vrot.lane.b32.xlu0 %v3187, 64
    %v3233 = vpop.permute.xlu0 %3232
    %3234 = vrot.lane.b32.xlu0 %v3188, 64
    %v3235 = vpop.permute.xlu0 %3234
    %3236 = vrot.lane.b32.xlu0 %v3189, 64
    %v3237 = vpop.permute.xlu0 %3236
    %3270 = vrot.lane.b32.xlu0 %v2901, 16
    %v3271 = vpop.permute.xlu0 %3270
    %3272 = vrot.lane.b32.xlu0 %v2902, 16
    %v3273 = vpop.permute.xlu0 %3272
    %3274 = vrot.lane.b32.xlu0 %v2903, 16
    %v3275 = vpop.permute.xlu0 %3274
    %3276 = vrot.lane.b32.xlu0 %v2904, 16
    %v3277 = vpop.permute.xlu0 %3276
    %3278 = vrot.lane.b32.xlu0 %v2905, 16
    %v3279 = vpop.permute.xlu0 %3278
    %3280 = vrot.lane.b32.xlu0 %v2906, 16
    %v3281 = vpop.permute.xlu0 %3280
    %3282 = vrot.lane.b32.xlu0 %v2907, 16
    %v3283 = vpop.permute.xlu0 %3282
    %3284 = vrot.lane.b32.xlu0 %v2908, 16
    %v3285 = vpop.permute.xlu0 %3284
    %3286 = vrot.lane.b32.xlu0 %v2909, 16
    %v3287 = vpop.permute.xlu0 %3286
    %3288 = vrot.lane.b32.xlu0 %v2910, 16
    %v3289 = vpop.permute.xlu0 %3288
    %3290 = vrot.lane.b32.xlu0 %v2911, 16
    %v3291 = vpop.permute.xlu0 %3290
    %3292 = vrot.lane.b32.xlu0 %v2912, 16
    %v3293 = vpop.permute.xlu0 %3292
    %3294 = vrot.lane.b32.xlu0 %v2913, 16
    %v3295 = vpop.permute.xlu0 %3294
    %3296 = vrot.lane.b32.xlu0 %v2914, 16
    %v3297 = vpop.permute.xlu0 %3296
    %3298 = vrot.lane.b32.xlu0 %v2915, 16
    %v3299 = vpop.permute.xlu0 %3298
    %3300 = vrot.lane.b32.xlu0 %v2916, 16
    %v3301 = vpop.permute.xlu0 %3300
    %v3318 = vsel %vm571, %v3207, %v3271
    %v3319 = vsel %vm571, %v3209, %v3273
    %v3320 = vsel %vm571, %v3211, %v3275
    %v3321 = vsel %vm571, %v3213, %v3277
    %v3322 = vsel %vm571, %v3215, %v3279
    %v3323 = vsel %vm571, %v3217, %v3281
    %v3324 = vsel %vm571, %v3219, %v3283
    %v3325 = vsel %vm571, %v3221, %v3285
    %v3326 = vsel %vm571, %v3223, %v3287
    %v3327 = vsel %vm571, %v3225, %v3289
    %v3328 = vsel %vm571, %v3227, %v3291
    %v3329 = vsel %vm571, %v3229, %v3293
    %v3330 = vsel %vm571, %v3231, %v3295
    %v3331 = vsel %vm571, %v3233, %v3297
    %v3332 = vsel %vm571, %v3235, %v3299
    %v3333 = vsel %vm571, %v3237, %v3301
    %v3335 = vsel %vm813, %v3318, 0
    %v3338 = vsel %vm813, %v3319, 0
    %v3341 = vsel %vm813, %v3320, 0
    %v3344 = vsel %vm813, %v3321, 0
    %v3347 = vsel %vm813, %v3322, 0
    %v3350 = vsel %vm813, %v3323, 0
    %v3353 = vsel %vm813, %v3324, 0
    %v3356 = vsel %vm813, %v3325, 0
    %v3359 = vsel %vm813, %v3326, 0
    %v3362 = vsel %vm813, %v3327, 0
    %v3365 = vsel %vm813, %v3328, 0
    %v3368 = vsel %vm813, %v3329, 0
    %v3371 = vsel %vm813, %v3330, 0
    %v3374 = vsel %vm813, %v3331, 0
    %v3377 = vsel %vm813, %v3332, 0
    %v3380 = vsel %vm813, %v3333, 0
    %3382 = vmatprep.subr.mxu0 0.0
    %3383 = vmatpush1.msra.mxu0 0.0
    %3384 = vmatprep.subr.mxu0 0.0
    %3385 = vmatpush1.msra.mxu0 0.0
    %3386 = vmatprep.subr.mxu0 0.0
    %3387 = vmatpush1.msra.mxu0 0.0
    %3388 = vmatprep.subr.mxu0 0.0
    %3389 = vmatpush1.msra.mxu0 0.0
    %3390 = vmatprep.subr.mxu0 0.0
    %3391 = vmatpush1.msra.mxu0 0.0
    %3392 = vmatprep.subr.mxu0 0.0
    %3393 = vmatpush1.msra.mxu0 0.0
    %3394 = vmatprep.subr.mxu0 0.0
    %3395 = vmatpush1.msra.mxu0 0.0
    %3396 = vmatprep.subr.mxu0 0.0
    %3397 = vmatpush1.msra.mxu0 0.0
    %3398 = vmatprep.subr.mxu0 0.0
    %3399 = vmatpush1.msra.mxu0 0.0
    %3400 = vmatprep.subr.mxu0 0.0
    %3401 = vmatpush1.msra.mxu0 0.0
    %3402 = vmatprep.subr.mxu0 0.0
    %3403 = vmatpush1.msra.mxu0 0.0
    %3404 = vmatprep.subr.mxu0 0.0
    %3405 = vmatpush1.msra.mxu0 0.0
    %3406 = vmatprep.subr.mxu0 0.0
    %3407 = vmatpush1.msra.mxu0 %v563
    %3408 = vmatprep.subr.mxu0 0.0
    %3409 = vmatpush1.msra.mxu0 %v562
    %3410 = vmatprep.subr.mxu0 0.0
    %3411 = vmatpush1.msra.mxu0 %v561
    %3412 = vmatprep.subr.mxu0 0.0
    %3413 = vmatpush1.msra.mxu0 %v560
    %3414 = vmatprep.subr.mxu0 0.0
    %3415 = vmatpush2.msra.mxu0 0.0
    %3416 = vmatprep.subr.mxu0 0.0
    %3417 = vmatpush2.msra.mxu0 0.0
    %3418 = vmatprep.subr.mxu0 0.0
    %3419 = vmatpush2.msra.mxu0 0.0
    %3420 = vmatprep.subr.mxu0 0.0
    %3421 = vmatpush2.msra.mxu0 0.0
    %3422 = vmatprep.subr.mxu0 0.0
    %3423 = vmatpush2.msra.mxu0 0.0
    %3424 = vmatprep.subr.mxu0 0.0
    %3425 = vmatpush2.msra.mxu0 0.0
    %3426 = vmatprep.subr.mxu0 0.0
    %3427 = vmatpush2.msra.mxu0 0.0
    %3428 = vmatprep.subr.mxu0 0.0
    %3429 = vmatpush2.msra.mxu0 0.0
    %3430 = vmatprep.subr.mxu0 0.0
    %3431 = vmatpush2.msra.mxu0 0.0
    %3432 = vmatprep.subr.mxu0 0.0
    %3433 = vmatpush2.msra.mxu0 0.0
    %3434 = vmatprep.subr.mxu0 0.0
    %3435 = vmatpush2.msra.mxu0 0.0
    %3436 = vmatprep.subr.mxu0 0.0
    %3437 = vmatpush2.msra.mxu0 0.0
    %3438 = vmatprep.subr.mxu0 0.0
    %3439 = vmatpush2.msra.mxu0 0.0
    %3440 = vmatprep.subr.mxu0 0.0
    %3441 = vmatpush2.msra.mxu0 0.0
    %3442 = vmatprep.subr.mxu0 0.0
    %3443 = vmatpush2.msra.mxu0 0.0
    %3444 = vmatprep.subr.mxu0 0.0
    %3445 = vmatpush2.msra.mxu0 0.0
    %3446 = vmatprep.mubr.f32.mxu0 0.0
    %3447 = vmatmul.mubr.f32.gmra.mxu0 %v3335
    %v3448 = vpop.f32.mrf.mxu0
    %v3449 = vadd.f32 %v569, %v3448
    %v3450 = vpop.f32.mrf.mxu0
    %3451 = vmatprep.mubr.f32.mxu0 0.0
    %3452 = vmatmul.mubr.f32.gmra.mxu0 %v3338
    %v3453 = vpop.f32.mrf.mxu0
    %v3454 = vadd.f32 %v569, %v3453
    %v3455 = vpop.f32.mrf.mxu0
    %3456 = vmatprep.mubr.f32.mxu0 0.0
    %3457 = vmatmul.mubr.f32.gmra.mxu0 %v3341
    %v3458 = vpop.f32.mrf.mxu0
    %v3459 = vadd.f32 %v569, %v3458
    %v3460 = vpop.f32.mrf.mxu0
    %3461 = vmatprep.mubr.f32.mxu0 0.0
    %3462 = vmatmul.mubr.f32.gmra.mxu0 %v3344
    %v3463 = vpop.f32.mrf.mxu0
    %v3464 = vadd.f32 %v569, %v3463
    %v3465 = vpop.f32.mrf.mxu0
    %3466 = vmatprep.mubr.f32.mxu0 0.0
    %3467 = vmatmul.mubr.f32.gmra.mxu0 %v3347
    %v3468 = vpop.f32.mrf.mxu0
    %v3469 = vadd.f32 %v569, %v3468
    %v3470 = vpop.f32.mrf.mxu0
    %3471 = vmatprep.mubr.f32.mxu0 0.0
    %3472 = vmatmul.mubr.f32.gmra.mxu0 %v3350
    %v3473 = vpop.f32.mrf.mxu0
    %v3474 = vadd.f32 %v569, %v3473
    %v3475 = vpop.f32.mrf.mxu0
    %3476 = vmatprep.mubr.f32.mxu0 0.0
    %3477 = vmatmul.mubr.f32.gmra.mxu0 %v3353
    %v3478 = vpop.f32.mrf.mxu0
    %v3479 = vadd.f32 %v569, %v3478
    %v3480 = vpop.f32.mrf.mxu0
    %3481 = vmatprep.mubr.f32.mxu0 0.0
    %3482 = vmatmul.mubr.f32.gmra.mxu0 %v3356
    %v3483 = vpop.f32.mrf.mxu0
    %v3484 = vadd.f32 %v569, %v3483
    %v3485 = vpop.f32.mrf.mxu0
    %3486 = vmatprep.mubr.f32.mxu0 0.0
    %3487 = vmatmul.mubr.f32.gmra.mxu0 %v3359
    %v3488 = vpop.f32.mrf.mxu0
    %v3489 = vadd.f32 %v569, %v3488
    %v3490 = vpop.f32.mrf.mxu0
    %3491 = vmatprep.mubr.f32.mxu0 0.0
    %3492 = vmatmul.mubr.f32.gmra.mxu0 %v3362
    %v3493 = vpop.f32.mrf.mxu0
    %v3494 = vadd.f32 %v569, %v3493
    %v3495 = vpop.f32.mrf.mxu0
    %3496 = vmatprep.mubr.f32.mxu0 0.0
    %3497 = vmatmul.mubr.f32.gmra.mxu0 %v3365
    %v3498 = vpop.f32.mrf.mxu0
    %v3499 = vadd.f32 %v569, %v3498
    %v3500 = vpop.f32.mrf.mxu0
    %3501 = vmatprep.mubr.f32.mxu0 0.0
    %3502 = vmatmul.mubr.f32.gmra.mxu0 %v3368
    %v3503 = vpop.f32.mrf.mxu0
    %v3504 = vadd.f32 %v569, %v3503
    %v3505 = vpop.f32.mrf.mxu0
    %3506 = vmatprep.mubr.f32.mxu0 0.0
    %3507 = vmatmul.mubr.f32.gmra.mxu0 %v3371
    %v3508 = vpop.f32.mrf.mxu0
    %v3509 = vadd.f32 %v569, %v3508
    %v3510 = vpop.f32.mrf.mxu0
    %3511 = vmatprep.mubr.f32.mxu0 0.0
    %3512 = vmatmul.mubr.f32.gmra.mxu0 %v3374
    %v3513 = vpop.f32.mrf.mxu0
    %v3514 = vadd.f32 %v569, %v3513
    %v3515 = vpop.f32.mrf.mxu0
    %3516 = vmatprep.mubr.f32.mxu0 0.0
    %3517 = vmatmul.mubr.f32.gmra.mxu0 %v3377
    %v3518 = vpop.f32.mrf.mxu0
    %v3519 = vadd.f32 %v569, %v3518
    %v3520 = vpop.f32.mrf.mxu0
    %3521 = vmatprep.mubr.f32.mxu0 0.0
    %3522 = vmatmul.mubr.f32.gmra.mxu0 %v3380
    %v3523 = vpop.f32.mrf.mxu0
    %v3524 = vadd.f32 %v569, %v3523
    %v3525 = vpop.f32.mrf.mxu0
    %3526 = vdwg.mxu0
    %v3527 = vtanh.pop %v3449
    %v3528 = vtanh.pop %v3454
    %v3529 = vtanh.pop %v3459
    %v3530 = vtanh.pop %v3464
    %v3531 = vtanh.pop %v3469
    %v3532 = vtanh.pop %v3474
    %v3533 = vtanh.pop %v3479
    %v3534 = vtanh.pop %v3484
    %v3535 = vtanh.pop %v3489
    %v3536 = vtanh.pop %v3494
    %v3537 = vtanh.pop %v3499
    %v3538 = vtanh.pop %v3504
    %v3539 = vtanh.pop %v3509
    %v3540 = vtanh.pop %v3514
    %v3541 = vtanh.pop %v3519
    %v3542 = vtanh.pop %v3524
    %v3543 = vsel %vm571, %v3207, 0
    %v3545 = vsel %vm571, %v3209, 0
    %v3547 = vsel %vm571, %v3211, 0
    %v3549 = vsel %vm571, %v3213, 0
    %v3551 = vsel %vm571, %v3215, 0
    %v3553 = vsel %vm571, %v3217, 0
    %v3555 = vsel %vm571, %v3219, 0
    %v3557 = vsel %vm571, %v3221, 0
    %v3559 = vsel %vm571, %v3223, 0
    %v3561 = vsel %vm571, %v3225, 0
    %v3563 = vsel %vm571, %v3227, 0
    %v3565 = vsel %vm571, %v3229, 0
    %v3567 = vsel %vm571, %v3231, 0
    %v3569 = vsel %vm571, %v3233, 0
    %v3571 = vsel %vm571, %v3235, 0
    %v3573 = vsel %vm571, %v3237, 0
    %3575 = vmatprep.subr.mxu0 0.0
    %3576 = vmatpush1.msra.mxu0 0.0
    %3577 = vmatprep.subr.mxu0 0.0
    %3578 = vmatpush1.msra.mxu0 0.0
    %3579 = vmatprep.subr.mxu0 0.0
    %3580 = vmatpush1.msra.mxu0 0.0
    %3581 = vmatprep.subr.mxu0 0.0
    %3582 = vmatpush1.msra.mxu0 0.0
    %3583 = vmatprep.subr.mxu0 0.0
    %3584 = vmatpush1.msra.mxu0 0.0
    %3585 = vmatprep.subr.mxu0 0.0
    %3586 = vmatpush1.msra.mxu0 0.0
    %3587 = vmatprep.subr.mxu0 0.0
    %3588 = vmatpush1.msra.mxu0 0.0
    %3589 = vmatprep.subr.mxu0 0.0
    %3590 = vmatpush1.msra.mxu0 0.0
    %3591 = vmatprep.subr.mxu0 0.0
    %3592 = vmatpush1.msra.mxu0 0.0
    %3593 = vmatprep.subr.mxu0 0.0
    %3594 = vmatpush1.msra.mxu0 0.0
    %3595 = vmatprep.subr.mxu0 0.0
    %3596 = vmatpush1.msra.mxu0 0.0
    %3597 = vmatprep.subr.mxu0 0.0
    %3598 = vmatpush1.msra.mxu0 0.0
    %3599 = vmatprep.subr.mxu0 0.0
    %3600 = vmatpush1.msra.mxu0 0.0
    %3601 = vmatprep.subr.mxu0 0.0
    %3602 = vmatpush1.msra.mxu0 0.0
    %3603 = vmatprep.subr.mxu0 0.0
    %3604 = vmatpush1.msra.mxu0 %v559
    %3605 = vmatprep.subr.mxu0 0.0
    %3606 = vmatpush1.msra.mxu0 %v558
    %3607 = vmatprep.subr.mxu0 0.0
    %3608 = vmatpush2.msra.mxu0 0.0
    %3609 = vmatprep.subr.mxu0 0.0
    %3610 = vmatpush2.msra.mxu0 0.0
    %3611 = vmatprep.subr.mxu0 0.0
    %3612 = vmatpush2.msra.mxu0 0.0
    %3613 = vmatprep.subr.mxu0 0.0
    %3614 = vmatpush2.msra.mxu0 0.0
    %3615 = vmatprep.subr.mxu0 0.0
    %3616 = vmatpush2.msra.mxu0 0.0
    %3617 = vmatprep.subr.mxu0 0.0
    %3618 = vmatpush2.msra.mxu0 0.0
    %3619 = vmatprep.subr.mxu0 0.0
    %3620 = vmatpush2.msra.mxu0 0.0
    %3621 = vmatprep.subr.mxu0 0.0
    %3622 = vmatpush2.msra.mxu0 0.0
    %3623 = vmatprep.subr.mxu0 0.0
    %3624 = vmatpush2.msra.mxu0 0.0
    %3625 = vmatprep.subr.mxu0 0.0
    %3626 = vmatpush2.msra.mxu0 0.0
    %3627 = vmatprep.subr.mxu0 0.0
    %3628 = vmatpush2.msra.mxu0 0.0
    %3629 = vmatprep.subr.mxu0 0.0
    %3630 = vmatpush2.msra.mxu0 0.0
    %3631 = vmatprep.subr.mxu0 0.0
    %3632 = vmatpush2.msra.mxu0 0.0
    %3633 = vmatprep.subr.mxu0 0.0
    %3634 = vmatpush2.msra.mxu0 0.0
    %3635 = vmatprep.subr.mxu0 0.0
    %3636 = vmatpush2.msra.mxu0 0.0
    %3637 = vmatprep.subr.mxu0 0.0
    %3638 = vmatpush2.msra.mxu0 0.0
    %3639 = vmatprep.mubr.f32.mxu0 0.0
    %3640 = vmatmul.mubr.f32.gmra.mxu0 %v3543
    %v3641 = vpop.f32.mrf.mxu0
    %v3642 = vadd.f32 0.0, %v3641
    %v3643 = vpop.f32.mrf.mxu0
    %3644 = vmatprep.mubr.f32.mxu0 0.0
    %3645 = vmatmul.mubr.f32.gmra.mxu0 %v3545
    %v3646 = vpop.f32.mrf.mxu0
    %v3647 = vadd.f32 0.0, %v3646
    %v3648 = vpop.f32.mrf.mxu0
    %3649 = vmatprep.mubr.f32.mxu0 0.0
    %3650 = vmatmul.mubr.f32.gmra.mxu0 %v3547
    %v3651 = vpop.f32.mrf.mxu0
    %v3652 = vadd.f32 0.0, %v3651
    %v3653 = vpop.f32.mrf.mxu0
    %3654 = vmatprep.mubr.f32.mxu0 0.0
    %3655 = vmatmul.mubr.f32.gmra.mxu0 %v3549
    %v3656 = vpop.f32.mrf.mxu0
    %v3657 = vadd.f32 0.0, %v3656
    %v3658 = vpop.f32.mrf.mxu0
    %3659 = vmatprep.mubr.f32.mxu0 0.0
    %3660 = vmatmul.mubr.f32.gmra.mxu0 %v3551
    %v3661 = vpop.f32.mrf.mxu0
    %v3662 = vadd.f32 0.0, %v3661
    %v3663 = vpop.f32.mrf.mxu0
    %3664 = vmatprep.mubr.f32.mxu0 0.0
    %3665 = vmatmul.mubr.f32.gmra.mxu0 %v3553
    %v3666 = vpop.f32.mrf.mxu0
    %v3667 = vadd.f32 0.0, %v3666
    %v3668 = vpop.f32.mrf.mxu0
    %3669 = vmatprep.mubr.f32.mxu0 0.0
    %3670 = vmatmul.mubr.f32.gmra.mxu0 %v3555
    %v3671 = vpop.f32.mrf.mxu0
    %v3672 = vadd.f32 0.0, %v3671
    %v3673 = vpop.f32.mrf.mxu0
    %3674 = vmatprep.mubr.f32.mxu0 0.0
    %3675 = vmatmul.mubr.f32.gmra.mxu0 %v3557
    %v3676 = vpop.f32.mrf.mxu0
    %v3677 = vadd.f32 0.0, %v3676
    %v3678 = vpop.f32.mrf.mxu0
    %3679 = vmatprep.mubr.f32.mxu0 0.0
    %3680 = vmatmul.mubr.f32.gmra.mxu0 %v3559
    %v3681 = vpop.f32.mrf.mxu0
    %v3682 = vadd.f32 0.0, %v3681
    %v3683 = vpop.f32.mrf.mxu0
    %3684 = vmatprep.mubr.f32.mxu0 0.0
    %3685 = vmatmul.mubr.f32.gmra.mxu0 %v3561
    %v3686 = vpop.f32.mrf.mxu0
    %v3687 = vadd.f32 0.0, %v3686
    %v3688 = vpop.f32.mrf.mxu0
    %3689 = vmatprep.mubr.f32.mxu0 0.0
    %3690 = vmatmul.mubr.f32.gmra.mxu0 %v3563
    %v3691 = vpop.f32.mrf.mxu0
    %v3692 = vadd.f32 0.0, %v3691
    %v3693 = vpop.f32.mrf.mxu0
    %3694 = vmatprep.mubr.f32.mxu0 0.0
    %3695 = vmatmul.mubr.f32.gmra.mxu0 %v3565
    %v3696 = vpop.f32.mrf.mxu0
    %v3697 = vadd.f32 0.0, %v3696
    %v3698 = vpop.f32.mrf.mxu0
    %3699 = vmatprep.mubr.f32.mxu0 0.0
    %3700 = vmatmul.mubr.f32.gmra.mxu0 %v3567
    %v3701 = vpop.f32.mrf.mxu0
    %v3702 = vadd.f32 0.0, %v3701
    %v3703 = vpop.f32.mrf.mxu0
    %3704 = vmatprep.mubr.f32.mxu0 0.0
    %3705 = vmatmul.mubr.f32.gmra.mxu0 %v3569
    %v3706 = vpop.f32.mrf.mxu0
    %v3707 = vadd.f32 0.0, %v3706
    %v3708 = vpop.f32.mrf.mxu0
    %3709 = vmatprep.mubr.f32.mxu0 0.0
    %3710 = vmatmul.mubr.f32.gmra.mxu0 %v3571
    %v3711 = vpop.f32.mrf.mxu0
    %v3712 = vadd.f32 0.0, %v3711
    %v3713 = vpop.f32.mrf.mxu0
    %3714 = vmatprep.mubr.f32.mxu0 0.0
    %3715 = vmatmul.mubr.f32.gmra.mxu0 %v3573
    %v3716 = vpop.f32.mrf.mxu0
    %v3717 = vadd.f32 0.0, %v3716
    %v3718 = vpop.f32.mrf.mxu0
    %3719 = vdwg.mxu0
    %3736 = vrot.lane.b32.xlu0 %v3642, 80
    %v3737 = vpop.permute.xlu0 %3736
    %3738 = vrot.lane.b32.xlu0 %v3647, 80
    %v3739 = vpop.permute.xlu0 %3738
    %3740 = vrot.lane.b32.xlu0 %v3652, 80
    %v3741 = vpop.permute.xlu0 %3740
    %3742 = vrot.lane.b32.xlu0 %v3657, 80
    %v3743 = vpop.permute.xlu0 %3742
    %3744 = vrot.lane.b32.xlu0 %v3662, 80
    %v3745 = vpop.permute.xlu0 %3744
    %3746 = vrot.lane.b32.xlu0 %v3667, 80
    %v3747 = vpop.permute.xlu0 %3746
    %3748 = vrot.lane.b32.xlu0 %v3672, 80
    %v3749 = vpop.permute.xlu0 %3748
    %3750 = vrot.lane.b32.xlu0 %v3677, 80
    %v3751 = vpop.permute.xlu0 %3750
    %3752 = vrot.lane.b32.xlu0 %v3682, 80
    %v3753 = vpop.permute.xlu0 %3752
    %3754 = vrot.lane.b32.xlu0 %v3687, 80
    %v3755 = vpop.permute.xlu0 %3754
    %3756 = vrot.lane.b32.xlu0 %v3692, 80
    %v3757 = vpop.permute.xlu0 %3756
    %3758 = vrot.lane.b32.xlu0 %v3697, 80
    %v3759 = vpop.permute.xlu0 %3758
    %3760 = vrot.lane.b32.xlu0 %v3702, 80
    %v3761 = vpop.permute.xlu0 %3760
    %3762 = vrot.lane.b32.xlu0 %v3707, 80
    %v3763 = vpop.permute.xlu0 %3762
    %3764 = vrot.lane.b32.xlu0 %v3712, 80
    %v3765 = vpop.permute.xlu0 %3764
    %3766 = vrot.lane.b32.xlu0 %v3717, 80
    %v3767 = vpop.permute.xlu0 %3766
    %v3784 = vadd.f32 %v464, %v3737
    %v3785 = vadd.f32 %v470, %v3739
    %v3786 = vadd.f32 %v476, %v3741
    %v3787 = vadd.f32 %v482, %v3743
    %v3788 = vadd.f32 %v488, %v3745
    %v3789 = vadd.f32 %v494, %v3747
    %v3790 = vadd.f32 %v500, %v3749
    %v3791 = vadd.f32 %v506, %v3751
    %v3792 = vadd.f32 %v512, %v3753
    %v3793 = vadd.f32 %v518, %v3755
    %v3794 = vadd.f32 %v524, %v3757
    %v3795 = vadd.f32 %v530, %v3759
    %v3796 = vadd.f32 %v536, %v3761
    %v3797 = vadd.f32 %v542, %v3763
    %v3798 = vadd.f32 %v548, %v3765
    %v3799 = vadd.f32 %v554, %v3767
    %v3800 = vtanh.pop %v3784
    %v3801 = vtanh.pop %v3785
    %v3802 = vtanh.pop %v3786
    %v3803 = vtanh.pop %v3787
    %v3804 = vtanh.pop %v3788
    %v3805 = vtanh.pop %v3789
    %v3806 = vtanh.pop %v3790
    %v3807 = vtanh.pop %v3791
    %v3808 = vtanh.pop %v3792
    %v3809 = vtanh.pop %v3793
    %v3810 = vtanh.pop %v3794
    %v3811 = vtanh.pop %v3795
    %v3812 = vtanh.pop %v3796
    %v3813 = vtanh.pop %v3797
    %v3814 = vtanh.pop %v3798
    %v3815 = vtanh.pop %v3799
    %3832 = vrot.lane.b32.xlu0 %v3800, 48
    %v3833 = vpop.permute.xlu0 %3832
    %3834 = vrot.lane.b32.xlu0 %v3801, 48
    %v3835 = vpop.permute.xlu0 %3834
    %3836 = vrot.lane.b32.xlu0 %v3802, 48
    %v3837 = vpop.permute.xlu0 %3836
    %3838 = vrot.lane.b32.xlu0 %v3803, 48
    %v3839 = vpop.permute.xlu0 %3838
    %3840 = vrot.lane.b32.xlu0 %v3804, 48
    %v3841 = vpop.permute.xlu0 %3840
    %3842 = vrot.lane.b32.xlu0 %v3805, 48
    %v3843 = vpop.permute.xlu0 %3842
    %3844 = vrot.lane.b32.xlu0 %v3806, 48
    %v3845 = vpop.permute.xlu0 %3844
    %3846 = vrot.lane.b32.xlu0 %v3807, 48
    %v3847 = vpop.permute.xlu0 %3846
    %3848 = vrot.lane.b32.xlu0 %v3808, 48
    %v3849 = vpop.permute.xlu0 %3848
    %3850 = vrot.lane.b32.xlu0 %v3809, 48
    %v3851 = vpop.permute.xlu0 %3850
    %3852 = vrot.lane.b32.xlu0 %v3810, 48
    %v3853 = vpop.permute.xlu0 %3852
    %3854 = vrot.lane.b32.xlu0 %v3811, 48
    %v3855 = vpop.permute.xlu0 %3854
    %3856 = vrot.lane.b32.xlu0 %v3812, 48
    %v3857 = vpop.permute.xlu0 %3856
    %3858 = vrot.lane.b32.xlu0 %v3813, 48
    %v3859 = vpop.permute.xlu0 %3858
    %3860 = vrot.lane.b32.xlu0 %v3814, 48
    %v3861 = vpop.permute.xlu0 %3860
    %3862 = vrot.lane.b32.xlu0 %v3815, 48
    %v3863 = vpop.permute.xlu0 %3862
    %3896 = vrot.lane.b32.xlu0 %v3527, 16
    %v3897 = vpop.permute.xlu0 %3896
    %3898 = vrot.lane.b32.xlu0 %v3528, 16
    %v3899 = vpop.permute.xlu0 %3898
    %3900 = vrot.lane.b32.xlu0 %v3529, 16
    %v3901 = vpop.permute.xlu0 %3900
    %3902 = vrot.lane.b32.xlu0 %v3530, 16
    %v3903 = vpop.permute.xlu0 %3902
    %3904 = vrot.lane.b32.xlu0 %v3531, 16
    %v3905 = vpop.permute.xlu0 %3904
    %3906 = vrot.lane.b32.xlu0 %v3532, 16
    %v3907 = vpop.permute.xlu0 %3906
    %3908 = vrot.lane.b32.xlu0 %v3533, 16
    %v3909 = vpop.permute.xlu0 %3908
    %3910 = vrot.lane.b32.xlu0 %v3534, 16
    %v3911 = vpop.permute.xlu0 %3910
    %3912 = vrot.lane.b32.xlu0 %v3535, 16
    %v3913 = vpop.permute.xlu0 %3912
    %3914 = vrot.lane.b32.xlu0 %v3536, 16
    %v3915 = vpop.permute.xlu0 %3914
    %3916 = vrot.lane.b32.xlu0 %v3537, 16
    %v3917 = vpop.permute.xlu0 %3916
    %3918 = vrot.lane.b32.xlu0 %v3538, 16
    %v3919 = vpop.permute.xlu0 %3918
    %3920 = vrot.lane.b32.xlu0 %v3539, 16
    %v3921 = vpop.permute.xlu0 %3920
    %3922 = vrot.lane.b32.xlu0 %v3540, 16
    %v3923 = vpop.permute.xlu0 %3922
    %3924 = vrot.lane.b32.xlu0 %v3541, 16
    %v3925 = vpop.permute.xlu0 %3924
    %3926 = vrot.lane.b32.xlu0 %v3542, 16
    %v3927 = vpop.permute.xlu0 %3926
    %v3944 = vsel %vm571, %v3833, %v3897
    %v3945 = vsel %vm571, %v3835, %v3899
    %v3946 = vsel %vm571, %v3837, %v3901
    %v3947 = vsel %vm571, %v3839, %v3903
    %v3948 = vsel %vm571, %v3841, %v3905
    %v3949 = vsel %vm571, %v3843, %v3907
    %v3950 = vsel %vm571, %v3845, %v3909
    %v3951 = vsel %vm571, %v3847, %v3911
    %v3952 = vsel %vm571, %v3849, %v3913
    %v3953 = vsel %vm571, %v3851, %v3915
    %v3954 = vsel %vm571, %v3853, %v3917
    %v3955 = vsel %vm571, %v3855, %v3919
    %v3956 = vsel %vm571, %v3857, %v3921
    %v3957 = vsel %vm571, %v3859, %v3923
    %v3958 = vsel %vm571, %v3861, %v3925
    %v3959 = vsel %vm571, %v3863, %v3927
    %v3961 = vsel %vm813, %v3944, 0
    %v3964 = vsel %vm813, %v3945, 0
    %v3967 = vsel %vm813, %v3946, 0
    %v3970 = vsel %vm813, %v3947, 0
    %v3973 = vsel %vm813, %v3948, 0
    %v3976 = vsel %vm813, %v3949, 0
    %v3979 = vsel %vm813, %v3950, 0
    %v3982 = vsel %vm813, %v3951, 0
    %v3985 = vsel %vm813, %v3952, 0
    %v3988 = vsel %vm813, %v3953, 0
    %v3991 = vsel %vm813, %v3954, 0
    %v3994 = vsel %vm813, %v3955, 0
    %v3997 = vsel %vm813, %v3956, 0
    %v4000 = vsel %vm813, %v3957, 0
    %v4003 = vsel %vm813, %v3958, 0
    %v4006 = vsel %vm813, %v3959, 0
    %4008 = vmatprep.subr.mxu0 0.0
    %4009 = vmatpush1.msra.mxu0 0.0
    %4010 = vmatprep.subr.mxu0 0.0
    %4011 = vmatpush1.msra.mxu0 0.0
    %4012 = vmatprep.subr.mxu0 0.0
    %4013 = vmatpush1.msra.mxu0 0.0
    %4014 = vmatprep.subr.mxu0 0.0
    %4015 = vmatpush1.msra.mxu0 0.0
    %4016 = vmatprep.subr.mxu0 0.0
    %4017 = vmatpush1.msra.mxu0 0.0
    %4018 = vmatprep.subr.mxu0 0.0
    %4019 = vmatpush1.msra.mxu0 0.0
    %4020 = vmatprep.subr.mxu0 0.0
    %4021 = vmatpush1.msra.mxu0 0.0
    %4022 = vmatprep.subr.mxu0 0.0
    %4023 = vmatpush1.msra.mxu0 0.0
    %4024 = vmatprep.subr.mxu0 0.0
    %4025 = vmatpush1.msra.mxu0 0.0
    %4026 = vmatprep.subr.mxu0 0.0
    %4027 = vmatpush1.msra.mxu0 0.0
    %4028 = vmatprep.subr.mxu0 0.0
    %4029 = vmatpush1.msra.mxu0 0.0
    %4030 = vmatprep.subr.mxu0 0.0
    %4031 = vmatpush1.msra.mxu0 0.0
    %4032 = vmatprep.subr.mxu0 0.0
    %4033 = vmatpush1.msra.mxu0 %v563
    %4034 = vmatprep.subr.mxu0 0.0
    %4035 = vmatpush1.msra.mxu0 %v562
    %4036 = vmatprep.subr.mxu0 0.0
    %4037 = vmatpush1.msra.mxu0 %v561
    %4038 = vmatprep.subr.mxu0 0.0
    %4039 = vmatpush1.msra.mxu0 %v560
    %4040 = vmatprep.subr.mxu0 0.0
    %4041 = vmatpush2.msra.mxu0 0.0
    %4042 = vmatprep.subr.mxu0 0.0
    %4043 = vmatpush2.msra.mxu0 0.0
    %4044 = vmatprep.subr.mxu0 0.0
    %4045 = vmatpush2.msra.mxu0 0.0
    %4046 = vmatprep.subr.mxu0 0.0
    %4047 = vmatpush2.msra.mxu0 0.0
    %4048 = vmatprep.subr.mxu0 0.0
    %4049 = vmatpush2.msra.mxu0 0.0
    %4050 = vmatprep.subr.mxu0 0.0
    %4051 = vmatpush2.msra.mxu0 0.0
    %4052 = vmatprep.subr.mxu0 0.0
    %4053 = vmatpush2.msra.mxu0 0.0
    %4054 = vmatprep.subr.mxu0 0.0
    %4055 = vmatpush2.msra.mxu0 0.0
    %4056 = vmatprep.subr.mxu0 0.0
    %4057 = vmatpush2.msra.mxu0 0.0
    %4058 = vmatprep.subr.mxu0 0.0
    %4059 = vmatpush2.msra.mxu0 0.0
    %4060 = vmatprep.subr.mxu0 0.0
    %4061 = vmatpush2.msra.mxu0 0.0
    %4062 = vmatprep.subr.mxu0 0.0
    %4063 = vmatpush2.msra.mxu0 0.0
    %4064 = vmatprep.subr.mxu0 0.0
    %4065 = vmatpush2.msra.mxu0 0.0
    %4066 = vmatprep.subr.mxu0 0.0
    %4067 = vmatpush2.msra.mxu0 0.0
    %4068 = vmatprep.subr.mxu0 0.0
    %4069 = vmatpush2.msra.mxu0 0.0
    %4070 = vmatprep.subr.mxu0 0.0
    %4071 = vmatpush2.msra.mxu0 0.0
    %4072 = vmatprep.mubr.f32.mxu0 0.0
    %4073 = vmatmul.mubr.f32.gmra.mxu0 %v3961
    %v4074 = vpop.f32.mrf.mxu0
    %v4075 = vadd.f32 %v569, %v4074
    %v4076 = vpop.f32.mrf.mxu0
    %4077 = vmatprep.mubr.f32.mxu0 0.0
    %4078 = vmatmul.mubr.f32.gmra.mxu0 %v3964
    %v4079 = vpop.f32.mrf.mxu0
    %v4080 = vadd.f32 %v569, %v4079
    %v4081 = vpop.f32.mrf.mxu0
    %4082 = vmatprep.mubr.f32.mxu0 0.0
    %4083 = vmatmul.mubr.f32.gmra.mxu0 %v3967
    %v4084 = vpop.f32.mrf.mxu0
    %v4085 = vadd.f32 %v569, %v4084
    %v4086 = vpop.f32.mrf.mxu0
    %4087 = vmatprep.mubr.f32.mxu0 0.0
    %4088 = vmatmul.mubr.f32.gmra.mxu0 %v3970
    %v4089 = vpop.f32.mrf.mxu0
    %v4090 = vadd.f32 %v569, %v4089
    %v4091 = vpop.f32.mrf.mxu0
    %4092 = vmatprep.mubr.f32.mxu0 0.0
    %4093 = vmatmul.mubr.f32.gmra.mxu0 %v3973
    %v4094 = vpop.f32.mrf.mxu0
    %v4095 = vadd.f32 %v569, %v4094
    %v4096 = vpop.f32.mrf.mxu0
    %4097 = vmatprep.mubr.f32.mxu0 0.0
    %4098 = vmatmul.mubr.f32.gmra.mxu0 %v3976
    %v4099 = vpop.f32.mrf.mxu0
    %v4100 = vadd.f32 %v569, %v4099
    %v4101 = vpop.f32.mrf.mxu0
    %4102 = vmatprep.mubr.f32.mxu0 0.0
    %4103 = vmatmul.mubr.f32.gmra.mxu0 %v3979
    %v4104 = vpop.f32.mrf.mxu0
    %v4105 = vadd.f32 %v569, %v4104
    %v4106 = vpop.f32.mrf.mxu0
    %4107 = vmatprep.mubr.f32.mxu0 0.0
    %4108 = vmatmul.mubr.f32.gmra.mxu0 %v3982
    %v4109 = vpop.f32.mrf.mxu0
    %v4110 = vadd.f32 %v569, %v4109
    %v4111 = vpop.f32.mrf.mxu0
    %4112 = vmatprep.mubr.f32.mxu0 0.0
    %4113 = vmatmul.mubr.f32.gmra.mxu0 %v3985
    %v4114 = vpop.f32.mrf.mxu0
    %v4115 = vadd.f32 %v569, %v4114
    %v4116 = vpop.f32.mrf.mxu0
    %4117 = vmatprep.mubr.f32.mxu0 0.0
    %4118 = vmatmul.mubr.f32.gmra.mxu0 %v3988
    %v4119 = vpop.f32.mrf.mxu0
    %v4120 = vadd.f32 %v569, %v4119
    %v4121 = vpop.f32.mrf.mxu0
    %4122 = vmatprep.mubr.f32.mxu0 0.0
    %4123 = vmatmul.mubr.f32.gmra.mxu0 %v3991
    %v4124 = vpop.f32.mrf.mxu0
    %v4125 = vadd.f32 %v569, %v4124
    %v4126 = vpop.f32.mrf.mxu0
    %4127 = vmatprep.mubr.f32.mxu0 0.0
    %4128 = vmatmul.mubr.f32.gmra.mxu0 %v3994
    %v4129 = vpop.f32.mrf.mxu0
    %v4130 = vadd.f32 %v569, %v4129
    %v4131 = vpop.f32.mrf.mxu0
    %4132 = vmatprep.mubr.f32.mxu0 0.0
    %4133 = vmatmul.mubr.f32.gmra.mxu0 %v3997
    %v4134 = vpop.f32.mrf.mxu0
    %v4135 = vadd.f32 %v569, %v4134
    %v4136 = vpop.f32.mrf.mxu0
    %4137 = vmatprep.mubr.f32.mxu0 0.0
    %4138 = vmatmul.mubr.f32.gmra.mxu0 %v4000
    %v4139 = vpop.f32.mrf.mxu0
    %v4140 = vadd.f32 %v569, %v4139
    %v4141 = vpop.f32.mrf.mxu0
    %4142 = vmatprep.mubr.f32.mxu0 0.0
    %4143 = vmatmul.mubr.f32.gmra.mxu0 %v4003
    %v4144 = vpop.f32.mrf.mxu0
    %v4145 = vadd.f32 %v569, %v4144
    %v4146 = vpop.f32.mrf.mxu0
    %4147 = vmatprep.mubr.f32.mxu0 0.0
    %4148 = vmatmul.mubr.f32.gmra.mxu0 %v4006
    %v4149 = vpop.f32.mrf.mxu0
    %v4150 = vadd.f32 %v569, %v4149
    %v4151 = vpop.f32.mrf.mxu0
    %4152 = vdwg.mxu0
    %v4153 = vtanh.pop %v4075
    %v4154 = vtanh.pop %v4080
    %v4155 = vtanh.pop %v4085
    %v4156 = vtanh.pop %v4090
    %v4157 = vtanh.pop %v4095
    %v4158 = vtanh.pop %v4100
    %v4159 = vtanh.pop %v4105
    %v4160 = vtanh.pop %v4110
    %v4161 = vtanh.pop %v4115
    %v4162 = vtanh.pop %v4120
    %v4163 = vtanh.pop %v4125
    %v4164 = vtanh.pop %v4130
    %v4165 = vtanh.pop %v4135
    %v4166 = vtanh.pop %v4140
    %v4167 = vtanh.pop %v4145
    %v4168 = vtanh.pop %v4150
    %v4169 = vsel %vm571, %v3833, 0
    %v4171 = vsel %vm571, %v3835, 0
    %v4173 = vsel %vm571, %v3837, 0
    %v4175 = vsel %vm571, %v3839, 0
    %v4177 = vsel %vm571, %v3841, 0
    %v4179 = vsel %vm571, %v3843, 0
    %v4181 = vsel %vm571, %v3845, 0
    %v4183 = vsel %vm571, %v3847, 0
    %v4185 = vsel %vm571, %v3849, 0
    %v4187 = vsel %vm571, %v3851, 0
    %v4189 = vsel %vm571, %v3853, 0
    %v4191 = vsel %vm571, %v3855, 0
    %v4193 = vsel %vm571, %v3857, 0
    %v4195 = vsel %vm571, %v3859, 0
    %v4197 = vsel %vm571, %v3861, 0
    %v4199 = vsel %vm571, %v3863, 0
    %4201 = vmatprep.subr.mxu0 0.0
    %4202 = vmatpush1.msra.mxu0 0.0
    %4203 = vmatprep.subr.mxu0 0.0
    %4204 = vmatpush1.msra.mxu0 0.0
    %4205 = vmatprep.subr.mxu0 0.0
    %4206 = vmatpush1.msra.mxu0 0.0
    %4207 = vmatprep.subr.mxu0 0.0
    %4208 = vmatpush1.msra.mxu0 0.0
    %4209 = vmatprep.subr.mxu0 0.0
    %4210 = vmatpush1.msra.mxu0 0.0
    %4211 = vmatprep.subr.mxu0 0.0
    %4212 = vmatpush1.msra.mxu0 0.0
    %4213 = vmatprep.subr.mxu0 0.0
    %4214 = vmatpush1.msra.mxu0 0.0
    %4215 = vmatprep.subr.mxu0 0.0
    %4216 = vmatpush1.msra.mxu0 0.0
    %4217 = vmatprep.subr.mxu0 0.0
    %4218 = vmatpush1.msra.mxu0 0.0
    %4219 = vmatprep.subr.mxu0 0.0
    %4220 = vmatpush1.msra.mxu0 0.0
    %4221 = vmatprep.subr.mxu0 0.0
    %4222 = vmatpush1.msra.mxu0 0.0
    %4223 = vmatprep.subr.mxu0 0.0
    %4224 = vmatpush1.msra.mxu0 0.0
    %4225 = vmatprep.subr.mxu0 0.0
    %4226 = vmatpush1.msra.mxu0 0.0
    %4227 = vmatprep.subr.mxu0 0.0
    %4228 = vmatpush1.msra.mxu0 0.0
    %4229 = vmatprep.subr.mxu0 0.0
    %4230 = vmatpush1.msra.mxu0 %v559
    %4231 = vmatprep.subr.mxu0 0.0
    %4232 = vmatpush1.msra.mxu0 %v558
    %4233 = vmatprep.subr.mxu0 0.0
    %4234 = vmatpush2.msra.mxu0 0.0
    %4235 = vmatprep.subr.mxu0 0.0
    %4236 = vmatpush2.msra.mxu0 0.0
    %4237 = vmatprep.subr.mxu0 0.0
    %4238 = vmatpush2.msra.mxu0 0.0
    %4239 = vmatprep.subr.mxu0 0.0
    %4240 = vmatpush2.msra.mxu0 0.0
    %4241 = vmatprep.subr.mxu0 0.0
    %4242 = vmatpush2.msra.mxu0 0.0
    %4243 = vmatprep.subr.mxu0 0.0
    %4244 = vmatpush2.msra.mxu0 0.0
    %4245 = vmatprep.subr.mxu0 0.0
    %4246 = vmatpush2.msra.mxu0 0.0
    %4247 = vmatprep.subr.mxu0 0.0
    %4248 = vmatpush2.msra.mxu0 0.0
    %4249 = vmatprep.subr.mxu0 0.0
    %4250 = vmatpush2.msra.mxu0 0.0
    %4251 = vmatprep.subr.mxu0 0.0
    %4252 = vmatpush2.msra.mxu0 0.0
    %4253 = vmatprep.subr.mxu0 0.0
    %4254 = vmatpush2.msra.mxu0 0.0
    %4255 = vmatprep.subr.mxu0 0.0
    %4256 = vmatpush2.msra.mxu0 0.0
    %4257 = vmatprep.subr.mxu0 0.0
    %4258 = vmatpush2.msra.mxu0 0.0
    %4259 = vmatprep.subr.mxu0 0.0
    %4260 = vmatpush2.msra.mxu0 0.0
    %4261 = vmatprep.subr.mxu0 0.0
    %4262 = vmatpush2.msra.mxu0 0.0
    %4263 = vmatprep.subr.mxu0 0.0
    %4264 = vmatpush2.msra.mxu0 0.0
    %4265 = vmatprep.mubr.f32.mxu0 0.0
    %4266 = vmatmul.mubr.f32.gmra.mxu0 %v4169
    %v4267 = vpop.f32.mrf.mxu0
    %v4268 = vadd.f32 0.0, %v4267
    %v4269 = vpop.f32.mrf.mxu0
    %4270 = vmatprep.mubr.f32.mxu0 0.0
    %4271 = vmatmul.mubr.f32.gmra.mxu0 %v4171
    %v4272 = vpop.f32.mrf.mxu0
    %v4273 = vadd.f32 0.0, %v4272
    %v4274 = vpop.f32.mrf.mxu0
    %4275 = vmatprep.mubr.f32.mxu0 0.0
    %4276 = vmatmul.mubr.f32.gmra.mxu0 %v4173
    %v4277 = vpop.f32.mrf.mxu0
    %v4278 = vadd.f32 0.0, %v4277
    %v4279 = vpop.f32.mrf.mxu0
    %4280 = vmatprep.mubr.f32.mxu0 0.0
    %4281 = vmatmul.mubr.f32.gmra.mxu0 %v4175
    %v4282 = vpop.f32.mrf.mxu0
    %v4283 = vadd.f32 0.0, %v4282
    %v4284 = vpop.f32.mrf.mxu0
    %4285 = vmatprep.mubr.f32.mxu0 0.0
    %4286 = vmatmul.mubr.f32.gmra.mxu0 %v4177
    %v4287 = vpop.f32.mrf.mxu0
    %v4288 = vadd.f32 0.0, %v4287
    %v4289 = vpop.f32.mrf.mxu0
    %4290 = vmatprep.mubr.f32.mxu0 0.0
    %4291 = vmatmul.mubr.f32.gmra.mxu0 %v4179
    %v4292 = vpop.f32.mrf.mxu0
    %v4293 = vadd.f32 0.0, %v4292
    %v4294 = vpop.f32.mrf.mxu0
    %4295 = vmatprep.mubr.f32.mxu0 0.0
    %4296 = vmatmul.mubr.f32.gmra.mxu0 %v4181
    %v4297 = vpop.f32.mrf.mxu0
    %v4298 = vadd.f32 0.0, %v4297
    %v4299 = vpop.f32.mrf.mxu0
    %4300 = vmatprep.mubr.f32.mxu0 0.0
    %4301 = vmatmul.mubr.f32.gmra.mxu0 %v4183
    %v4302 = vpop.f32.mrf.mxu0
    %v4303 = vadd.f32 0.0, %v4302
    %v4304 = vpop.f32.mrf.mxu0
    %4305 = vmatprep.mubr.f32.mxu0 0.0
    %4306 = vmatmul.mubr.f32.gmra.mxu0 %v4185
    %v4307 = vpop.f32.mrf.mxu0
    %v4308 = vadd.f32 0.0, %v4307
    %v4309 = vpop.f32.mrf.mxu0
    %4310 = vmatprep.mubr.f32.mxu0 0.0
    %4311 = vmatmul.mubr.f32.gmra.mxu0 %v4187
    %v4312 = vpop.f32.mrf.mxu0
    %v4313 = vadd.f32 0.0, %v4312
    %v4314 = vpop.f32.mrf.mxu0
    %4315 = vmatprep.mubr.f32.mxu0 0.0
    %4316 = vmatmul.mubr.f32.gmra.mxu0 %v4189
    %v4317 = vpop.f32.mrf.mxu0
    %v4318 = vadd.f32 0.0, %v4317
    %v4319 = vpop.f32.mrf.mxu0
    %4320 = vmatprep.mubr.f32.mxu0 0.0
    %4321 = vmatmul.mubr.f32.gmra.mxu0 %v4191
    %v4322 = vpop.f32.mrf.mxu0
    %v4323 = vadd.f32 0.0, %v4322
    %v4324 = vpop.f32.mrf.mxu0
    %4325 = vmatprep.mubr.f32.mxu0 0.0
    %4326 = vmatmul.mubr.f32.gmra.mxu0 %v4193
    %v4327 = vpop.f32.mrf.mxu0
    %v4328 = vadd.f32 0.0, %v4327
    %v4329 = vpop.f32.mrf.mxu0
    %4330 = vmatprep.mubr.f32.mxu0 0.0
    %4331 = vmatmul.mubr.f32.gmra.mxu0 %v4195
    %v4332 = vpop.f32.mrf.mxu0
    %v4333 = vadd.f32 0.0, %v4332
    %v4334 = vpop.f32.mrf.mxu0
    %4335 = vmatprep.mubr.f32.mxu0 0.0
    %4336 = vmatmul.mubr.f32.gmra.mxu0 %v4197
    %v4337 = vpop.f32.mrf.mxu0
    %v4338 = vadd.f32 0.0, %v4337
    %v4339 = vpop.f32.mrf.mxu0
    %4340 = vmatprep.mubr.f32.mxu0 0.0
    %4341 = vmatmul.mubr.f32.gmra.mxu0 %v4199
    %v4342 = vpop.f32.mrf.mxu0
    %v4343 = vadd.f32 0.0, %v4342
    %v4344 = vpop.f32.mrf.mxu0
    %4345 = vdwg.mxu0
    %4362 = vrot.lane.b32.xlu0 %v4268, 96
    %v4363 = vpop.permute.xlu0 %4362
    %4364 = vrot.lane.b32.xlu0 %v4273, 96
    %v4365 = vpop.permute.xlu0 %4364
    %4366 = vrot.lane.b32.xlu0 %v4278, 96
    %v4367 = vpop.permute.xlu0 %4366
    %4368 = vrot.lane.b32.xlu0 %v4283, 96
    %v4369 = vpop.permute.xlu0 %4368
    %4370 = vrot.lane.b32.xlu0 %v4288, 96
    %v4371 = vpop.permute.xlu0 %4370
    %4372 = vrot.lane.b32.xlu0 %v4293, 96
    %v4373 = vpop.permute.xlu0 %4372
    %4374 = vrot.lane.b32.xlu0 %v4298, 96
    %v4375 = vpop.permute.xlu0 %4374
    %4376 = vrot.lane.b32.xlu0 %v4303, 96
    %v4377 = vpop.permute.xlu0 %4376
    %4378 = vrot.lane.b32.xlu0 %v4308, 96
    %v4379 = vpop.permute.xlu0 %4378
    %4380 = vrot.lane.b32.xlu0 %v4313, 96
    %v4381 = vpop.permute.xlu0 %4380
    %4382 = vrot.lane.b32.xlu0 %v4318, 96
    %v4383 = vpop.permute.xlu0 %4382
    %4384 = vrot.lane.b32.xlu0 %v4323, 96
    %v4385 = vpop.permute.xlu0 %4384
    %4386 = vrot.lane.b32.xlu0 %v4328, 96
    %v4387 = vpop.permute.xlu0 %4386
    %4388 = vrot.lane.b32.xlu0 %v4333, 96
    %v4389 = vpop.permute.xlu0 %4388
    %4390 = vrot.lane.b32.xlu0 %v4338, 96
    %v4391 = vpop.permute.xlu0 %4390
    %4392 = vrot.lane.b32.xlu0 %v4343, 96
    %v4393 = vpop.permute.xlu0 %4392
    %v4410 = vadd.f32 %v464, %v4363
    %v4411 = vadd.f32 %v470, %v4365
    %v4412 = vadd.f32 %v476, %v4367
    %v4413 = vadd.f32 %v482, %v4369
    %v4414 = vadd.f32 %v488, %v4371
    %v4415 = vadd.f32 %v494, %v4373
    %v4416 = vadd.f32 %v500, %v4375
    %v4417 = vadd.f32 %v506, %v4377
    %v4418 = vadd.f32 %v512, %v4379
    %v4419 = vadd.f32 %v518, %v4381
    %v4420 = vadd.f32 %v524, %v4383
    %v4421 = vadd.f32 %v530, %v4385
    %v4422 = vadd.f32 %v536, %v4387
    %v4423 = vadd.f32 %v542, %v4389
    %v4424 = vadd.f32 %v548, %v4391
    %v4425 = vadd.f32 %v554, %v4393
    %v4426 = vtanh.pop %v4410
    %v4427 = vtanh.pop %v4411
    %v4428 = vtanh.pop %v4412
    %v4429 = vtanh.pop %v4413
    %v4430 = vtanh.pop %v4414
    %v4431 = vtanh.pop %v4415
    %v4432 = vtanh.pop %v4416
    %v4433 = vtanh.pop %v4417
    %v4434 = vtanh.pop %v4418
    %v4435 = vtanh.pop %v4419
    %v4436 = vtanh.pop %v4420
    %v4437 = vtanh.pop %v4421
    %v4438 = vtanh.pop %v4422
    %v4439 = vtanh.pop %v4423
    %v4440 = vtanh.pop %v4424
    %v4441 = vtanh.pop %v4425
    %4458 = vrot.lane.b32.xlu0 %v4426, 32
    %v4459 = vpop.permute.xlu0 %4458
    %4460 = vrot.lane.b32.xlu0 %v4427, 32
    %v4461 = vpop.permute.xlu0 %4460
    %4462 = vrot.lane.b32.xlu0 %v4428, 32
    %v4463 = vpop.permute.xlu0 %4462
    %4464 = vrot.lane.b32.xlu0 %v4429, 32
    %v4465 = vpop.permute.xlu0 %4464
    %4466 = vrot.lane.b32.xlu0 %v4430, 32
    %v4467 = vpop.permute.xlu0 %4466
    %4468 = vrot.lane.b32.xlu0 %v4431, 32
    %v4469 = vpop.permute.xlu0 %4468
    %4470 = vrot.lane.b32.xlu0 %v4432, 32
    %v4471 = vpop.permute.xlu0 %4470
    %4472 = vrot.lane.b32.xlu0 %v4433, 32
    %v4473 = vpop.permute.xlu0 %4472
    %4474 = vrot.lane.b32.xlu0 %v4434, 32
    %v4475 = vpop.permute.xlu0 %4474
    %4476 = vrot.lane.b32.xlu0 %v4435, 32
    %v4477 = vpop.permute.xlu0 %4476
    %4478 = vrot.lane.b32.xlu0 %v4436, 32
    %v4479 = vpop.permute.xlu0 %4478
    %4480 = vrot.lane.b32.xlu0 %v4437, 32
    %v4481 = vpop.permute.xlu0 %4480
    %4482 = vrot.lane.b32.xlu0 %v4438, 32
    %v4483 = vpop.permute.xlu0 %4482
    %4484 = vrot.lane.b32.xlu0 %v4439, 32
    %v4485 = vpop.permute.xlu0 %4484
    %4486 = vrot.lane.b32.xlu0 %v4440, 32
    %v4487 = vpop.permute.xlu0 %4486
    %4488 = vrot.lane.b32.xlu0 %v4441, 32
    %v4489 = vpop.permute.xlu0 %4488
    %4522 = vrot.lane.b32.xlu0 %v4153, 16
    %v4523 = vpop.permute.xlu0 %4522
    %4524 = vrot.lane.b32.xlu0 %v4154, 16
    %v4525 = vpop.permute.xlu0 %4524
    %4526 = vrot.lane.b32.xlu0 %v4155, 16
    %v4527 = vpop.permute.xlu0 %4526
    %4528 = vrot.lane.b32.xlu0 %v4156, 16
    %v4529 = vpop.permute.xlu0 %4528
    %4530 = vrot.lane.b32.xlu0 %v4157, 16
    %v4531 = vpop.permute.xlu0 %4530
    %4532 = vrot.lane.b32.xlu0 %v4158, 16
    %v4533 = vpop.permute.xlu0 %4532
    %4534 = vrot.lane.b32.xlu0 %v4159, 16
    %v4535 = vpop.permute.xlu0 %4534
    %4536 = vrot.lane.b32.xlu0 %v4160, 16
    %v4537 = vpop.permute.xlu0 %4536
    %4538 = vrot.lane.b32.xlu0 %v4161, 16
    %v4539 = vpop.permute.xlu0 %4538
    %4540 = vrot.lane.b32.xlu0 %v4162, 16
    %v4541 = vpop.permute.xlu0 %4540
    %4542 = vrot.lane.b32.xlu0 %v4163, 16
    %v4543 = vpop.permute.xlu0 %4542
    %4544 = vrot.lane.b32.xlu0 %v4164, 16
    %v4545 = vpop.permute.xlu0 %4544
    %4546 = vrot.lane.b32.xlu0 %v4165, 16
    %v4547 = vpop.permute.xlu0 %4546
    %4548 = vrot.lane.b32.xlu0 %v4166, 16
    %v4549 = vpop.permute.xlu0 %4548
    %4550 = vrot.lane.b32.xlu0 %v4167, 16
    %v4551 = vpop.permute.xlu0 %4550
    %4552 = vrot.lane.b32.xlu0 %v4168, 16
    %v4553 = vpop.permute.xlu0 %4552
    %v4570 = vsel %vm571, %v4459, %v4523
    %v4571 = vsel %vm571, %v4461, %v4525
    %v4572 = vsel %vm571, %v4463, %v4527
    %v4573 = vsel %vm571, %v4465, %v4529
    %v4574 = vsel %vm571, %v4467, %v4531
    %v4575 = vsel %vm571, %v4469, %v4533
    %v4576 = vsel %vm571, %v4471, %v4535
    %v4577 = vsel %vm571, %v4473, %v4537
    %v4578 = vsel %vm571, %v4475, %v4539
    %v4579 = vsel %vm571, %v4477, %v4541
    %v4580 = vsel %vm571, %v4479, %v4543
    %v4581 = vsel %vm571, %v4481, %v4545
    %v4582 = vsel %vm571, %v4483, %v4547
    %v4583 = vsel %vm571, %v4485, %v4549
    %v4584 = vsel %vm571, %v4487, %v4551
    %v4585 = vsel %vm571, %v4489, %v4553
    %v4587 = vsel %vm813, %v4570, 0
    %v4590 = vsel %vm813, %v4571, 0
    %v4593 = vsel %vm813, %v4572, 0
    %v4596 = vsel %vm813, %v4573, 0
    %v4599 = vsel %vm813, %v4574, 0
    %v4602 = vsel %vm813, %v4575, 0
    %v4605 = vsel %vm813, %v4576, 0
    %v4608 = vsel %vm813, %v4577, 0
    %v4611 = vsel %vm813, %v4578, 0
    %v4614 = vsel %vm813, %v4579, 0
    %v4617 = vsel %vm813, %v4580, 0
    %v4620 = vsel %vm813, %v4581, 0
    %v4623 = vsel %vm813, %v4582, 0
    %v4626 = vsel %vm813, %v4583, 0
    %v4629 = vsel %vm813, %v4584, 0
    %v4632 = vsel %vm813, %v4585, 0
    %4634 = vmatprep.subr.mxu0 0.0
    %4635 = vmatpush1.msra.mxu0 0.0
    %4636 = vmatprep.subr.mxu0 0.0
    %4637 = vmatpush1.msra.mxu0 0.0
    %4638 = vmatprep.subr.mxu0 0.0
    %4639 = vmatpush1.msra.mxu0 0.0
    %4640 = vmatprep.subr.mxu0 0.0
    %4641 = vmatpush1.msra.mxu0 0.0
    %4642 = vmatprep.subr.mxu0 0.0
    %4643 = vmatpush1.msra.mxu0 0.0
    %4644 = vmatprep.subr.mxu0 0.0
    %4645 = vmatpush1.msra.mxu0 0.0
    %4646 = vmatprep.subr.mxu0 0.0
    %4647 = vmatpush1.msra.mxu0 0.0
    %4648 = vmatprep.subr.mxu0 0.0
    %4649 = vmatpush1.msra.mxu0 0.0
    %4650 = vmatprep.subr.mxu0 0.0
    %4651 = vmatpush1.msra.mxu0 0.0
    %4652 = vmatprep.subr.mxu0 0.0
    %4653 = vmatpush1.msra.mxu0 0.0
    %4654 = vmatprep.subr.mxu0 0.0
    %4655 = vmatpush1.msra.mxu0 0.0
    %4656 = vmatprep.subr.mxu0 0.0
    %4657 = vmatpush1.msra.mxu0 0.0
    %4658 = vmatprep.subr.mxu0 0.0
    %4659 = vmatpush1.msra.mxu0 %v563
    %4660 = vmatprep.subr.mxu0 0.0
    %4661 = vmatpush1.msra.mxu0 %v562
    %4662 = vmatprep.subr.mxu0 0.0
    %4663 = vmatpush1.msra.mxu0 %v561
    %4664 = vmatprep.subr.mxu0 0.0
    %4665 = vmatpush1.msra.mxu0 %v560
    %4666 = vmatprep.subr.mxu0 0.0
    %4667 = vmatpush2.msra.mxu0 0.0
    %4668 = vmatprep.subr.mxu0 0.0
    %4669 = vmatpush2.msra.mxu0 0.0
    %4670 = vmatprep.subr.mxu0 0.0
    %4671 = vmatpush2.msra.mxu0 0.0
    %4672 = vmatprep.subr.mxu0 0.0
    %4673 = vmatpush2.msra.mxu0 0.0
    %4674 = vmatprep.subr.mxu0 0.0
    %4675 = vmatpush2.msra.mxu0 0.0
    %4676 = vmatprep.subr.mxu0 0.0
    %4677 = vmatpush2.msra.mxu0 0.0
    %4678 = vmatprep.subr.mxu0 0.0
    %4679 = vmatpush2.msra.mxu0 0.0
    %4680 = vmatprep.subr.mxu0 0.0
    %4681 = vmatpush2.msra.mxu0 0.0
    %4682 = vmatprep.subr.mxu0 0.0
    %4683 = vmatpush2.msra.mxu0 0.0
    %4684 = vmatprep.subr.mxu0 0.0
    %4685 = vmatpush2.msra.mxu0 0.0
    %4686 = vmatprep.subr.mxu0 0.0
    %4687 = vmatpush2.msra.mxu0 0.0
    %4688 = vmatprep.subr.mxu0 0.0
    %4689 = vmatpush2.msra.mxu0 0.0
    %4690 = vmatprep.subr.mxu0 0.0
    %4691 = vmatpush2.msra.mxu0 0.0
    %4692 = vmatprep.subr.mxu0 0.0
    %4693 = vmatpush2.msra.mxu0 0.0
    %4694 = vmatprep.subr.mxu0 0.0
    %4695 = vmatpush2.msra.mxu0 0.0
    %4696 = vmatprep.subr.mxu0 0.0
    %4697 = vmatpush2.msra.mxu0 0.0
    %4698 = vmatprep.mubr.f32.mxu0 0.0
    %4699 = vmatmul.mubr.f32.gmra.mxu0 %v4587
    %v4700 = vpop.f32.mrf.mxu0
    %v4701 = vadd.f32 %v569, %v4700
    %v4702 = vpop.f32.mrf.mxu0
    %4703 = vmatprep.mubr.f32.mxu0 0.0
    %4704 = vmatmul.mubr.f32.gmra.mxu0 %v4590
    %v4705 = vpop.f32.mrf.mxu0
    %v4706 = vadd.f32 %v569, %v4705
    %v4707 = vpop.f32.mrf.mxu0
    %4708 = vmatprep.mubr.f32.mxu0 0.0
    %4709 = vmatmul.mubr.f32.gmra.mxu0 %v4593
    %v4710 = vpop.f32.mrf.mxu0
    %v4711 = vadd.f32 %v569, %v4710
    %v4712 = vpop.f32.mrf.mxu0
    %4713 = vmatprep.mubr.f32.mxu0 0.0
    %4714 = vmatmul.mubr.f32.gmra.mxu0 %v4596
    %v4715 = vpop.f32.mrf.mxu0
    %v4716 = vadd.f32 %v569, %v4715
    %v4717 = vpop.f32.mrf.mxu0
    %4718 = vmatprep.mubr.f32.mxu0 0.0
    %4719 = vmatmul.mubr.f32.gmra.mxu0 %v4599
    %v4720 = vpop.f32.mrf.mxu0
    %v4721 = vadd.f32 %v569, %v4720
    %v4722 = vpop.f32.mrf.mxu0
    %4723 = vmatprep.mubr.f32.mxu0 0.0
    %4724 = vmatmul.mubr.f32.gmra.mxu0 %v4602
    %v4725 = vpop.f32.mrf.mxu0
    %v4726 = vadd.f32 %v569, %v4725
    %v4727 = vpop.f32.mrf.mxu0
    %4728 = vmatprep.mubr.f32.mxu0 0.0
    %4729 = vmatmul.mubr.f32.gmra.mxu0 %v4605
    %v4730 = vpop.f32.mrf.mxu0
    %v4731 = vadd.f32 %v569, %v4730
    %v4732 = vpop.f32.mrf.mxu0
    %4733 = vmatprep.mubr.f32.mxu0 0.0
    %4734 = vmatmul.mubr.f32.gmra.mxu0 %v4608
    %v4735 = vpop.f32.mrf.mxu0
    %v4736 = vadd.f32 %v569, %v4735
    %v4737 = vpop.f32.mrf.mxu0
    %4738 = vmatprep.mubr.f32.mxu0 0.0
    %4739 = vmatmul.mubr.f32.gmra.mxu0 %v4611
    %v4740 = vpop.f32.mrf.mxu0
    %v4741 = vadd.f32 %v569, %v4740
    %v4742 = vpop.f32.mrf.mxu0
    %4743 = vmatprep.mubr.f32.mxu0 0.0
    %4744 = vmatmul.mubr.f32.gmra.mxu0 %v4614
    %v4745 = vpop.f32.mrf.mxu0
    %v4746 = vadd.f32 %v569, %v4745
    %v4747 = vpop.f32.mrf.mxu0
    %4748 = vmatprep.mubr.f32.mxu0 0.0
    %4749 = vmatmul.mubr.f32.gmra.mxu0 %v4617
    %v4750 = vpop.f32.mrf.mxu0
    %v4751 = vadd.f32 %v569, %v4750
    %v4752 = vpop.f32.mrf.mxu0
    %4753 = vmatprep.mubr.f32.mxu0 0.0
    %4754 = vmatmul.mubr.f32.gmra.mxu0 %v4620
    %v4755 = vpop.f32.mrf.mxu0
    %v4756 = vadd.f32 %v569, %v4755
    %v4757 = vpop.f32.mrf.mxu0
    %4758 = vmatprep.mubr.f32.mxu0 0.0
    %4759 = vmatmul.mubr.f32.gmra.mxu0 %v4623
    %v4760 = vpop.f32.mrf.mxu0
    %v4761 = vadd.f32 %v569, %v4760
    %v4762 = vpop.f32.mrf.mxu0
    %4763 = vmatprep.mubr.f32.mxu0 0.0
    %4764 = vmatmul.mubr.f32.gmra.mxu0 %v4626
    %v4765 = vpop.f32.mrf.mxu0
    %v4766 = vadd.f32 %v569, %v4765
    %v4767 = vpop.f32.mrf.mxu0
    %4768 = vmatprep.mubr.f32.mxu0 0.0
    %4769 = vmatmul.mubr.f32.gmra.mxu0 %v4629
    %v4770 = vpop.f32.mrf.mxu0
    %v4771 = vadd.f32 %v569, %v4770
    %v4772 = vpop.f32.mrf.mxu0
    %4773 = vmatprep.mubr.f32.mxu0 0.0
    %4774 = vmatmul.mubr.f32.gmra.mxu0 %v4632
    %v4775 = vpop.f32.mrf.mxu0
    %v4776 = vadd.f32 %v569, %v4775
    %v4777 = vpop.f32.mrf.mxu0
    %4778 = vdwg.mxu0
    %v4779 = vtanh.pop %v4701
    %v4780 = vtanh.pop %v4706
    %v4781 = vtanh.pop %v4711
    %v4782 = vtanh.pop %v4716
    %v4783 = vtanh.pop %v4721
    %v4784 = vtanh.pop %v4726
    %v4785 = vtanh.pop %v4731
    %v4786 = vtanh.pop %v4736
    %v4787 = vtanh.pop %v4741
    %v4788 = vtanh.pop %v4746
    %v4789 = vtanh.pop %v4751
    %v4790 = vtanh.pop %v4756
    %v4791 = vtanh.pop %v4761
    %v4792 = vtanh.pop %v4766
    %v4793 = vtanh.pop %v4771
    %v4794 = vtanh.pop %v4776
    %v4795 = vsel %vm571, %v4459, 0
    %v4797 = vsel %vm571, %v4461, 0
    %v4799 = vsel %vm571, %v4463, 0
    %v4801 = vsel %vm571, %v4465, 0
    %v4803 = vsel %vm571, %v4467, 0
    %v4805 = vsel %vm571, %v4469, 0
    %v4807 = vsel %vm571, %v4471, 0
    %v4809 = vsel %vm571, %v4473, 0
    %v4811 = vsel %vm571, %v4475, 0
    %v4813 = vsel %vm571, %v4477, 0
    %v4815 = vsel %vm571, %v4479, 0
    %v4817 = vsel %vm571, %v4481, 0
    %v4819 = vsel %vm571, %v4483, 0
    %v4821 = vsel %vm571, %v4485, 0
    %v4823 = vsel %vm571, %v4487, 0
    %v4825 = vsel %vm571, %v4489, 0
    %4827 = vmatprep.subr.mxu0 0.0
    %4828 = vmatpush1.msra.mxu0 0.0
    %4829 = vmatprep.subr.mxu0 0.0
    %4830 = vmatpush1.msra.mxu0 0.0
    %4831 = vmatprep.subr.mxu0 0.0
    %4832 = vmatpush1.msra.mxu0 0.0
    %4833 = vmatprep.subr.mxu0 0.0
    %4834 = vmatpush1.msra.mxu0 0.0
    %4835 = vmatprep.subr.mxu0 0.0
    %4836 = vmatpush1.msra.mxu0 0.0
    %4837 = vmatprep.subr.mxu0 0.0
    %4838 = vmatpush1.msra.mxu0 0.0
    %4839 = vmatprep.subr.mxu0 0.0
    %4840 = vmatpush1.msra.mxu0 0.0
    %4841 = vmatprep.subr.mxu0 0.0
    %4842 = vmatpush1.msra.mxu0 0.0
    %4843 = vmatprep.subr.mxu0 0.0
    %4844 = vmatpush1.msra.mxu0 0.0
    %4845 = vmatprep.subr.mxu0 0.0
    %4846 = vmatpush1.msra.mxu0 0.0
    %4847 = vmatprep.subr.mxu0 0.0
    %4848 = vmatpush1.msra.mxu0 0.0
    %4849 = vmatprep.subr.mxu0 0.0
    %4850 = vmatpush1.msra.mxu0 0.0
    %4851 = vmatprep.subr.mxu0 0.0
    %4852 = vmatpush1.msra.mxu0 0.0
    %4853 = vmatprep.subr.mxu0 0.0
    %4854 = vmatpush1.msra.mxu0 0.0
    %4855 = vmatprep.subr.mxu0 0.0
    %4856 = vmatpush1.msra.mxu0 %v559
    %4857 = vmatprep.subr.mxu0 0.0
    %4858 = vmatpush1.msra.mxu0 %v558
    %4859 = vmatprep.subr.mxu0 0.0
    %4860 = vmatpush2.msra.mxu0 0.0
    %4861 = vmatprep.subr.mxu0 0.0
    %4862 = vmatpush2.msra.mxu0 0.0
    %4863 = vmatprep.subr.mxu0 0.0
    %4864 = vmatpush2.msra.mxu0 0.0
    %4865 = vmatprep.subr.mxu0 0.0
    %4866 = vmatpush2.msra.mxu0 0.0
    %4867 = vmatprep.subr.mxu0 0.0
    %4868 = vmatpush2.msra.mxu0 0.0
    %4869 = vmatprep.subr.mxu0 0.0
    %4870 = vmatpush2.msra.mxu0 0.0
    %4871 = vmatprep.subr.mxu0 0.0
    %4872 = vmatpush2.msra.mxu0 0.0
    %4873 = vmatprep.subr.mxu0 0.0
    %4874 = vmatpush2.msra.mxu0 0.0
    %4875 = vmatprep.subr.mxu0 0.0
    %4876 = vmatpush2.msra.mxu0 0.0
    %4877 = vmatprep.subr.mxu0 0.0
    %4878 = vmatpush2.msra.mxu0 0.0
    %4879 = vmatprep.subr.mxu0 0.0
    %4880 = vmatpush2.msra.mxu0 0.0
    %4881 = vmatprep.subr.mxu0 0.0
    %4882 = vmatpush2.msra.mxu0 0.0
    %4883 = vmatprep.subr.mxu0 0.0
    %4884 = vmatpush2.msra.mxu0 0.0
    %4885 = vmatprep.subr.mxu0 0.0
    %4886 = vmatpush2.msra.mxu0 0.0
    %4887 = vmatprep.subr.mxu0 0.0
    %4888 = vmatpush2.msra.mxu0 0.0
    %4889 = vmatprep.subr.mxu0 0.0
    %4890 = vmatpush2.msra.mxu0 0.0
    %4891 = vmatprep.mubr.f32.mxu0 0.0
    %4892 = vmatmul.mubr.f32.gmra.mxu0 %v4795
    %v4893 = vpop.f32.mrf.mxu0
    %v4894 = vadd.f32 0.0, %v4893
    %v4895 = vpop.f32.mrf.mxu0
    %4896 = vmatprep.mubr.f32.mxu0 0.0
    %4897 = vmatmul.mubr.f32.gmra.mxu0 %v4797
    %v4898 = vpop.f32.mrf.mxu0
    %v4899 = vadd.f32 0.0, %v4898
    %v4900 = vpop.f32.mrf.mxu0
    %4901 = vmatprep.mubr.f32.mxu0 0.0
    %4902 = vmatmul.mubr.f32.gmra.mxu0 %v4799
    %v4903 = vpop.f32.mrf.mxu0
    %v4904 = vadd.f32 0.0, %v4903
    %v4905 = vpop.f32.mrf.mxu0
    %4906 = vmatprep.mubr.f32.mxu0 0.0
    %4907 = vmatmul.mubr.f32.gmra.mxu0 %v4801
    %v4908 = vpop.f32.mrf.mxu0
    %v4909 = vadd.f32 0.0, %v4908
    %v4910 = vpop.f32.mrf.mxu0
    %4911 = vmatprep.mubr.f32.mxu0 0.0
    %4912 = vmatmul.mubr.f32.gmra.mxu0 %v4803
    %v4913 = vpop.f32.mrf.mxu0
    %v4914 = vadd.f32 0.0, %v4913
    %v4915 = vpop.f32.mrf.mxu0
    %4916 = vmatprep.mubr.f32.mxu0 0.0
    %4917 = vmatmul.mubr.f32.gmra.mxu0 %v4805
    %v4918 = vpop.f32.mrf.mxu0
    %v4919 = vadd.f32 0.0, %v4918
    %v4920 = vpop.f32.mrf.mxu0
    %4921 = vmatprep.mubr.f32.mxu0 0.0
    %4922 = vmatmul.mubr.f32.gmra.mxu0 %v4807
    %v4923 = vpop.f32.mrf.mxu0
    %v4924 = vadd.f32 0.0, %v4923
    %v4925 = vpop.f32.mrf.mxu0
    %4926 = vmatprep.mubr.f32.mxu0 0.0
    %4927 = vmatmul.mubr.f32.gmra.mxu0 %v4809
    %v4928 = vpop.f32.mrf.mxu0
    %v4929 = vadd.f32 0.0, %v4928
    %v4930 = vpop.f32.mrf.mxu0
    %4931 = vmatprep.mubr.f32.mxu0 0.0
    %4932 = vmatmul.mubr.f32.gmra.mxu0 %v4811
    %v4933 = vpop.f32.mrf.mxu0
    %v4934 = vadd.f32 0.0, %v4933
    %v4935 = vpop.f32.mrf.mxu0
    %4936 = vmatprep.mubr.f32.mxu0 0.0
    %4937 = vmatmul.mubr.f32.gmra.mxu0 %v4813
    %v4938 = vpop.f32.mrf.mxu0
    %v4939 = vadd.f32 0.0, %v4938
    %v4940 = vpop.f32.mrf.mxu0
    %4941 = vmatprep.mubr.f32.mxu0 0.0
    %4942 = vmatmul.mubr.f32.gmra.mxu0 %v4815
    %v4943 = vpop.f32.mrf.mxu0
    %v4944 = vadd.f32 0.0, %v4943
    %v4945 = vpop.f32.mrf.mxu0
    %4946 = vmatprep.mubr.f32.mxu0 0.0
    %4947 = vmatmul.mubr.f32.gmra.mxu0 %v4817
    %v4948 = vpop.f32.mrf.mxu0
    %v4949 = vadd.f32 0.0, %v4948
    %v4950 = vpop.f32.mrf.mxu0
    %4951 = vmatprep.mubr.f32.mxu0 0.0
    %4952 = vmatmul.mubr.f32.gmra.mxu0 %v4819
    %v4953 = vpop.f32.mrf.mxu0
    %v4954 = vadd.f32 0.0, %v4953
    %v4955 = vpop.f32.mrf.mxu0
    %4956 = vmatprep.mubr.f32.mxu0 0.0
    %4957 = vmatmul.mubr.f32.gmra.mxu0 %v4821
    %v4958 = vpop.f32.mrf.mxu0
    %v4959 = vadd.f32 0.0, %v4958
    %v4960 = vpop.f32.mrf.mxu0
    %4961 = vmatprep.mubr.f32.mxu0 0.0
    %4962 = vmatmul.mubr.f32.gmra.mxu0 %v4823
    %v4963 = vpop.f32.mrf.mxu0
    %v4964 = vadd.f32 0.0, %v4963
    %v4965 = vpop.f32.mrf.mxu0
    %4966 = vmatprep.mubr.f32.mxu0 0.0
    %4967 = vmatmul.mubr.f32.gmra.mxu0 %v4825
    %v4968 = vpop.f32.mrf.mxu0
    %v4969 = vadd.f32 0.0, %v4968
    %v4970 = vpop.f32.mrf.mxu0
    %4971 = vdwg.mxu0
    %4988 = vrot.lane.b32.xlu0 %v4894, 112
    %v4989 = vpop.permute.xlu0 %4988
    %4990 = vrot.lane.b32.xlu0 %v4899, 112
    %v4991 = vpop.permute.xlu0 %4990
    %4992 = vrot.lane.b32.xlu0 %v4904, 112
    %v4993 = vpop.permute.xlu0 %4992
    %4994 = vrot.lane.b32.xlu0 %v4909, 112
    %v4995 = vpop.permute.xlu0 %4994
    %4996 = vrot.lane.b32.xlu0 %v4914, 112
    %v4997 = vpop.permute.xlu0 %4996
    %4998 = vrot.lane.b32.xlu0 %v4919, 112
    %v4999 = vpop.permute.xlu0 %4998
    %5000 = vrot.lane.b32.xlu0 %v4924, 112
    %v5001 = vpop.permute.xlu0 %5000
    %5002 = vrot.lane.b32.xlu0 %v4929, 112
    %v5003 = vpop.permute.xlu0 %5002
    %5004 = vrot.lane.b32.xlu0 %v4934, 112
    %v5005 = vpop.permute.xlu0 %5004
    %5006 = vrot.lane.b32.xlu0 %v4939, 112
    %v5007 = vpop.permute.xlu0 %5006
    %5008 = vrot.lane.b32.xlu0 %v4944, 112
    %v5009 = vpop.permute.xlu0 %5008
    %5010 = vrot.lane.b32.xlu0 %v4949, 112
    %v5011 = vpop.permute.xlu0 %5010
    %5012 = vrot.lane.b32.xlu0 %v4954, 112
    %v5013 = vpop.permute.xlu0 %5012
    %5014 = vrot.lane.b32.xlu0 %v4959, 112
    %v5015 = vpop.permute.xlu0 %5014
    %5016 = vrot.lane.b32.xlu0 %v4964, 112
    %v5017 = vpop.permute.xlu0 %5016
    %5018 = vrot.lane.b32.xlu0 %v4969, 112
    %v5019 = vpop.permute.xlu0 %5018
    %v5036 = vadd.f32 %v464, %v4989
    %v5037 = vadd.f32 %v470, %v4991
    %v5038 = vadd.f32 %v476, %v4993
    %v5039 = vadd.f32 %v482, %v4995
    %v5040 = vadd.f32 %v488, %v4997
    %v5041 = vadd.f32 %v494, %v4999
    %v5042 = vadd.f32 %v500, %v5001
    %v5043 = vadd.f32 %v506, %v5003
    %v5044 = vadd.f32 %v512, %v5005
    %v5045 = vadd.f32 %v518, %v5007
    %v5046 = vadd.f32 %v524, %v5009
    %v5047 = vadd.f32 %v530, %v5011
    %v5048 = vadd.f32 %v536, %v5013
    %v5049 = vadd.f32 %v542, %v5015
    %v5050 = vadd.f32 %v548, %v5017
    %v5051 = vadd.f32 %v554, %v5019
    %v5052 = vtanh.pop %v5036
    %v5053 = vtanh.pop %v5037
    %v5054 = vtanh.pop %v5038
    %v5055 = vtanh.pop %v5039
    %v5056 = vtanh.pop %v5040
    %v5057 = vtanh.pop %v5041
    %v5058 = vtanh.pop %v5042
    %v5059 = vtanh.pop %v5043
    %v5060 = vtanh.pop %v5044
    %v5061 = vtanh.pop %v5045
    %v5062 = vtanh.pop %v5046
    %v5063 = vtanh.pop %v5047
    %v5064 = vtanh.pop %v5048
    %v5065 = vtanh.pop %v5049
    %v5066 = vtanh.pop %v5050
    %v5067 = vtanh.pop %v5051
    %5084 = vrot.lane.b32.xlu0 %v5052, 16
    %v5085 = vpop.permute.xlu0 %5084
    %5086 = vrot.lane.b32.xlu0 %v5053, 16
    %v5087 = vpop.permute.xlu0 %5086
    %5088 = vrot.lane.b32.xlu0 %v5054, 16
    %v5089 = vpop.permute.xlu0 %5088
    %5090 = vrot.lane.b32.xlu0 %v5055, 16
    %v5091 = vpop.permute.xlu0 %5090
    %5092 = vrot.lane.b32.xlu0 %v5056, 16
    %v5093 = vpop.permute.xlu0 %5092
    %5094 = vrot.lane.b32.xlu0 %v5057, 16
    %v5095 = vpop.permute.xlu0 %5094
    %5096 = vrot.lane.b32.xlu0 %v5058, 16
    %v5097 = vpop.permute.xlu0 %5096
    %5098 = vrot.lane.b32.xlu0 %v5059, 16
    %v5099 = vpop.permute.xlu0 %5098
    %5100 = vrot.lane.b32.xlu0 %v5060, 16
    %v5101 = vpop.permute.xlu0 %5100
    %5102 = vrot.lane.b32.xlu0 %v5061, 16
    %v5103 = vpop.permute.xlu0 %5102
    %5104 = vrot.lane.b32.xlu0 %v5062, 16
    %v5105 = vpop.permute.xlu0 %5104
    %5106 = vrot.lane.b32.xlu0 %v5063, 16
    %v5107 = vpop.permute.xlu0 %5106
    %5108 = vrot.lane.b32.xlu0 %v5064, 16
    %v5109 = vpop.permute.xlu0 %5108
    %5110 = vrot.lane.b32.xlu0 %v5065, 16
    %v5111 = vpop.permute.xlu0 %5110
    %5112 = vrot.lane.b32.xlu0 %v5066, 16
    %v5113 = vpop.permute.xlu0 %5112
    %5114 = vrot.lane.b32.xlu0 %v5067, 16
    %v5115 = vpop.permute.xlu0 %5114
    %5148 = vrot.lane.b32.xlu0 %v4779, 16
    %v5149 = vpop.permute.xlu0 %5148
    %5150 = vrot.lane.b32.xlu0 %v4780, 16
    %v5151 = vpop.permute.xlu0 %5150
    %5152 = vrot.lane.b32.xlu0 %v4781, 16
    %v5153 = vpop.permute.xlu0 %5152
    %5154 = vrot.lane.b32.xlu0 %v4782, 16
    %v5155 = vpop.permute.xlu0 %5154
    %5156 = vrot.lane.b32.xlu0 %v4783, 16
    %v5157 = vpop.permute.xlu0 %5156
    %5158 = vrot.lane.b32.xlu0 %v4784, 16
    %v5159 = vpop.permute.xlu0 %5158
    %5160 = vrot.lane.b32.xlu0 %v4785, 16
    %v5161 = vpop.permute.xlu0 %5160
    %5162 = vrot.lane.b32.xlu0 %v4786, 16
    %v5163 = vpop.permute.xlu0 %5162
    %5164 = vrot.lane.b32.xlu0 %v4787, 16
    %v5165 = vpop.permute.xlu0 %5164
    %5166 = vrot.lane.b32.xlu0 %v4788, 16
    %v5167 = vpop.permute.xlu0 %5166
    %5168 = vrot.lane.b32.xlu0 %v4789, 16
    %v5169 = vpop.permute.xlu0 %5168
    %5170 = vrot.lane.b32.xlu0 %v4790, 16
    %v5171 = vpop.permute.xlu0 %5170
    %5172 = vrot.lane.b32.xlu0 %v4791, 16
    %v5173 = vpop.permute.xlu0 %5172
    %5174 = vrot.lane.b32.xlu0 %v4792, 16
    %v5175 = vpop.permute.xlu0 %5174
    %5176 = vrot.lane.b32.xlu0 %v4793, 16
    %v5177 = vpop.permute.xlu0 %5176
    %5178 = vrot.lane.b32.xlu0 %v4794, 16
    %v5179 = vpop.permute.xlu0 %5178
    %v5196 = vsel %vm571, %v5085, %v5149
    %v5197 = vsel %vm571, %v5087, %v5151
    %v5198 = vsel %vm571, %v5089, %v5153
    %v5199 = vsel %vm571, %v5091, %v5155
    %v5200 = vsel %vm571, %v5093, %v5157
    %v5201 = vsel %vm571, %v5095, %v5159
    %v5202 = vsel %vm571, %v5097, %v5161
    %v5203 = vsel %vm571, %v5099, %v5163
    %v5204 = vsel %vm571, %v5101, %v5165
    %v5205 = vsel %vm571, %v5103, %v5167
    %v5206 = vsel %vm571, %v5105, %v5169
    %v5207 = vsel %vm571, %v5107, %v5171
    %v5208 = vsel %vm571, %v5109, %v5173
    %v5209 = vsel %vm571, %v5111, %v5175
    %v5210 = vsel %vm571, %v5113, %v5177
    %v5211 = vsel %vm571, %v5115, %v5179
    %v5213 = vsel %vm813, %v5196, 0
    %v5216 = vsel %vm813, %v5197, 0
    %v5219 = vsel %vm813, %v5198, 0
    %v5222 = vsel %vm813, %v5199, 0
    %v5225 = vsel %vm813, %v5200, 0
    %v5228 = vsel %vm813, %v5201, 0
    %v5231 = vsel %vm813, %v5202, 0
    %v5234 = vsel %vm813, %v5203, 0
    %v5237 = vsel %vm813, %v5204, 0
    %v5240 = vsel %vm813, %v5205, 0
    %v5243 = vsel %vm813, %v5206, 0
    %v5246 = vsel %vm813, %v5207, 0
    %v5249 = vsel %vm813, %v5208, 0
    %v5252 = vsel %vm813, %v5209, 0
    %v5255 = vsel %vm813, %v5210, 0
    %v5258 = vsel %vm813, %v5211, 0
    %5260 = vmatprep.subr.mxu0 0.0
    %5261 = vmatpush1.msra.mxu0 0.0
    %5262 = vmatprep.subr.mxu0 0.0
    %5263 = vmatpush1.msra.mxu0 0.0
    %5264 = vmatprep.subr.mxu0 0.0
    %5265 = vmatpush1.msra.mxu0 0.0
    %5266 = vmatprep.subr.mxu0 0.0
    %5267 = vmatpush1.msra.mxu0 0.0
    %5268 = vmatprep.subr.mxu0 0.0
    %5269 = vmatpush1.msra.mxu0 0.0
    %5270 = vmatprep.subr.mxu0 0.0
    %5271 = vmatpush1.msra.mxu0 0.0
    %5272 = vmatprep.subr.mxu0 0.0
    %5273 = vmatpush1.msra.mxu0 0.0
    %5274 = vmatprep.subr.mxu0 0.0
    %5275 = vmatpush1.msra.mxu0 0.0
    %5276 = vmatprep.subr.mxu0 0.0
    %5277 = vmatpush1.msra.mxu0 0.0
    %5278 = vmatprep.subr.mxu0 0.0
    %5279 = vmatpush1.msra.mxu0 0.0
    %5280 = vmatprep.subr.mxu0 0.0
    %5281 = vmatpush1.msra.mxu0 0.0
    %5282 = vmatprep.subr.mxu0 0.0
    %5283 = vmatpush1.msra.mxu0 0.0
    %5284 = vmatprep.subr.mxu0 0.0
    %5285 = vmatpush1.msra.mxu0 %v563
    %5286 = vmatprep.subr.mxu0 0.0
    %5287 = vmatpush1.msra.mxu0 %v562
    %5288 = vmatprep.subr.mxu0 0.0
    %5289 = vmatpush1.msra.mxu0 %v561
    %5290 = vmatprep.subr.mxu0 0.0
    %5291 = vmatpush1.msra.mxu0 %v560
    %5292 = vmatprep.subr.mxu0 0.0
    %5293 = vmatpush2.msra.mxu0 0.0
    %5294 = vmatprep.subr.mxu0 0.0
    %5295 = vmatpush2.msra.mxu0 0.0
    %5296 = vmatprep.subr.mxu0 0.0
    %5297 = vmatpush2.msra.mxu0 0.0
    %5298 = vmatprep.subr.mxu0 0.0
    %5299 = vmatpush2.msra.mxu0 0.0
    %5300 = vmatprep.subr.mxu0 0.0
    %5301 = vmatpush2.msra.mxu0 0.0
    %5302 = vmatprep.subr.mxu0 0.0
    %5303 = vmatpush2.msra.mxu0 0.0
    %5304 = vmatprep.subr.mxu0 0.0
    %5305 = vmatpush2.msra.mxu0 0.0
    %5306 = vmatprep.subr.mxu0 0.0
    %5307 = vmatpush2.msra.mxu0 0.0
    %5308 = vmatprep.subr.mxu0 0.0
    %5309 = vmatpush2.msra.mxu0 0.0
    %5310 = vmatprep.subr.mxu0 0.0
    %5311 = vmatpush2.msra.mxu0 0.0
    %5312 = vmatprep.subr.mxu0 0.0
    %5313 = vmatpush2.msra.mxu0 0.0
    %5314 = vmatprep.subr.mxu0 0.0
    %5315 = vmatpush2.msra.mxu0 0.0
    %5316 = vmatprep.subr.mxu0 0.0
    %5317 = vmatpush2.msra.mxu0 0.0
    %5318 = vmatprep.subr.mxu0 0.0
    %5319 = vmatpush2.msra.mxu0 0.0
    %5320 = vmatprep.subr.mxu0 0.0
    %5321 = vmatpush2.msra.mxu0 0.0
    %5322 = vmatprep.subr.mxu0 0.0
    %5323 = vmatpush2.msra.mxu0 0.0
    %5324 = vmatprep.mubr.f32.mxu0 0.0
    %5325 = vmatmul.mubr.f32.gmra.mxu0 %v5213
    %v5326 = vpop.f32.mrf.mxu0
    %v5327 = vadd.f32 %v569, %v5326
    %v5328 = vpop.f32.mrf.mxu0
    %5329 = vmatprep.mubr.f32.mxu0 0.0
    %5330 = vmatmul.mubr.f32.gmra.mxu0 %v5216
    %v5331 = vpop.f32.mrf.mxu0
    %v5332 = vadd.f32 %v569, %v5331
    %v5333 = vpop.f32.mrf.mxu0
    %5334 = vmatprep.mubr.f32.mxu0 0.0
    %5335 = vmatmul.mubr.f32.gmra.mxu0 %v5219
    %v5336 = vpop.f32.mrf.mxu0
    %v5337 = vadd.f32 %v569, %v5336
    %v5338 = vpop.f32.mrf.mxu0
    %5339 = vmatprep.mubr.f32.mxu0 0.0
    %5340 = vmatmul.mubr.f32.gmra.mxu0 %v5222
    %v5341 = vpop.f32.mrf.mxu0
    %v5342 = vadd.f32 %v569, %v5341
    %v5343 = vpop.f32.mrf.mxu0
    %5344 = vmatprep.mubr.f32.mxu0 0.0
    %5345 = vmatmul.mubr.f32.gmra.mxu0 %v5225
    %v5346 = vpop.f32.mrf.mxu0
    %v5347 = vadd.f32 %v569, %v5346
    %v5348 = vpop.f32.mrf.mxu0
    %5349 = vmatprep.mubr.f32.mxu0 0.0
    %5350 = vmatmul.mubr.f32.gmra.mxu0 %v5228
    %v5351 = vpop.f32.mrf.mxu0
    %v5352 = vadd.f32 %v569, %v5351
    %v5353 = vpop.f32.mrf.mxu0
    %5354 = vmatprep.mubr.f32.mxu0 0.0
    %5355 = vmatmul.mubr.f32.gmra.mxu0 %v5231
    %v5356 = vpop.f32.mrf.mxu0
    %v5357 = vadd.f32 %v569, %v5356
    %v5358 = vpop.f32.mrf.mxu0
    %5359 = vmatprep.mubr.f32.mxu0 0.0
    %5360 = vmatmul.mubr.f32.gmra.mxu0 %v5234
    %v5361 = vpop.f32.mrf.mxu0
    %v5362 = vadd.f32 %v569, %v5361
    %v5363 = vpop.f32.mrf.mxu0
    %5364 = vmatprep.mubr.f32.mxu0 0.0
    %5365 = vmatmul.mubr.f32.gmra.mxu0 %v5237
    %v5366 = vpop.f32.mrf.mxu0
    %v5367 = vadd.f32 %v569, %v5366
    %v5368 = vpop.f32.mrf.mxu0
    %5369 = vmatprep.mubr.f32.mxu0 0.0
    %5370 = vmatmul.mubr.f32.gmra.mxu0 %v5240
    %v5371 = vpop.f32.mrf.mxu0
    %v5372 = vadd.f32 %v569, %v5371
    %v5373 = vpop.f32.mrf.mxu0
    %5374 = vmatprep.mubr.f32.mxu0 0.0
    %5375 = vmatmul.mubr.f32.gmra.mxu0 %v5243
    %v5376 = vpop.f32.mrf.mxu0
    %v5377 = vadd.f32 %v569, %v5376
    %v5378 = vpop.f32.mrf.mxu0
    %5379 = vmatprep.mubr.f32.mxu0 0.0
    %5380 = vmatmul.mubr.f32.gmra.mxu0 %v5246
    %v5381 = vpop.f32.mrf.mxu0
    %v5382 = vadd.f32 %v569, %v5381
    %v5383 = vpop.f32.mrf.mxu0
    %5384 = vmatprep.mubr.f32.mxu0 0.0
    %5385 = vmatmul.mubr.f32.gmra.mxu0 %v5249
    %v5386 = vpop.f32.mrf.mxu0
    %v5387 = vadd.f32 %v569, %v5386
    %v5388 = vpop.f32.mrf.mxu0
    %5389 = vmatprep.mubr.f32.mxu0 0.0
    %5390 = vmatmul.mubr.f32.gmra.mxu0 %v5252
    %v5391 = vpop.f32.mrf.mxu0
    %v5392 = vadd.f32 %v569, %v5391
    %v5393 = vpop.f32.mrf.mxu0
    %5394 = vmatprep.mubr.f32.mxu0 0.0
    %5395 = vmatmul.mubr.f32.gmra.mxu0 %v5255
    %v5396 = vpop.f32.mrf.mxu0
    %v5397 = vadd.f32 %v569, %v5396
    %v5398 = vpop.f32.mrf.mxu0
    %5399 = vmatprep.mubr.f32.mxu0 0.0
    %5400 = vmatmul.mubr.f32.gmra.mxu0 %v5258
    %v5401 = vpop.f32.mrf.mxu0
    %v5402 = vadd.f32 %v569, %v5401
    %v5403 = vpop.f32.mrf.mxu0
    %5404 = vdwg.mxu0
    %v5405 = vtanh.pop %v5327
    %v5406 = vtanh.pop %v5332
    %v5407 = vtanh.pop %v5337
    %v5408 = vtanh.pop %v5342
    %v5409 = vtanh.pop %v5347
    %v5410 = vtanh.pop %v5352
    %v5411 = vtanh.pop %v5357
    %v5412 = vtanh.pop %v5362
    %v5413 = vtanh.pop %v5367
    %v5414 = vtanh.pop %v5372
    %v5415 = vtanh.pop %v5377
    %v5416 = vtanh.pop %v5382
    %v5417 = vtanh.pop %v5387
    %v5418 = vtanh.pop %v5392
    %v5419 = vtanh.pop %v5397
    %v5420 = vtanh.pop %v5402
    %v5421 = vsel %vm571, %v5085, 0
    %v5423 = vsel %vm571, %v5087, 0
    %v5425 = vsel %vm571, %v5089, 0
    %v5427 = vsel %vm571, %v5091, 0
    %v5429 = vsel %vm571, %v5093, 0
    %v5431 = vsel %vm571, %v5095, 0
    %v5433 = vsel %vm571, %v5097, 0
    %v5435 = vsel %vm571, %v5099, 0
    %v5437 = vsel %vm571, %v5101, 0
    %v5439 = vsel %vm571, %v5103, 0
    %v5441 = vsel %vm571, %v5105, 0
    %v5443 = vsel %vm571, %v5107, 0
    %v5445 = vsel %vm571, %v5109, 0
    %v5447 = vsel %vm571, %v5111, 0
    %v5449 = vsel %vm571, %v5113, 0
    %v5451 = vsel %vm571, %v5115, 0
    %5453 = vmatprep.subr.mxu0 0.0
    %5454 = vmatpush1.msra.mxu0 0.0
    %5455 = vmatprep.subr.mxu0 0.0
    %5456 = vmatpush1.msra.mxu0 0.0
    %5457 = vmatprep.subr.mxu0 0.0
    %5458 = vmatpush1.msra.mxu0 0.0
    %5459 = vmatprep.subr.mxu0 0.0
    %5460 = vmatpush1.msra.mxu0 0.0
    %5461 = vmatprep.subr.mxu0 0.0
    %5462 = vmatpush1.msra.mxu0 0.0
    %5463 = vmatprep.subr.mxu0 0.0
    %5464 = vmatpush1.msra.mxu0 0.0
    %5465 = vmatprep.subr.mxu0 0.0
    %5466 = vmatpush1.msra.mxu0 0.0
    %5467 = vmatprep.subr.mxu0 0.0
    %5468 = vmatpush1.msra.mxu0 0.0
    %5469 = vmatprep.subr.mxu0 0.0
    %5470 = vmatpush1.msra.mxu0 0.0
    %5471 = vmatprep.subr.mxu0 0.0
    %5472 = vmatpush1.msra.mxu0 0.0
    %5473 = vmatprep.subr.mxu0 0.0
    %5474 = vmatpush1.msra.mxu0 0.0
    %5475 = vmatprep.subr.mxu0 0.0
    %5476 = vmatpush1.msra.mxu0 0.0
    %5477 = vmatprep.subr.mxu0 0.0
    %5478 = vmatpush1.msra.mxu0 0.0
    %5479 = vmatprep.subr.mxu0 0.0
    %5480 = vmatpush1.msra.mxu0 0.0
    %5481 = vmatprep.subr.mxu0 0.0
    %5482 = vmatpush1.msra.mxu0 %v559
    %5483 = vmatprep.subr.mxu0 0.0
    %5484 = vmatpush1.msra.mxu0 %v558
    %5485 = vmatprep.subr.mxu0 0.0
    %5486 = vmatpush2.msra.mxu0 0.0
    %5487 = vmatprep.subr.mxu0 0.0
    %5488 = vmatpush2.msra.mxu0 0.0
    %5489 = vmatprep.subr.mxu0 0.0
    %5490 = vmatpush2.msra.mxu0 0.0
    %5491 = vmatprep.subr.mxu0 0.0
    %5492 = vmatpush2.msra.mxu0 0.0
    %5493 = vmatprep.subr.mxu0 0.0
    %5494 = vmatpush2.msra.mxu0 0.0
    %5495 = vmatprep.subr.mxu0 0.0
    %5496 = vmatpush2.msra.mxu0 0.0
    %5497 = vmatprep.subr.mxu0 0.0
    %5498 = vmatpush2.msra.mxu0 0.0
    %5499 = vmatprep.subr.mxu0 0.0
    %5500 = vmatpush2.msra.mxu0 0.0
    %5501 = vmatprep.subr.mxu0 0.0
    %5502 = vmatpush2.msra.mxu0 0.0
    %5503 = vmatprep.subr.mxu0 0.0
    %5504 = vmatpush2.msra.mxu0 0.0
    %5505 = vmatprep.subr.mxu0 0.0
    %5506 = vmatpush2.msra.mxu0 0.0
    %5507 = vmatprep.subr.mxu0 0.0
    %5508 = vmatpush2.msra.mxu0 0.0
    %5509 = vmatprep.subr.mxu0 0.0
    %5510 = vmatpush2.msra.mxu0 0.0
    %5511 = vmatprep.subr.mxu0 0.0
    %5512 = vmatpush2.msra.mxu0 0.0
    %5513 = vmatprep.subr.mxu0 0.0
    %5514 = vmatpush2.msra.mxu0 0.0
    %5515 = vmatprep.subr.mxu0 0.0
    %5516 = vmatpush2.msra.mxu0 0.0
    %5517 = vmatprep.mubr.f32.mxu0 0.0
    %5518 = vmatmul.mubr.f32.gmra.mxu0 %v5421
    %v5519 = vpop.f32.mrf.mxu0
    %v5520 = vadd.f32 0.0, %v5519
    %v5521 = vpop.f32.mrf.mxu0
    %5522 = vmatprep.mubr.f32.mxu0 0.0
    %5523 = vmatmul.mubr.f32.gmra.mxu0 %v5423
    %v5524 = vpop.f32.mrf.mxu0
    %v5525 = vadd.f32 0.0, %v5524
    %v5526 = vpop.f32.mrf.mxu0
    %5527 = vmatprep.mubr.f32.mxu0 0.0
    %5528 = vmatmul.mubr.f32.gmra.mxu0 %v5425
    %v5529 = vpop.f32.mrf.mxu0
    %v5530 = vadd.f32 0.0, %v5529
    %v5531 = vpop.f32.mrf.mxu0
    %5532 = vmatprep.mubr.f32.mxu0 0.0
    %5533 = vmatmul.mubr.f32.gmra.mxu0 %v5427
    %v5534 = vpop.f32.mrf.mxu0
    %v5535 = vadd.f32 0.0, %v5534
    %v5536 = vpop.f32.mrf.mxu0
    %5537 = vmatprep.mubr.f32.mxu0 0.0
    %5538 = vmatmul.mubr.f32.gmra.mxu0 %v5429
    %v5539 = vpop.f32.mrf.mxu0
    %v5540 = vadd.f32 0.0, %v5539
    %v5541 = vpop.f32.mrf.mxu0
    %5542 = vmatprep.mubr.f32.mxu0 0.0
    %5543 = vmatmul.mubr.f32.gmra.mxu0 %v5431
    %v5544 = vpop.f32.mrf.mxu0
    %v5545 = vadd.f32 0.0, %v5544
    %v5546 = vpop.f32.mrf.mxu0
    %5547 = vmatprep.mubr.f32.mxu0 0.0
    %5548 = vmatmul.mubr.f32.gmra.mxu0 %v5433
    %v5549 = vpop.f32.mrf.mxu0
    %v5550 = vadd.f32 0.0, %v5549
    %v5551 = vpop.f32.mrf.mxu0
    %5552 = vmatprep.mubr.f32.mxu0 0.0
    %5553 = vmatmul.mubr.f32.gmra.mxu0 %v5435
    %v5554 = vpop.f32.mrf.mxu0
    %v5555 = vadd.f32 0.0, %v5554
    %v5556 = vpop.f32.mrf.mxu0
    %5557 = vmatprep.mubr.f32.mxu0 0.0
    %5558 = vmatmul.mubr.f32.gmra.mxu0 %v5437
    %v5559 = vpop.f32.mrf.mxu0
    %v5560 = vadd.f32 0.0, %v5559
    %v5561 = vpop.f32.mrf.mxu0
    %5562 = vmatprep.mubr.f32.mxu0 0.0
    %5563 = vmatmul.mubr.f32.gmra.mxu0 %v5439
    %v5564 = vpop.f32.mrf.mxu0
    %v5565 = vadd.f32 0.0, %v5564
    %v5566 = vpop.f32.mrf.mxu0
    %5567 = vmatprep.mubr.f32.mxu0 0.0
    %5568 = vmatmul.mubr.f32.gmra.mxu0 %v5441
    %v5569 = vpop.f32.mrf.mxu0
    %v5570 = vadd.f32 0.0, %v5569
    %v5571 = vpop.f32.mrf.mxu0
    %5572 = vmatprep.mubr.f32.mxu0 0.0
    %5573 = vmatmul.mubr.f32.gmra.mxu0 %v5443
    %v5574 = vpop.f32.mrf.mxu0
    %v5575 = vadd.f32 0.0, %v5574
    %v5576 = vpop.f32.mrf.mxu0
    %5577 = vmatprep.mubr.f32.mxu0 0.0
    %5578 = vmatmul.mubr.f32.gmra.mxu0 %v5445
    %v5579 = vpop.f32.mrf.mxu0
    %v5580 = vadd.f32 0.0, %v5579
    %v5581 = vpop.f32.mrf.mxu0
    %5582 = vmatprep.mubr.f32.mxu0 0.0
    %5583 = vmatmul.mubr.f32.gmra.mxu0 %v5447
    %v5584 = vpop.f32.mrf.mxu0
    %v5585 = vadd.f32 0.0, %v5584
    %v5586 = vpop.f32.mrf.mxu0
    %5587 = vmatprep.mubr.f32.mxu0 0.0
    %5588 = vmatmul.mubr.f32.gmra.mxu0 %v5449
    %v5589 = vpop.f32.mrf.mxu0
    %v5590 = vadd.f32 0.0, %v5589
    %v5591 = vpop.f32.mrf.mxu0
    %5592 = vmatprep.mubr.f32.mxu0 0.0
    %5593 = vmatmul.mubr.f32.gmra.mxu0 %v5451
    %v5594 = vpop.f32.mrf.mxu0
    %v5595 = vadd.f32 0.0, %v5594
    %v5596 = vpop.f32.mrf.mxu0
    %5597 = vdwg.mxu0
    %v5598 = vadd.f32 %v466, %v5520
    %v5599 = vadd.f32 %v472, %v5525
    %v5600 = vadd.f32 %v478, %v5530
    %v5601 = vadd.f32 %v484, %v5535
    %v5602 = vadd.f32 %v490, %v5540
    %v5603 = vadd.f32 %v496, %v5545
    %v5604 = vadd.f32 %v502, %v5550
    %v5605 = vadd.f32 %v508, %v5555
    %v5606 = vadd.f32 %v514, %v5560
    %v5607 = vadd.f32 %v520, %v5565
    %v5608 = vadd.f32 %v526, %v5570
    %v5609 = vadd.f32 %v532, %v5575
    %v5610 = vadd.f32 %v538, %v5580
    %v5611 = vadd.f32 %v544, %v5585
    %v5612 = vadd.f32 %v550, %v5590
    %v5613 = vadd.f32 %v556, %v5595
    %v5614 = vtanh.pop %v5598
    %v5615 = vtanh.pop %v5599
    %v5616 = vtanh.pop %v5600
    %v5617 = vtanh.pop %v5601
    %v5618 = vtanh.pop %v5602
    %v5619 = vtanh.pop %v5603
    %v5620 = vtanh.pop %v5604
    %v5621 = vtanh.pop %v5605
    %v5622 = vtanh.pop %v5606
    %v5623 = vtanh.pop %v5607
    %v5624 = vtanh.pop %v5608
    %v5625 = vtanh.pop %v5609
    %v5626 = vtanh.pop %v5610
    %v5627 = vtanh.pop %v5611
    %v5628 = vtanh.pop %v5612
    %v5629 = vtanh.pop %v5613
    %5646 = vrot.lane.b32.xlu0 %v5405, 16
    %v5647 = vpop.permute.xlu0 %5646
    %5648 = vrot.lane.b32.xlu0 %v5406, 16
    %v5649 = vpop.permute.xlu0 %5648
    %5650 = vrot.lane.b32.xlu0 %v5407, 16
    %v5651 = vpop.permute.xlu0 %5650
    %5652 = vrot.lane.b32.xlu0 %v5408, 16
    %v5653 = vpop.permute.xlu0 %5652
    %5654 = vrot.lane.b32.xlu0 %v5409, 16
    %v5655 = vpop.permute.xlu0 %5654
    %5656 = vrot.lane.b32.xlu0 %v5410, 16
    %v5657 = vpop.permute.xlu0 %5656
    %5658 = vrot.lane.b32.xlu0 %v5411, 16
    %v5659 = vpop.permute.xlu0 %5658
    %5660 = vrot.lane.b32.xlu0 %v5412, 16
    %v5661 = vpop.permute.xlu0 %5660
    %5662 = vrot.lane.b32.xlu0 %v5413, 16
    %v5663 = vpop.permute.xlu0 %5662
    %5664 = vrot.lane.b32.xlu0 %v5414, 16
    %v5665 = vpop.permute.xlu0 %5664
    %5666 = vrot.lane.b32.xlu0 %v5415, 16
    %v5667 = vpop.permute.xlu0 %5666
    %5668 = vrot.lane.b32.xlu0 %v5416, 16
    %v5669 = vpop.permute.xlu0 %5668
    %5670 = vrot.lane.b32.xlu0 %v5417, 16
    %v5671 = vpop.permute.xlu0 %5670
    %5672 = vrot.lane.b32.xlu0 %v5418, 16
    %v5673 = vpop.permute.xlu0 %5672
    %5674 = vrot.lane.b32.xlu0 %v5419, 16
    %v5675 = vpop.permute.xlu0 %5674
    %5676 = vrot.lane.b32.xlu0 %v5420, 16
    %v5677 = vpop.permute.xlu0 %5676
    %v5694 = vsel %vm571, %v5614, %v5647
    %v5695 = vsel %vm571, %v5615, %v5649
    %v5696 = vsel %vm571, %v5616, %v5651
    %v5697 = vsel %vm571, %v5617, %v5653
    %v5698 = vsel %vm571, %v5618, %v5655
    %v5699 = vsel %vm571, %v5619, %v5657
    %v5700 = vsel %vm571, %v5620, %v5659
    %v5701 = vsel %vm571, %v5621, %v5661
    %v5702 = vsel %vm571, %v5622, %v5663
    %v5703 = vsel %vm571, %v5623, %v5665
    %v5704 = vsel %vm571, %v5624, %v5667
    %v5705 = vsel %vm571, %v5625, %v5669
    %v5706 = vsel %vm571, %v5626, %v5671
    %v5707 = vsel %vm571, %v5627, %v5673
    %v5708 = vsel %vm571, %v5628, %v5675
    %v5709 = vsel %vm571, %v5629, %v5677
    %v5711 = vsel %vm813, %v5694, 0
    %v5714 = vsel %vm813, %v5695, 0
    %v5717 = vsel %vm813, %v5696, 0
    %v5720 = vsel %vm813, %v5697, 0
    %v5723 = vsel %vm813, %v5698, 0
    %v5726 = vsel %vm813, %v5699, 0
    %v5729 = vsel %vm813, %v5700, 0
    %v5732 = vsel %vm813, %v5701, 0
    %v5735 = vsel %vm813, %v5702, 0
    %v5738 = vsel %vm813, %v5703, 0
    %v5741 = vsel %vm813, %v5704, 0
    %v5744 = vsel %vm813, %v5705, 0
    %v5747 = vsel %vm813, %v5706, 0
    %v5750 = vsel %vm813, %v5707, 0
    %v5753 = vsel %vm813, %v5708, 0
    %v5756 = vsel %vm813, %v5709, 0
    %5758 = vmatprep.subr.mxu0 0.0
    %5759 = vmatpush1.msra.mxu0 0.0
    %5760 = vmatprep.subr.mxu0 0.0
    %5761 = vmatpush1.msra.mxu0 0.0
    %5762 = vmatprep.subr.mxu0 0.0
    %5763 = vmatpush1.msra.mxu0 0.0
    %5764 = vmatprep.subr.mxu0 0.0
    %5765 = vmatpush1.msra.mxu0 0.0
    %5766 = vmatprep.subr.mxu0 0.0
    %5767 = vmatpush1.msra.mxu0 0.0
    %5768 = vmatprep.subr.mxu0 0.0
    %5769 = vmatpush1.msra.mxu0 0.0
    %5770 = vmatprep.subr.mxu0 0.0
    %5771 = vmatpush1.msra.mxu0 0.0
    %5772 = vmatprep.subr.mxu0 0.0
    %5773 = vmatpush1.msra.mxu0 0.0
    %5774 = vmatprep.subr.mxu0 0.0
    %5775 = vmatpush1.msra.mxu0 0.0
    %5776 = vmatprep.subr.mxu0 0.0
    %5777 = vmatpush1.msra.mxu0 0.0
    %5778 = vmatprep.subr.mxu0 0.0
    %5779 = vmatpush1.msra.mxu0 0.0
    %5780 = vmatprep.subr.mxu0 0.0
    %5781 = vmatpush1.msra.mxu0 0.0
    %5782 = vmatprep.subr.mxu0 0.0
    %5783 = vmatpush1.msra.mxu0 %v563
    %5784 = vmatprep.subr.mxu0 0.0
    %5785 = vmatpush1.msra.mxu0 %v562
    %5786 = vmatprep.subr.mxu0 0.0
    %5787 = vmatpush1.msra.mxu0 %v561
    %5788 = vmatprep.subr.mxu0 0.0
    %5789 = vmatpush1.msra.mxu0 %v560
    %5790 = vmatprep.subr.mxu0 0.0
    %5791 = vmatpush2.msra.mxu0 0.0
    %5792 = vmatprep.subr.mxu0 0.0
    %5793 = vmatpush2.msra.mxu0 0.0
    %5794 = vmatprep.subr.mxu0 0.0
    %5795 = vmatpush2.msra.mxu0 0.0
    %5796 = vmatprep.subr.mxu0 0.0
    %5797 = vmatpush2.msra.mxu0 0.0
    %5798 = vmatprep.subr.mxu0 0.0
    %5799 = vmatpush2.msra.mxu0 0.0
    %5800 = vmatprep.subr.mxu0 0.0
    %5801 = vmatpush2.msra.mxu0 0.0
    %5802 = vmatprep.subr.mxu0 0.0
    %5803 = vmatpush2.msra.mxu0 0.0
    %5804 = vmatprep.subr.mxu0 0.0
    %5805 = vmatpush2.msra.mxu0 0.0
    %5806 = vmatprep.subr.mxu0 0.0
    %5807 = vmatpush2.msra.mxu0 0.0
    %5808 = vmatprep.subr.mxu0 0.0
    %5809 = vmatpush2.msra.mxu0 0.0
    %5810 = vmatprep.subr.mxu0 0.0
    %5811 = vmatpush2.msra.mxu0 0.0
    %5812 = vmatprep.subr.mxu0 0.0
    %5813 = vmatpush2.msra.mxu0 0.0
    %5814 = vmatprep.subr.mxu0 0.0
    %5815 = vmatpush2.msra.mxu0 0.0
    %5816 = vmatprep.subr.mxu0 0.0
    %5817 = vmatpush2.msra.mxu0 0.0
    %5818 = vmatprep.subr.mxu0 0.0
    %5819 = vmatpush2.msra.mxu0 0.0
    %5820 = vmatprep.subr.mxu0 0.0
    %5821 = vmatpush2.msra.mxu0 0.0
    %5822 = vmatprep.mubr.f32.mxu0 0.0
    %5823 = vmatmul.mubr.f32.gmra.mxu0 %v5711
    %v5824 = vpop.f32.mrf.mxu0
    %v5825 = vadd.f32 %v569, %v5824
    %v5826 = vpop.f32.mrf.mxu0
    %5827 = vmatprep.mubr.f32.mxu0 0.0
    %5828 = vmatmul.mubr.f32.gmra.mxu0 %v5714
    %v5829 = vpop.f32.mrf.mxu0
    %v5830 = vadd.f32 %v569, %v5829
    %v5831 = vpop.f32.mrf.mxu0
    %5832 = vmatprep.mubr.f32.mxu0 0.0
    %5833 = vmatmul.mubr.f32.gmra.mxu0 %v5717
    %v5834 = vpop.f32.mrf.mxu0
    %v5835 = vadd.f32 %v569, %v5834
    %v5836 = vpop.f32.mrf.mxu0
    %5837 = vmatprep.mubr.f32.mxu0 0.0
    %5838 = vmatmul.mubr.f32.gmra.mxu0 %v5720
    %v5839 = vpop.f32.mrf.mxu0
    %v5840 = vadd.f32 %v569, %v5839
    %v5841 = vpop.f32.mrf.mxu0
    %5842 = vmatprep.mubr.f32.mxu0 0.0
    %5843 = vmatmul.mubr.f32.gmra.mxu0 %v5723
    %v5844 = vpop.f32.mrf.mxu0
    %v5845 = vadd.f32 %v569, %v5844
    %v5846 = vpop.f32.mrf.mxu0
    %5847 = vmatprep.mubr.f32.mxu0 0.0
    %5848 = vmatmul.mubr.f32.gmra.mxu0 %v5726
    %v5849 = vpop.f32.mrf.mxu0
    %v5850 = vadd.f32 %v569, %v5849
    %v5851 = vpop.f32.mrf.mxu0
    %5852 = vmatprep.mubr.f32.mxu0 0.0
    %5853 = vmatmul.mubr.f32.gmra.mxu0 %v5729
    %v5854 = vpop.f32.mrf.mxu0
    %v5855 = vadd.f32 %v569, %v5854
    %v5856 = vpop.f32.mrf.mxu0
    %5857 = vmatprep.mubr.f32.mxu0 0.0
    %5858 = vmatmul.mubr.f32.gmra.mxu0 %v5732
    %v5859 = vpop.f32.mrf.mxu0
    %v5860 = vadd.f32 %v569, %v5859
    %v5861 = vpop.f32.mrf.mxu0
    %5862 = vmatprep.mubr.f32.mxu0 0.0
    %5863 = vmatmul.mubr.f32.gmra.mxu0 %v5735
    %v5864 = vpop.f32.mrf.mxu0
    %v5865 = vadd.f32 %v569, %v5864
    %v5866 = vpop.f32.mrf.mxu0
    %5867 = vmatprep.mubr.f32.mxu0 0.0
    %5868 = vmatmul.mubr.f32.gmra.mxu0 %v5738
    %v5869 = vpop.f32.mrf.mxu0
    %v5870 = vadd.f32 %v569, %v5869
    %v5871 = vpop.f32.mrf.mxu0
    %5872 = vmatprep.mubr.f32.mxu0 0.0
    %5873 = vmatmul.mubr.f32.gmra.mxu0 %v5741
    %v5874 = vpop.f32.mrf.mxu0
    %v5875 = vadd.f32 %v569, %v5874
    %v5876 = vpop.f32.mrf.mxu0
    %5877 = vmatprep.mubr.f32.mxu0 0.0
    %5878 = vmatmul.mubr.f32.gmra.mxu0 %v5744
    %v5879 = vpop.f32.mrf.mxu0
    %v5880 = vadd.f32 %v569, %v5879
    %v5881 = vpop.f32.mrf.mxu0
    %5882 = vmatprep.mubr.f32.mxu0 0.0
    %5883 = vmatmul.mubr.f32.gmra.mxu0 %v5747
    %v5884 = vpop.f32.mrf.mxu0
    %v5885 = vadd.f32 %v569, %v5884
    %v5886 = vpop.f32.mrf.mxu0
    %5887 = vmatprep.mubr.f32.mxu0 0.0
    %5888 = vmatmul.mubr.f32.gmra.mxu0 %v5750
    %v5889 = vpop.f32.mrf.mxu0
    %v5890 = vadd.f32 %v569, %v5889
    %v5891 = vpop.f32.mrf.mxu0
    %5892 = vmatprep.mubr.f32.mxu0 0.0
    %5893 = vmatmul.mubr.f32.gmra.mxu0 %v5753
    %v5894 = vpop.f32.mrf.mxu0
    %v5895 = vadd.f32 %v569, %v5894
    %v5896 = vpop.f32.mrf.mxu0
    %5897 = vmatprep.mubr.f32.mxu0 0.0
    %5898 = vmatmul.mubr.f32.gmra.mxu0 %v5756
    %v5899 = vpop.f32.mrf.mxu0
    %v5900 = vadd.f32 %v569, %v5899
    %v5901 = vpop.f32.mrf.mxu0
    %5902 = vdwg.mxu0
    %v5903 = vtanh.pop %v5825
    %v5904 = vtanh.pop %v5830
    %v5905 = vtanh.pop %v5835
    %v5906 = vtanh.pop %v5840
    %v5907 = vtanh.pop %v5845
    %v5908 = vtanh.pop %v5850
    %v5909 = vtanh.pop %v5855
    %v5910 = vtanh.pop %v5860
    %v5911 = vtanh.pop %v5865
    %v5912 = vtanh.pop %v5870
    %v5913 = vtanh.pop %v5875
    %v5914 = vtanh.pop %v5880
    %v5915 = vtanh.pop %v5885
    %v5916 = vtanh.pop %v5890
    %v5917 = vtanh.pop %v5895
    %v5918 = vtanh.pop %v5900
    %v5920 = vsel %vm571, %v5614, 0
    %v5923 = vsel %vm571, %v5615, 0
    %v5926 = vsel %vm571, %v5616, 0
    %v5929 = vsel %vm571, %v5617, 0
    %v5932 = vsel %vm571, %v5618, 0
    %v5935 = vsel %vm571, %v5619, 0
    %v5938 = vsel %vm571, %v5620, 0
    %v5941 = vsel %vm571, %v5621, 0
    %v5944 = vsel %vm571, %v5622, 0
    %v5947 = vsel %vm571, %v5623, 0
    %v5950 = vsel %vm571, %v5624, 0
    %v5953 = vsel %vm571, %v5625, 0
    %v5956 = vsel %vm571, %v5626, 0
    %v5959 = vsel %vm571, %v5627, 0
    %v5962 = vsel %vm571, %v5628, 0
    %v5965 = vsel %vm571, %v5629, 0
    %5967 = vmatprep.subr.mxu0 0.0
    %5968 = vmatpush1.msra.mxu0 0.0
    %5969 = vmatprep.subr.mxu0 0.0
    %5970 = vmatpush1.msra.mxu0 0.0
    %5971 = vmatprep.subr.mxu0 0.0
    %5972 = vmatpush1.msra.mxu0 0.0
    %5973 = vmatprep.subr.mxu0 0.0
    %5974 = vmatpush1.msra.mxu0 0.0
    %5975 = vmatprep.subr.mxu0 0.0
    %5976 = vmatpush1.msra.mxu0 0.0
    %5977 = vmatprep.subr.mxu0 0.0
    %5978 = vmatpush1.msra.mxu0 0.0
    %5979 = vmatprep.subr.mxu0 0.0
    %5980 = vmatpush1.msra.mxu0 0.0
    %5981 = vmatprep.subr.mxu0 0.0
    %5982 = vmatpush1.msra.mxu0 0.0
    %5983 = vmatprep.subr.mxu0 0.0
    %5984 = vmatpush1.msra.mxu0 0.0
    %5985 = vmatprep.subr.mxu0 0.0
    %5986 = vmatpush1.msra.mxu0 0.0
    %5987 = vmatprep.subr.mxu0 0.0
    %5988 = vmatpush1.msra.mxu0 0.0
    %5989 = vmatprep.subr.mxu0 0.0
    %5990 = vmatpush1.msra.mxu0 0.0
    %5991 = vmatprep.subr.mxu0 0.0
    %5992 = vmatpush1.msra.mxu0 0.0
    %5993 = vmatprep.subr.mxu0 0.0
    %5994 = vmatpush1.msra.mxu0 0.0
    %5995 = vmatprep.subr.mxu0 0.0
    %5996 = vmatpush1.msra.mxu0 %v559
    %5997 = vmatprep.subr.mxu0 0.0
    %5998 = vmatpush1.msra.mxu0 %v558
    %5999 = vmatprep.subr.mxu0 0.0
    %6000 = vmatpush2.msra.mxu0 0.0
    %6001 = vmatprep.subr.mxu0 0.0
    %6002 = vmatpush2.msra.mxu0 0.0
    %6003 = vmatprep.subr.mxu0 0.0
    %6004 = vmatpush2.msra.mxu0 0.0
    %6005 = vmatprep.subr.mxu0 0.0
    %6006 = vmatpush2.msra.mxu0 0.0
    %6007 = vmatprep.subr.mxu0 0.0
    %6008 = vmatpush2.msra.mxu0 0.0
    %6009 = vmatprep.subr.mxu0 0.0
    %6010 = vmatpush2.msra.mxu0 0.0
    %6011 = vmatprep.subr.mxu0 0.0
    %6012 = vmatpush2.msra.mxu0 0.0
    %6013 = vmatprep.subr.mxu0 0.0
    %6014 = vmatpush2.msra.mxu0 0.0
    %6015 = vmatprep.subr.mxu0 0.0
    %6016 = vmatpush2.msra.mxu0 0.0
    %6017 = vmatprep.subr.mxu0 0.0
    %6018 = vmatpush2.msra.mxu0 0.0
    %6019 = vmatprep.subr.mxu0 0.0
    %6020 = vmatpush2.msra.mxu0 0.0
    %6021 = vmatprep.subr.mxu0 0.0
    %6022 = vmatpush2.msra.mxu0 0.0
    %6023 = vmatprep.subr.mxu0 0.0
    %6024 = vmatpush2.msra.mxu0 0.0
    %6025 = vmatprep.subr.mxu0 0.0
    %6026 = vmatpush2.msra.mxu0 0.0
    %6027 = vmatprep.subr.mxu0 0.0
    %6028 = vmatpush2.msra.mxu0 0.0
    %6029 = vmatprep.subr.mxu0 0.0
    %6030 = vmatpush2.msra.mxu0 0.0
    %6031 = vmatprep.mubr.f32.mxu0 0.0
    %6032 = vmatmul.mubr.f32.gmra.mxu0 %v5920
    %v6033 = vpop.f32.mrf.mxu0
    %v6034 = vadd.f32 0.0, %v6033
    %v6035 = vpop.f32.mrf.mxu0
    %6036 = vmatprep.mubr.f32.mxu0 0.0
    %6037 = vmatmul.mubr.f32.gmra.mxu0 %v5923
    %v6038 = vpop.f32.mrf.mxu0
    %v6039 = vadd.f32 0.0, %v6038
    %v6040 = vpop.f32.mrf.mxu0
    %6041 = vmatprep.mubr.f32.mxu0 0.0
    %6042 = vmatmul.mubr.f32.gmra.mxu0 %v5926
    %v6043 = vpop.f32.mrf.mxu0
    %v6044 = vadd.f32 0.0, %v6043
    %v6045 = vpop.f32.mrf.mxu0
    %6046 = vmatprep.mubr.f32.mxu0 0.0
    %6047 = vmatmul.mubr.f32.gmra.mxu0 %v5929
    %v6048 = vpop.f32.mrf.mxu0
    %v6049 = vadd.f32 0.0, %v6048
    %v6050 = vpop.f32.mrf.mxu0
    %6051 = vmatprep.mubr.f32.mxu0 0.0
    %6052 = vmatmul.mubr.f32.gmra.mxu0 %v5932
    %v6053 = vpop.f32.mrf.mxu0
    %v6054 = vadd.f32 0.0, %v6053
    %v6055 = vpop.f32.mrf.mxu0
    %6056 = vmatprep.mubr.f32.mxu0 0.0
    %6057 = vmatmul.mubr.f32.gmra.mxu0 %v5935
    %v6058 = vpop.f32.mrf.mxu0
    %v6059 = vadd.f32 0.0, %v6058
    %v6060 = vpop.f32.mrf.mxu0
    %6061 = vmatprep.mubr.f32.mxu0 0.0
    %6062 = vmatmul.mubr.f32.gmra.mxu0 %v5938
    %v6063 = vpop.f32.mrf.mxu0
    %v6064 = vadd.f32 0.0, %v6063
    %v6065 = vpop.f32.mrf.mxu0
    %6066 = vmatprep.mubr.f32.mxu0 0.0
    %6067 = vmatmul.mubr.f32.gmra.mxu0 %v5941
    %v6068 = vpop.f32.mrf.mxu0
    %v6069 = vadd.f32 0.0, %v6068
    %v6070 = vpop.f32.mrf.mxu0
    %6071 = vmatprep.mubr.f32.mxu0 0.0
    %6072 = vmatmul.mubr.f32.gmra.mxu0 %v5944
    %v6073 = vpop.f32.mrf.mxu0
    %v6074 = vadd.f32 0.0, %v6073
    %v6075 = vpop.f32.mrf.mxu0
    %6076 = vmatprep.mubr.f32.mxu0 0.0
    %6077 = vmatmul.mubr.f32.gmra.mxu0 %v5947
    %v6078 = vpop.f32.mrf.mxu0
    %v6079 = vadd.f32 0.0, %v6078
    %v6080 = vpop.f32.mrf.mxu0
    %6081 = vmatprep.mubr.f32.mxu0 0.0
    %6082 = vmatmul.mubr.f32.gmra.mxu0 %v5950
    %v6083 = vpop.f32.mrf.mxu0
    %v6084 = vadd.f32 0.0, %v6083
    %v6085 = vpop.f32.mrf.mxu0
    %6086 = vmatprep.mubr.f32.mxu0 0.0
    %6087 = vmatmul.mubr.f32.gmra.mxu0 %v5953
    %v6088 = vpop.f32.mrf.mxu0
    %v6089 = vadd.f32 0.0, %v6088
    %v6090 = vpop.f32.mrf.mxu0
    %6091 = vmatprep.mubr.f32.mxu0 0.0
    %6092 = vmatmul.mubr.f32.gmra.mxu0 %v5956
    %v6093 = vpop.f32.mrf.mxu0
    %v6094 = vadd.f32 0.0, %v6093
    %v6095 = vpop.f32.mrf.mxu0
    %6096 = vmatprep.mubr.f32.mxu0 0.0
    %6097 = vmatmul.mubr.f32.gmra.mxu0 %v5959
    %v6098 = vpop.f32.mrf.mxu0
    %v6099 = vadd.f32 0.0, %v6098
    %v6100 = vpop.f32.mrf.mxu0
    %6101 = vmatprep.mubr.f32.mxu0 0.0
    %6102 = vmatmul.mubr.f32.gmra.mxu0 %v5962
    %v6103 = vpop.f32.mrf.mxu0
    %v6104 = vadd.f32 0.0, %v6103
    %v6105 = vpop.f32.mrf.mxu0
    %6106 = vmatprep.mubr.f32.mxu0 0.0
    %6107 = vmatmul.mubr.f32.gmra.mxu0 %v5965
    %v6108 = vpop.f32.mrf.mxu0
    %v6109 = vadd.f32 0.0, %v6108
    %v6110 = vpop.f32.mrf.mxu0
    %6111 = vdwg.mxu0
    %6128 = vrot.lane.b32.xlu0 %v6034, 16
    %v6129 = vpop.permute.xlu0 %6128
    %6130 = vrot.lane.b32.xlu0 %v6039, 16
    %v6131 = vpop.permute.xlu0 %6130
    %6132 = vrot.lane.b32.xlu0 %v6044, 16
    %v6133 = vpop.permute.xlu0 %6132
    %6134 = vrot.lane.b32.xlu0 %v6049, 16
    %v6135 = vpop.permute.xlu0 %6134
    %6136 = vrot.lane.b32.xlu0 %v6054, 16
    %v6137 = vpop.permute.xlu0 %6136
    %6138 = vrot.lane.b32.xlu0 %v6059, 16
    %v6139 = vpop.permute.xlu0 %6138
    %6140 = vrot.lane.b32.xlu0 %v6064, 16
    %v6141 = vpop.permute.xlu0 %6140
    %6142 = vrot.lane.b32.xlu0 %v6069, 16
    %v6143 = vpop.permute.xlu0 %6142
    %6144 = vrot.lane.b32.xlu0 %v6074, 16
    %v6145 = vpop.permute.xlu0 %6144
    %6146 = vrot.lane.b32.xlu0 %v6079, 16
    %v6147 = vpop.permute.xlu0 %6146
    %6148 = vrot.lane.b32.xlu0 %v6084, 16
    %v6149 = vpop.permute.xlu0 %6148
    %6150 = vrot.lane.b32.xlu0 %v6089, 16
    %v6151 = vpop.permute.xlu0 %6150
    %6152 = vrot.lane.b32.xlu0 %v6094, 16
    %v6153 = vpop.permute.xlu0 %6152
    %6154 = vrot.lane.b32.xlu0 %v6099, 16
    %v6155 = vpop.permute.xlu0 %6154
    %6156 = vrot.lane.b32.xlu0 %v6104, 16
    %v6157 = vpop.permute.xlu0 %6156
    %6158 = vrot.lane.b32.xlu0 %v6109, 16
    %v6159 = vpop.permute.xlu0 %6158
    %v6176 = vadd.f32 %v466, %v6129
    %v6177 = vadd.f32 %v472, %v6131
    %v6178 = vadd.f32 %v478, %v6133
    %v6179 = vadd.f32 %v484, %v6135
    %v6180 = vadd.f32 %v490, %v6137
    %v6181 = vadd.f32 %v496, %v6139
    %v6182 = vadd.f32 %v502, %v6141
    %v6183 = vadd.f32 %v508, %v6143
    %v6184 = vadd.f32 %v514, %v6145
    %v6185 = vadd.f32 %v520, %v6147
    %v6186 = vadd.f32 %v526, %v6149
    %v6187 = vadd.f32 %v532, %v6151
    %v6188 = vadd.f32 %v538, %v6153
    %v6189 = vadd.f32 %v544, %v6155
    %v6190 = vadd.f32 %v550, %v6157
    %v6191 = vadd.f32 %v556, %v6159
    %v6192 = vtanh.pop %v6176
    %v6193 = vtanh.pop %v6177
    %v6194 = vtanh.pop %v6178
    %v6195 = vtanh.pop %v6179
    %v6196 = vtanh.pop %v6180
    %v6197 = vtanh.pop %v6181
    %v6198 = vtanh.pop %v6182
    %v6199 = vtanh.pop %v6183
    %v6200 = vtanh.pop %v6184
    %v6201 = vtanh.pop %v6185
    %v6202 = vtanh.pop %v6186
    %v6203 = vtanh.pop %v6187
    %v6204 = vtanh.pop %v6188
    %v6205 = vtanh.pop %v6189
    %v6206 = vtanh.pop %v6190
    %v6207 = vtanh.pop %v6191
    %6224 = vrot.lane.b32.xlu0 %v6192, 112
    %v6225 = vpop.permute.xlu0 %6224
    %6226 = vrot.lane.b32.xlu0 %v6193, 112
    %v6227 = vpop.permute.xlu0 %6226
    %6228 = vrot.lane.b32.xlu0 %v6194, 112
    %v6229 = vpop.permute.xlu0 %6228
    %6230 = vrot.lane.b32.xlu0 %v6195, 112
    %v6231 = vpop.permute.xlu0 %6230
    %6232 = vrot.lane.b32.xlu0 %v6196, 112
    %v6233 = vpop.permute.xlu0 %6232
    %6234 = vrot.lane.b32.xlu0 %v6197, 112
    %v6235 = vpop.permute.xlu0 %6234
    %6236 = vrot.lane.b32.xlu0 %v6198, 112
    %v6237 = vpop.permute.xlu0 %6236
    %6238 = vrot.lane.b32.xlu0 %v6199, 112
    %v6239 = vpop.permute.xlu0 %6238
    %6240 = vrot.lane.b32.xlu0 %v6200, 112
    %v6241 = vpop.permute.xlu0 %6240
    %6242 = vrot.lane.b32.xlu0 %v6201, 112
    %v6243 = vpop.permute.xlu0 %6242
    %6244 = vrot.lane.b32.xlu0 %v6202, 112
    %v6245 = vpop.permute.xlu0 %6244
    %6246 = vrot.lane.b32.xlu0 %v6203, 112
    %v6247 = vpop.permute.xlu0 %6246
    %6248 = vrot.lane.b32.xlu0 %v6204, 112
    %v6249 = vpop.permute.xlu0 %6248
    %6250 = vrot.lane.b32.xlu0 %v6205, 112
    %v6251 = vpop.permute.xlu0 %6250
    %6252 = vrot.lane.b32.xlu0 %v6206, 112
    %v6253 = vpop.permute.xlu0 %6252
    %6254 = vrot.lane.b32.xlu0 %v6207, 112
    %v6255 = vpop.permute.xlu0 %6254
    %6288 = vrot.lane.b32.xlu0 %v5903, 16
    %v6289 = vpop.permute.xlu0 %6288
    %6290 = vrot.lane.b32.xlu0 %v5904, 16
    %v6291 = vpop.permute.xlu0 %6290
    %6292 = vrot.lane.b32.xlu0 %v5905, 16
    %v6293 = vpop.permute.xlu0 %6292
    %6294 = vrot.lane.b32.xlu0 %v5906, 16
    %v6295 = vpop.permute.xlu0 %6294
    %6296 = vrot.lane.b32.xlu0 %v5907, 16
    %v6297 = vpop.permute.xlu0 %6296
    %6298 = vrot.lane.b32.xlu0 %v5908, 16
    %v6299 = vpop.permute.xlu0 %6298
    %6300 = vrot.lane.b32.xlu0 %v5909, 16
    %v6301 = vpop.permute.xlu0 %6300
    %6302 = vrot.lane.b32.xlu0 %v5910, 16
    %v6303 = vpop.permute.xlu0 %6302
    %6304 = vrot.lane.b32.xlu0 %v5911, 16
    %v6305 = vpop.permute.xlu0 %6304
    %6306 = vrot.lane.b32.xlu0 %v5912, 16
    %v6307 = vpop.permute.xlu0 %6306
    %6308 = vrot.lane.b32.xlu0 %v5913, 16
    %v6309 = vpop.permute.xlu0 %6308
    %6310 = vrot.lane.b32.xlu0 %v5914, 16
    %v6311 = vpop.permute.xlu0 %6310
    %6312 = vrot.lane.b32.xlu0 %v5915, 16
    %v6313 = vpop.permute.xlu0 %6312
    %6314 = vrot.lane.b32.xlu0 %v5916, 16
    %v6315 = vpop.permute.xlu0 %6314
    %6316 = vrot.lane.b32.xlu0 %v5917, 16
    %v6317 = vpop.permute.xlu0 %6316
    %6318 = vrot.lane.b32.xlu0 %v5918, 16
    %v6319 = vpop.permute.xlu0 %6318
    %v6336 = vsel %vm571, %v6225, %v6289
    %v6337 = vsel %vm571, %v6227, %v6291
    %v6338 = vsel %vm571, %v6229, %v6293
    %v6339 = vsel %vm571, %v6231, %v6295
    %v6340 = vsel %vm571, %v6233, %v6297
    %v6341 = vsel %vm571, %v6235, %v6299
    %v6342 = vsel %vm571, %v6237, %v6301
    %v6343 = vsel %vm571, %v6239, %v6303
    %v6344 = vsel %vm571, %v6241, %v6305
    %v6345 = vsel %vm571, %v6243, %v6307
    %v6346 = vsel %vm571, %v6245, %v6309
    %v6347 = vsel %vm571, %v6247, %v6311
    %v6348 = vsel %vm571, %v6249, %v6313
    %v6349 = vsel %vm571, %v6251, %v6315
    %v6350 = vsel %vm571, %v6253, %v6317
    %v6351 = vsel %vm571, %v6255, %v6319
    %v6353 = vsel %vm813, %v6336, 0
    %v6356 = vsel %vm813, %v6337, 0
    %v6359 = vsel %vm813, %v6338, 0
    %v6362 = vsel %vm813, %v6339, 0
    %v6365 = vsel %vm813, %v6340, 0
    %v6368 = vsel %vm813, %v6341, 0
    %v6371 = vsel %vm813, %v6342, 0
    %v6374 = vsel %vm813, %v6343, 0
    %v6377 = vsel %vm813, %v6344, 0
    %v6380 = vsel %vm813, %v6345, 0
    %v6383 = vsel %vm813, %v6346, 0
    %v6386 = vsel %vm813, %v6347, 0
    %v6389 = vsel %vm813, %v6348, 0
    %v6392 = vsel %vm813, %v6349, 0
    %v6395 = vsel %vm813, %v6350, 0
    %v6398 = vsel %vm813, %v6351, 0
    %6400 = vmatprep.subr.mxu0 0.0
    %6401 = vmatpush1.msra.mxu0 0.0
    %6402 = vmatprep.subr.mxu0 0.0
    %6403 = vmatpush1.msra.mxu0 0.0
    %6404 = vmatprep.subr.mxu0 0.0
    %6405 = vmatpush1.msra.mxu0 0.0
    %6406 = vmatprep.subr.mxu0 0.0
    %6407 = vmatpush1.msra.mxu0 0.0
    %6408 = vmatprep.subr.mxu0 0.0
    %6409 = vmatpush1.msra.mxu0 0.0
    %6410 = vmatprep.subr.mxu0 0.0
    %6411 = vmatpush1.msra.mxu0 0.0
    %6412 = vmatprep.subr.mxu0 0.0
    %6413 = vmatpush1.msra.mxu0 0.0
    %6414 = vmatprep.subr.mxu0 0.0
    %6415 = vmatpush1.msra.mxu0 0.0
    %6416 = vmatprep.subr.mxu0 0.0
    %6417 = vmatpush1.msra.mxu0 0.0
    %6418 = vmatprep.subr.mxu0 0.0
    %6419 = vmatpush1.msra.mxu0 0.0
    %6420 = vmatprep.subr.mxu0 0.0
    %6421 = vmatpush1.msra.mxu0 0.0
    %6422 = vmatprep.subr.mxu0 0.0
    %6423 = vmatpush1.msra.mxu0 0.0
    %6424 = vmatprep.subr.mxu0 0.0
    %6425 = vmatpush1.msra.mxu0 %v563
    %6426 = vmatprep.subr.mxu0 0.0
    %6427 = vmatpush1.msra.mxu0 %v562
    %6428 = vmatprep.subr.mxu0 0.0
    %6429 = vmatpush1.msra.mxu0 %v561
    %6430 = vmatprep.subr.mxu0 0.0
    %6431 = vmatpush1.msra.mxu0 %v560
    %6432 = vmatprep.subr.mxu0 0.0
    %6433 = vmatpush2.msra.mxu0 0.0
    %6434 = vmatprep.subr.mxu0 0.0
    %6435 = vmatpush2.msra.mxu0 0.0
    %6436 = vmatprep.subr.mxu0 0.0
    %6437 = vmatpush2.msra.mxu0 0.0
    %6438 = vmatprep.subr.mxu0 0.0
    %6439 = vmatpush2.msra.mxu0 0.0
    %6440 = vmatprep.subr.mxu0 0.0
    %6441 = vmatpush2.msra.mxu0 0.0
    %6442 = vmatprep.subr.mxu0 0.0
    %6443 = vmatpush2.msra.mxu0 0.0
    %6444 = vmatprep.subr.mxu0 0.0
    %6445 = vmatpush2.msra.mxu0 0.0
    %6446 = vmatprep.subr.mxu0 0.0
    %6447 = vmatpush2.msra.mxu0 0.0
    %6448 = vmatprep.subr.mxu0 0.0
    %6449 = vmatpush2.msra.mxu0 0.0
    %6450 = vmatprep.subr.mxu0 0.0
    %6451 = vmatpush2.msra.mxu0 0.0
    %6452 = vmatprep.subr.mxu0 0.0
    %6453 = vmatpush2.msra.mxu0 0.0
    %6454 = vmatprep.subr.mxu0 0.0
    %6455 = vmatpush2.msra.mxu0 0.0
    %6456 = vmatprep.subr.mxu0 0.0
    %6457 = vmatpush2.msra.mxu0 0.0
    %6458 = vmatprep.subr.mxu0 0.0
    %6459 = vmatpush2.msra.mxu0 0.0
    %6460 = vmatprep.subr.mxu0 0.0
    %6461 = vmatpush2.msra.mxu0 0.0
    %6462 = vmatprep.subr.mxu0 0.0
    %6463 = vmatpush2.msra.mxu0 0.0
    %6464 = vmatprep.mubr.f32.mxu0 0.0
    %6465 = vmatmul.mubr.f32.gmra.mxu0 %v6353
    %v6466 = vpop.f32.mrf.mxu0
    %v6467 = vadd.f32 %v569, %v6466
    %v6468 = vpop.f32.mrf.mxu0
    %6469 = vmatprep.mubr.f32.mxu0 0.0
    %6470 = vmatmul.mubr.f32.gmra.mxu0 %v6356
    %v6471 = vpop.f32.mrf.mxu0
    %v6472 = vadd.f32 %v569, %v6471
    %v6473 = vpop.f32.mrf.mxu0
    %6474 = vmatprep.mubr.f32.mxu0 0.0
    %6475 = vmatmul.mubr.f32.gmra.mxu0 %v6359
    %v6476 = vpop.f32.mrf.mxu0
    %v6477 = vadd.f32 %v569, %v6476
    %v6478 = vpop.f32.mrf.mxu0
    %6479 = vmatprep.mubr.f32.mxu0 0.0
    %6480 = vmatmul.mubr.f32.gmra.mxu0 %v6362
    %v6481 = vpop.f32.mrf.mxu0
    %v6482 = vadd.f32 %v569, %v6481
    %v6483 = vpop.f32.mrf.mxu0
    %6484 = vmatprep.mubr.f32.mxu0 0.0
    %6485 = vmatmul.mubr.f32.gmra.mxu0 %v6365
    %v6486 = vpop.f32.mrf.mxu0
    %v6487 = vadd.f32 %v569, %v6486
    %v6488 = vpop.f32.mrf.mxu0
    %6489 = vmatprep.mubr.f32.mxu0 0.0
    %6490 = vmatmul.mubr.f32.gmra.mxu0 %v6368
    %v6491 = vpop.f32.mrf.mxu0
    %v6492 = vadd.f32 %v569, %v6491
    %v6493 = vpop.f32.mrf.mxu0
    %6494 = vmatprep.mubr.f32.mxu0 0.0
    %6495 = vmatmul.mubr.f32.gmra.mxu0 %v6371
    %v6496 = vpop.f32.mrf.mxu0
    %v6497 = vadd.f32 %v569, %v6496
    %v6498 = vpop.f32.mrf.mxu0
    %6499 = vmatprep.mubr.f32.mxu0 0.0
    %6500 = vmatmul.mubr.f32.gmra.mxu0 %v6374
    %v6501 = vpop.f32.mrf.mxu0
    %v6502 = vadd.f32 %v569, %v6501
    %v6503 = vpop.f32.mrf.mxu0
    %6504 = vmatprep.mubr.f32.mxu0 0.0
    %6505 = vmatmul.mubr.f32.gmra.mxu0 %v6377
    %v6506 = vpop.f32.mrf.mxu0
    %v6507 = vadd.f32 %v569, %v6506
    %v6508 = vpop.f32.mrf.mxu0
    %6509 = vmatprep.mubr.f32.mxu0 0.0
    %6510 = vmatmul.mubr.f32.gmra.mxu0 %v6380
    %v6511 = vpop.f32.mrf.mxu0
    %v6512 = vadd.f32 %v569, %v6511
    %v6513 = vpop.f32.mrf.mxu0
    %6514 = vmatprep.mubr.f32.mxu0 0.0
    %6515 = vmatmul.mubr.f32.gmra.mxu0 %v6383
    %v6516 = vpop.f32.mrf.mxu0
    %v6517 = vadd.f32 %v569, %v6516
    %v6518 = vpop.f32.mrf.mxu0
    %6519 = vmatprep.mubr.f32.mxu0 0.0
    %6520 = vmatmul.mubr.f32.gmra.mxu0 %v6386
    %v6521 = vpop.f32.mrf.mxu0
    %v6522 = vadd.f32 %v569, %v6521
    %v6523 = vpop.f32.mrf.mxu0
    %6524 = vmatprep.mubr.f32.mxu0 0.0
    %6525 = vmatmul.mubr.f32.gmra.mxu0 %v6389
    %v6526 = vpop.f32.mrf.mxu0
    %v6527 = vadd.f32 %v569, %v6526
    %v6528 = vpop.f32.mrf.mxu0
    %6529 = vmatprep.mubr.f32.mxu0 0.0
    %6530 = vmatmul.mubr.f32.gmra.mxu0 %v6392
    %v6531 = vpop.f32.mrf.mxu0
    %v6532 = vadd.f32 %v569, %v6531
    %v6533 = vpop.f32.mrf.mxu0
    %6534 = vmatprep.mubr.f32.mxu0 0.0
    %6535 = vmatmul.mubr.f32.gmra.mxu0 %v6395
    %v6536 = vpop.f32.mrf.mxu0
    %v6537 = vadd.f32 %v569, %v6536
    %v6538 = vpop.f32.mrf.mxu0
    %6539 = vmatprep.mubr.f32.mxu0 0.0
    %6540 = vmatmul.mubr.f32.gmra.mxu0 %v6398
    %v6541 = vpop.f32.mrf.mxu0
    %v6542 = vadd.f32 %v569, %v6541
    %v6543 = vpop.f32.mrf.mxu0
    %6544 = vdwg.mxu0
    %v6545 = vtanh.pop %v6467
    %v6546 = vtanh.pop %v6472
    %v6547 = vtanh.pop %v6477
    %v6548 = vtanh.pop %v6482
    %v6549 = vtanh.pop %v6487
    %v6550 = vtanh.pop %v6492
    %v6551 = vtanh.pop %v6497
    %v6552 = vtanh.pop %v6502
    %v6553 = vtanh.pop %v6507
    %v6554 = vtanh.pop %v6512
    %v6555 = vtanh.pop %v6517
    %v6556 = vtanh.pop %v6522
    %v6557 = vtanh.pop %v6527
    %v6558 = vtanh.pop %v6532
    %v6559 = vtanh.pop %v6537
    %v6560 = vtanh.pop %v6542
    %6561 = vrot.lane.b32.xlu0 %v2275, 32
    %v6562 = vpop.permute.xlu0 %6561
    %6563 = vrot.lane.b32.xlu0 %v2276, 32
    %v6564 = vpop.permute.xlu0 %6563
    %6565 = vrot.lane.b32.xlu0 %v2277, 32
    %v6566 = vpop.permute.xlu0 %6565
    %6567 = vrot.lane.b32.xlu0 %v2278, 32
    %v6568 = vpop.permute.xlu0 %6567
    %6569 = vrot.lane.b32.xlu0 %v2279, 32
    %v6570 = vpop.permute.xlu0 %6569
    %6571 = vrot.lane.b32.xlu0 %v2280, 32
    %v6572 = vpop.permute.xlu0 %6571
    %6573 = vrot.lane.b32.xlu0 %v2281, 32
    %v6574 = vpop.permute.xlu0 %6573
    %6575 = vrot.lane.b32.xlu0 %v2282, 32
    %v6576 = vpop.permute.xlu0 %6575
    %6577 = vrot.lane.b32.xlu0 %v2283, 32
    %v6578 = vpop.permute.xlu0 %6577
    %6579 = vrot.lane.b32.xlu0 %v2284, 32
    %v6580 = vpop.permute.xlu0 %6579
    %6581 = vrot.lane.b32.xlu0 %v2285, 32
    %v6582 = vpop.permute.xlu0 %6581
    %6583 = vrot.lane.b32.xlu0 %v2286, 32
    %v6584 = vpop.permute.xlu0 %6583
    %6585 = vrot.lane.b32.xlu0 %v2287, 32
    %v6586 = vpop.permute.xlu0 %6585
    %6587 = vrot.lane.b32.xlu0 %v2288, 32
    %v6588 = vpop.permute.xlu0 %6587
    %6589 = vrot.lane.b32.xlu0 %v2289, 32
    %v6590 = vpop.permute.xlu0 %6589
    %6591 = vrot.lane.b32.xlu0 %v2290, 32
    %v6592 = vpop.permute.xlu0 %6591
    %6609 = vrot.lane.b32.xlu0 %v2901, 48
    %v6610 = vpop.permute.xlu0 %6609
    %6611 = vrot.lane.b32.xlu0 %v2902, 48
    %v6612 = vpop.permute.xlu0 %6611
    %6613 = vrot.lane.b32.xlu0 %v2903, 48
    %v6614 = vpop.permute.xlu0 %6613
    %6615 = vrot.lane.b32.xlu0 %v2904, 48
    %v6616 = vpop.permute.xlu0 %6615
    %6617 = vrot.lane.b32.xlu0 %v2905, 48
    %v6618 = vpop.permute.xlu0 %6617
    %6619 = vrot.lane.b32.xlu0 %v2906, 48
    %v6620 = vpop.permute.xlu0 %6619
    %6621 = vrot.lane.b32.xlu0 %v2907, 48
    %v6622 = vpop.permute.xlu0 %6621
    %6623 = vrot.lane.b32.xlu0 %v2908, 48
    %v6624 = vpop.permute.xlu0 %6623
    %6625 = vrot.lane.b32.xlu0 %v2909, 48
    %v6626 = vpop.permute.xlu0 %6625
    %6627 = vrot.lane.b32.xlu0 %v2910, 48
    %v6628 = vpop.permute.xlu0 %6627
    %6629 = vrot.lane.b32.xlu0 %v2911, 48
    %v6630 = vpop.permute.xlu0 %6629
    %6631 = vrot.lane.b32.xlu0 %v2912, 48
    %v6632 = vpop.permute.xlu0 %6631
    %6633 = vrot.lane.b32.xlu0 %v2913, 48
    %v6634 = vpop.permute.xlu0 %6633
    %6635 = vrot.lane.b32.xlu0 %v2914, 48
    %v6636 = vpop.permute.xlu0 %6635
    %6637 = vrot.lane.b32.xlu0 %v2915, 48
    %v6638 = vpop.permute.xlu0 %6637
    %6639 = vrot.lane.b32.xlu0 %v2916, 48
    %v6640 = vpop.permute.xlu0 %6639
    %6657 = vrot.lane.b32.xlu0 %v3527, 64
    %v6658 = vpop.permute.xlu0 %6657
    %6659 = vrot.lane.b32.xlu0 %v3528, 64
    %v6660 = vpop.permute.xlu0 %6659
    %6661 = vrot.lane.b32.xlu0 %v3529, 64
    %v6662 = vpop.permute.xlu0 %6661
    %6663 = vrot.lane.b32.xlu0 %v3530, 64
    %v6664 = vpop.permute.xlu0 %6663
    %6665 = vrot.lane.b32.xlu0 %v3531, 64
    %v6666 = vpop.permute.xlu0 %6665
    %6667 = vrot.lane.b32.xlu0 %v3532, 64
    %v6668 = vpop.permute.xlu0 %6667
    %6669 = vrot.lane.b32.xlu0 %v3533, 64
    %v6670 = vpop.permute.xlu0 %6669
    %6671 = vrot.lane.b32.xlu0 %v3534, 64
    %v6672 = vpop.permute.xlu0 %6671
    %6673 = vrot.lane.b32.xlu0 %v3535, 64
    %v6674 = vpop.permute.xlu0 %6673
    %6675 = vrot.lane.b32.xlu0 %v3536, 64
    %v6676 = vpop.permute.xlu0 %6675
    %6677 = vrot.lane.b32.xlu0 %v3537, 64
    %v6678 = vpop.permute.xlu0 %6677
    %6679 = vrot.lane.b32.xlu0 %v3538, 64
    %v6680 = vpop.permute.xlu0 %6679
    %6681 = vrot.lane.b32.xlu0 %v3539, 64
    %v6682 = vpop.permute.xlu0 %6681
    %6683 = vrot.lane.b32.xlu0 %v3540, 64
    %v6684 = vpop.permute.xlu0 %6683
    %6685 = vrot.lane.b32.xlu0 %v3541, 64
    %v6686 = vpop.permute.xlu0 %6685
    %6687 = vrot.lane.b32.xlu0 %v3542, 64
    %v6688 = vpop.permute.xlu0 %6687
    %6705 = vrot.lane.b32.xlu0 %v4153, 80
    %v6706 = vpop.permute.xlu0 %6705
    %6707 = vrot.lane.b32.xlu0 %v4154, 80
    %v6708 = vpop.permute.xlu0 %6707
    %6709 = vrot.lane.b32.xlu0 %v4155, 80
    %v6710 = vpop.permute.xlu0 %6709
    %6711 = vrot.lane.b32.xlu0 %v4156, 80
    %v6712 = vpop.permute.xlu0 %6711
    %6713 = vrot.lane.b32.xlu0 %v4157, 80
    %v6714 = vpop.permute.xlu0 %6713
    %6715 = vrot.lane.b32.xlu0 %v4158, 80
    %v6716 = vpop.permute.xlu0 %6715
    %6717 = vrot.lane.b32.xlu0 %v4159, 80
    %v6718 = vpop.permute.xlu0 %6717
    %6719 = vrot.lane.b32.xlu0 %v4160, 80
    %v6720 = vpop.permute.xlu0 %6719
    %6721 = vrot.lane.b32.xlu0 %v4161, 80
    %v6722 = vpop.permute.xlu0 %6721
    %6723 = vrot.lane.b32.xlu0 %v4162, 80
    %v6724 = vpop.permute.xlu0 %6723
    %6725 = vrot.lane.b32.xlu0 %v4163, 80
    %v6726 = vpop.permute.xlu0 %6725
    %6727 = vrot.lane.b32.xlu0 %v4164, 80
    %v6728 = vpop.permute.xlu0 %6727
    %6729 = vrot.lane.b32.xlu0 %v4165, 80
    %v6730 = vpop.permute.xlu0 %6729
    %6731 = vrot.lane.b32.xlu0 %v4166, 80
    %v6732 = vpop.permute.xlu0 %6731
    %6733 = vrot.lane.b32.xlu0 %v4167, 80
    %v6734 = vpop.permute.xlu0 %6733
    %6735 = vrot.lane.b32.xlu0 %v4168, 80
    %v6736 = vpop.permute.xlu0 %6735
    %6753 = vrot.lane.b32.xlu0 %v4779, 96
    %v6754 = vpop.permute.xlu0 %6753
    %6755 = vrot.lane.b32.xlu0 %v4780, 96
    %v6756 = vpop.permute.xlu0 %6755
    %6757 = vrot.lane.b32.xlu0 %v4781, 96
    %v6758 = vpop.permute.xlu0 %6757
    %6759 = vrot.lane.b32.xlu0 %v4782, 96
    %v6760 = vpop.permute.xlu0 %6759
    %6761 = vrot.lane.b32.xlu0 %v4783, 96
    %v6762 = vpop.permute.xlu0 %6761
    %6763 = vrot.lane.b32.xlu0 %v4784, 96
    %v6764 = vpop.permute.xlu0 %6763
    %6765 = vrot.lane.b32.xlu0 %v4785, 96
    %v6766 = vpop.permute.xlu0 %6765
    %6767 = vrot.lane.b32.xlu0 %v4786, 96
    %v6768 = vpop.permute.xlu0 %6767
    %6769 = vrot.lane.b32.xlu0 %v4787, 96
    %v6770 = vpop.permute.xlu0 %6769
    %6771 = vrot.lane.b32.xlu0 %v4788, 96
    %v6772 = vpop.permute.xlu0 %6771
    %6773 = vrot.lane.b32.xlu0 %v4789, 96
    %v6774 = vpop.permute.xlu0 %6773
    %6775 = vrot.lane.b32.xlu0 %v4790, 96
    %v6776 = vpop.permute.xlu0 %6775
    %6777 = vrot.lane.b32.xlu0 %v4791, 96
    %v6778 = vpop.permute.xlu0 %6777
    %6779 = vrot.lane.b32.xlu0 %v4792, 96
    %v6780 = vpop.permute.xlu0 %6779
    %6781 = vrot.lane.b32.xlu0 %v4793, 96
    %v6782 = vpop.permute.xlu0 %6781
    %6783 = vrot.lane.b32.xlu0 %v4794, 96
    %v6784 = vpop.permute.xlu0 %6783
    %6801 = vrot.lane.b32.xlu0 %v5405, 112
    %v6802 = vpop.permute.xlu0 %6801
    %6803 = vrot.lane.b32.xlu0 %v5406, 112
    %v6804 = vpop.permute.xlu0 %6803
    %6805 = vrot.lane.b32.xlu0 %v5407, 112
    %v6806 = vpop.permute.xlu0 %6805
    %6807 = vrot.lane.b32.xlu0 %v5408, 112
    %v6808 = vpop.permute.xlu0 %6807
    %6809 = vrot.lane.b32.xlu0 %v5409, 112
    %v6810 = vpop.permute.xlu0 %6809
    %6811 = vrot.lane.b32.xlu0 %v5410, 112
    %v6812 = vpop.permute.xlu0 %6811
    %6813 = vrot.lane.b32.xlu0 %v5411, 112
    %v6814 = vpop.permute.xlu0 %6813
    %6815 = vrot.lane.b32.xlu0 %v5412, 112
    %v6816 = vpop.permute.xlu0 %6815
    %6817 = vrot.lane.b32.xlu0 %v5413, 112
    %v6818 = vpop.permute.xlu0 %6817
    %6819 = vrot.lane.b32.xlu0 %v5414, 112
    %v6820 = vpop.permute.xlu0 %6819
    %6821 = vrot.lane.b32.xlu0 %v5415, 112
    %v6822 = vpop.permute.xlu0 %6821
    %6823 = vrot.lane.b32.xlu0 %v5416, 112
    %v6824 = vpop.permute.xlu0 %6823
    %6825 = vrot.lane.b32.xlu0 %v5417, 112
    %v6826 = vpop.permute.xlu0 %6825
    %6827 = vrot.lane.b32.xlu0 %v5418, 112
    %v6828 = vpop.permute.xlu0 %6827
    %6829 = vrot.lane.b32.xlu0 %v5419, 112
    %v6830 = vpop.permute.xlu0 %6829
    %6831 = vrot.lane.b32.xlu0 %v5420, 112
    %v6832 = vpop.permute.xlu0 %6831
    %6865 = vrot.lane.b32.xlu0 %v6545, 16
    %v6866 = vpop.permute.xlu0 %6865
    %6867 = vrot.lane.b32.xlu0 %v6546, 16
    %v6868 = vpop.permute.xlu0 %6867
    %6869 = vrot.lane.b32.xlu0 %v6547, 16
    %v6870 = vpop.permute.xlu0 %6869
    %6871 = vrot.lane.b32.xlu0 %v6548, 16
    %v6872 = vpop.permute.xlu0 %6871
    %6873 = vrot.lane.b32.xlu0 %v6549, 16
    %v6874 = vpop.permute.xlu0 %6873
    %6875 = vrot.lane.b32.xlu0 %v6550, 16
    %v6876 = vpop.permute.xlu0 %6875
    %6877 = vrot.lane.b32.xlu0 %v6551, 16
    %v6878 = vpop.permute.xlu0 %6877
    %6879 = vrot.lane.b32.xlu0 %v6552, 16
    %v6880 = vpop.permute.xlu0 %6879
    %6881 = vrot.lane.b32.xlu0 %v6553, 16
    %v6882 = vpop.permute.xlu0 %6881
    %6883 = vrot.lane.b32.xlu0 %v6554, 16
    %v6884 = vpop.permute.xlu0 %6883
    %6885 = vrot.lane.b32.xlu0 %v6555, 16
    %v6886 = vpop.permute.xlu0 %6885
    %6887 = vrot.lane.b32.xlu0 %v6556, 16
    %v6888 = vpop.permute.xlu0 %6887
    %6889 = vrot.lane.b32.xlu0 %v6557, 16
    %v6890 = vpop.permute.xlu0 %6889
    %6891 = vrot.lane.b32.xlu0 %v6558, 16
    %v6892 = vpop.permute.xlu0 %6891
    %6893 = vrot.lane.b32.xlu0 %v6559, 16
    %v6894 = vpop.permute.xlu0 %6893
    %6895 = vrot.lane.b32.xlu0 %v6560, 16
    %v6896 = vpop.permute.xlu0 %6895
    %v6913 = vsel %vm571, %v1007, %v2019
    %v6914 = vsel %vm571, %v1008, %v2021
    %v6915 = vsel %vm571, %v1009, %v2023
    %v6916 = vsel %vm571, %v1010, %v2025
    %v6917 = vsel %vm571, %v1011, %v2027
    %v6918 = vsel %vm571, %v1012, %v2029
    %v6919 = vsel %vm571, %v1013, %v2031
    %v6920 = vsel %vm571, %v1014, %v2033
    %v6921 = vsel %vm571, %v1015, %v2035
    %v6922 = vsel %vm571, %v1016, %v2037
    %v6923 = vsel %vm571, %v1017, %v2039
    %v6924 = vsel %vm571, %v1018, %v2041
    %v6925 = vsel %vm571, %v1019, %v2043
    %v6926 = vsel %vm571, %v1020, %v2045
    %v6927 = vsel %vm571, %v1021, %v2047
    %v6928 = vsel %vm571, %v1022, %v2049
    %v6929 = vsel %vm813, %v6913, %v6562
    %v6930 = vsel %vm813, %v6914, %v6564
    %v6931 = vsel %vm813, %v6915, %v6566
    %v6932 = vsel %vm813, %v6916, %v6568
    %v6933 = vsel %vm813, %v6917, %v6570
    %v6934 = vsel %vm813, %v6918, %v6572
    %v6935 = vsel %vm813, %v6919, %v6574
    %v6936 = vsel %vm813, %v6920, %v6576
    %v6937 = vsel %vm813, %v6921, %v6578
    %v6938 = vsel %vm813, %v6922, %v6580
    %v6939 = vsel %vm813, %v6923, %v6582
    %v6940 = vsel %vm813, %v6924, %v6584
    %v6941 = vsel %vm813, %v6925, %v6586
    %v6942 = vsel %vm813, %v6926, %v6588
    %v6943 = vsel %vm813, %v6927, %v6590
    %v6944 = vsel %vm813, %v6928, %v6592
    %vm6945 = vcmask 392192
    %v6946 = vsel %vm6945, %v6929, %v6610
    %v6947 = vsel %vm6945, %v6930, %v6612
    %v6948 = vsel %vm6945, %v6931, %v6614
    %v6949 = vsel %vm6945, %v6932, %v6616
    %v6950 = vsel %vm6945, %v6933, %v6618
    %v6951 = vsel %vm6945, %v6934, %v6620
    %v6952 = vsel %vm6945, %v6935, %v6622
    %v6953 = vsel %vm6945, %v6936, %v6624
    %v6954 = vsel %vm6945, %v6937, %v6626
    %v6955 = vsel %vm6945, %v6938, %v6628
    %v6956 = vsel %vm6945, %v6939, %v6630
    %v6957 = vsel %vm6945, %v6940, %v6632
    %v6958 = vsel %vm6945, %v6941, %v6634
    %v6959 = vsel %vm6945, %v6942, %v6636
    %v6960 = vsel %vm6945, %v6943, %v6638
    %v6961 = vsel %vm6945, %v6944, %v6640
    %vm6962 = vcmask 523264
    %v6963 = vsel %vm6962, %v6946, %v6658
    %v6964 = vsel %vm6962, %v6947, %v6660
    %v6965 = vsel %vm6962, %v6948, %v6662
    %v6966 = vsel %vm6962, %v6949, %v6664
    %v6967 = vsel %vm6962, %v6950, %v6666
    %v6968 = vsel %vm6962, %v6951, %v6668
    %v6969 = vsel %vm6962, %v6952, %v6670
    %v6970 = vsel %vm6962, %v6953, %v6672
    %v6971 = vsel %vm6962, %v6954, %v6674
    %v6972 = vsel %vm6962, %v6955, %v6676
    %v6973 = vsel %vm6962, %v6956, %v6678
    %v6974 = vsel %vm6962, %v6957, %v6680
    %v6975 = vsel %vm6962, %v6958, %v6682
    %v6976 = vsel %vm6962, %v6959, %v6684
    %v6977 = vsel %vm6962, %v6960, %v6686
    %v6978 = vsel %vm6962, %v6961, %v6688
    %vm6979 = vcmask 654336
    %v6980 = vsel %vm6979, %v6963, %v6706
    %v6981 = vsel %vm6979, %v6964, %v6708
    %v6982 = vsel %vm6979, %v6965, %v6710
    %v6983 = vsel %vm6979, %v6966, %v6712
    %v6984 = vsel %vm6979, %v6967, %v6714
    %v6985 = vsel %vm6979, %v6968, %v6716
    %v6986 = vsel %vm6979, %v6969, %v6718
    %v6987 = vsel %vm6979, %v6970, %v6720
    %v6988 = vsel %vm6979, %v6971, %v6722
    %v6989 = vsel %vm6979, %v6972, %v6724
    %v6990 = vsel %vm6979, %v6973, %v6726
    %v6991 = vsel %vm6979, %v6974, %v6728
    %v6992 = vsel %vm6979, %v6975, %v6730
    %v6993 = vsel %vm6979, %v6976, %v6732
    %v6994 = vsel %vm6979, %v6977, %v6734
    %v6995 = vsel %vm6979, %v6978, %v6736
    %vm6996 = vcmask 785408
    %v6997 = vsel %vm6996, %v6980, %v6754
    %v6998 = vsel %vm6996, %v6981, %v6756
    %v6999 = vsel %vm6996, %v6982, %v6758
    %v7000 = vsel %vm6996, %v6983, %v6760
    %v7001 = vsel %vm6996, %v6984, %v6762
    %v7002 = vsel %vm6996, %v6985, %v6764
    %v7003 = vsel %vm6996, %v6986, %v6766
    %v7004 = vsel %vm6996, %v6987, %v6768
    %v7005 = vsel %vm6996, %v6988, %v6770
    %v7006 = vsel %vm6996, %v6989, %v6772
    %v7007 = vsel %vm6996, %v6990, %v6774
    %v7008 = vsel %vm6996, %v6991, %v6776
    %v7009 = vsel %vm6996, %v6992, %v6778
    %v7010 = vsel %vm6996, %v6993, %v6780
    %v7011 = vsel %vm6996, %v6994, %v6782
    %v7012 = vsel %vm6996, %v6995, %v6784
    %vm7013 = vcmask 916480
    %v7014 = vsel %vm7013, %v6997, %v6802
    %v7015 = vsel %vm7013, %v6998, %v6804
    %v7016 = vsel %vm7013, %v6999, %v6806
    %v7017 = vsel %vm7013, %v7000, %v6808
    %v7018 = vsel %vm7013, %v7001, %v6810
    %v7019 = vsel %vm7013, %v7002, %v6812
    %v7020 = vsel %vm7013, %v7003, %v6814
    %v7021 = vsel %vm7013, %v7004, %v6816
    %v7022 = vsel %vm7013, %v7005, %v6818
    %v7023 = vsel %vm7013, %v7006, %v6820
    %v7024 = vsel %vm7013, %v7007, %v6822
    %v7025 = vsel %vm7013, %v7008, %v6824
    %v7026 = vsel %vm7013, %v7009, %v6826
    %v7027 = vsel %vm7013, %v7010, %v6828
    %v7028 = vsel %vm7013, %v7011, %v6830
    %v7029 = vsel %vm7013, %v7012, %v6832
    %v7030 = vsel %vm571, %v5903, %v6866
    %v7031 = vsel %vm571, %v5904, %v6868
    %v7032 = vsel %vm571, %v5905, %v6870
    %v7033 = vsel %vm571, %v5906, %v6872
    %v7034 = vsel %vm571, %v5907, %v6874
    %v7035 = vsel %vm571, %v5908, %v6876
    %v7036 = vsel %vm571, %v5909, %v6878
    %v7037 = vsel %vm571, %v5910, %v6880
    %v7038 = vsel %vm571, %v5911, %v6882
    %v7039 = vsel %vm571, %v5912, %v6884
    %v7040 = vsel %vm571, %v5913, %v6886
    %v7041 = vsel %vm571, %v5914, %v6888
    %v7042 = vsel %vm571, %v5915, %v6890
    %v7043 = vsel %vm571, %v5916, %v6892
    %v7044 = vsel %vm571, %v5917, %v6894
    %v7045 = vsel %vm571, %v5918, %v6896
    %v7046 = vld [vmem:[%s8] sm:$0xff]
    %v7047 = vld [vmem:[%s8 + $0x8] sm:$0xff]
    %v7048 = vld [vmem:[%s8 + $0x10] sm:$0xff]
    %v7049 = vld [vmem:[%s8 + $0x18] sm:$0xff]
    %v7050 = vld [vmem:[%s8 + $0x20] sm:$0xff]
    %v7051 = vld [vmem:[%s8 + $0x28] sm:$0xff]
    %v7052 = vld [vmem:[%s8 + $0x30] sm:$0xff]
    %v7053 = vld [vmem:[%s8 + $0x38] sm:$0xff]
    %v7054 = vld [vmem:[%s8 + $0x40] sm:$0xff]
    %v7055 = vld [vmem:[%s8 + $0x48] sm:$0xff]
    %v7056 = vld [vmem:[%s8 + $0x50] sm:$0xff]
    %v7057 = vld [vmem:[%s8 + $0x58] sm:$0xff]
    %v7058 = vld [vmem:[%s8 + $0x60] sm:$0xff]
    %v7059 = vld [vmem:[%s8 + $0x68] sm:$0xff]
    %v7060 = vld [vmem:[%s8 + $0x70] sm:$0xff]
    %v7061 = vld [vmem:[%s8 + $0x78] sm:$0xff]
    %v7062 = vld [vmem:[%s8 + $0x80] sm:$0xff]
    %v7063 = vld [vmem:[%s8 + $0x88] sm:$0xff]
    %v7064 = vld [vmem:[%s8 + $0x90] sm:$0xff]
    %v7065 = vld [vmem:[%s8 + $0x98] sm:$0xff]
    %v7066 = vld [vmem:[#allocation8] sm:$0x1]
    %v7068 = vlaneseq
    %v7069 = vshrl.u32 %v7068, 7
    %v7070 = vsub.s32 0, %v7069
    %v7071 = vrot.slane %v7066, %v7070
    %v7074 = vsel %vm813, %v7030, 0
    %v7077 = vsel %vm813, %v7031, 0
    %v7080 = vsel %vm813, %v7032, 0
    %v7083 = vsel %vm813, %v7033, 0
    %v7086 = vsel %vm813, %v7034, 0
    %v7089 = vsel %vm813, %v7035, 0
    %v7092 = vsel %vm813, %v7036, 0
    %v7095 = vsel %vm813, %v7037, 0
    %v7098 = vsel %vm813, %v7038, 0
    %v7101 = vsel %vm813, %v7039, 0
    %v7104 = vsel %vm813, %v7040, 0
    %v7107 = vsel %vm813, %v7041, 0
    %v7110 = vsel %vm813, %v7042, 0
    %v7113 = vsel %vm813, %v7043, 0
    %v7116 = vsel %vm813, %v7044, 0
    %v7119 = vsel %vm813, %v7045, 0
    %7121 = vmatprep.subr.mxu0 0.0
    %7122 = vmatpush1.msra.mxu0 %v7061
    %7123 = vmatprep.subr.mxu0 0.0
    %7124 = vmatpush1.msra.mxu0 %v7060
    %7125 = vmatprep.subr.mxu0 0.0
    %7126 = vmatpush1.msra.mxu0 %v7059
    %7127 = vmatprep.subr.mxu0 0.0
    %7128 = vmatpush1.msra.mxu0 %v7058
    %7129 = vmatprep.subr.mxu0 0.0
    %7130 = vmatpush1.msra.mxu0 %v7057
    %7131 = vmatprep.subr.mxu0 0.0
    %7132 = vmatpush1.msra.mxu0 %v7056
    %7133 = vmatprep.subr.mxu0 0.0
    %7134 = vmatpush1.msra.mxu0 %v7055
    %7135 = vmatprep.subr.mxu0 0.0
    %7136 = vmatpush1.msra.mxu0 %v7054
    %7137 = vmatprep.subr.mxu0 0.0
    %7138 = vmatpush1.msra.mxu0 %v7053
    %7139 = vmatprep.subr.mxu0 0.0
    %7140 = vmatpush1.msra.mxu0 %v7052
    %7141 = vmatprep.subr.mxu0 0.0
    %7142 = vmatpush1.msra.mxu0 %v7051
    %7143 = vmatprep.subr.mxu0 0.0
    %7144 = vmatpush1.msra.mxu0 %v7050
    %7145 = vmatprep.subr.mxu0 0.0
    %7146 = vmatpush1.msra.mxu0 %v7049
    %7147 = vmatprep.subr.mxu0 0.0
    %7148 = vmatpush1.msra.mxu0 %v7048
    %7149 = vmatprep.subr.mxu0 0.0
    %7150 = vmatpush1.msra.mxu0 %v7047
    %7151 = vmatprep.subr.mxu0 0.0
    %7152 = vmatpush1.msra.mxu0 %v7046
    %7153 = vmatprep.subr.mxu0 0.0
    %7154 = vmatpush2.msra.mxu0 0.0
    %7155 = vmatprep.subr.mxu0 0.0
    %7156 = vmatpush2.msra.mxu0 0.0
    %7157 = vmatprep.subr.mxu0 0.0
    %7158 = vmatpush2.msra.mxu0 0.0
    %7159 = vmatprep.subr.mxu0 0.0
    %7160 = vmatpush2.msra.mxu0 0.0
    %7161 = vmatprep.subr.mxu0 0.0
    %7162 = vmatpush2.msra.mxu0 0.0
    %7163 = vmatprep.subr.mxu0 0.0
    %7164 = vmatpush2.msra.mxu0 0.0
    %7165 = vmatprep.subr.mxu0 0.0
    %7166 = vmatpush2.msra.mxu0 0.0
    %7167 = vmatprep.subr.mxu0 0.0
    %7168 = vmatpush2.msra.mxu0 0.0
    %7169 = vmatprep.subr.mxu0 0.0
    %7170 = vmatpush2.msra.mxu0 0.0
    %7171 = vmatprep.subr.mxu0 0.0
    %7172 = vmatpush2.msra.mxu0 0.0
    %7173 = vmatprep.subr.mxu0 0.0
    %7174 = vmatpush2.msra.mxu0 0.0
    %7175 = vmatprep.subr.mxu0 0.0
    %7176 = vmatpush2.msra.mxu0 0.0
    %7177 = vmatprep.subr.mxu0 0.0
    %7178 = vmatpush2.msra.mxu0 %v7065
    %7179 = vmatprep.subr.mxu0 0.0
    %7180 = vmatpush2.msra.mxu0 %v7064
    %7181 = vmatprep.subr.mxu0 0.0
    %7182 = vmatpush2.msra.mxu0 %v7063
    %7183 = vmatprep.subr.mxu0 0.0
    %7184 = vmatpush2.msra.mxu0 %v7062
    %7185 = vmatprep.mubr.f32.mxu0 %v7074
    %7186 = vmatmul.mubr.f32.gmra.mxu0 %v7014
    %v7187 = vpop.f32.mrf.mxu0
    %v7188 = vadd.f32 %v7071, %v7187
    %v7189 = vpop.f32.mrf.mxu0
    %7190 = vmatprep.mubr.f32.mxu0 %v7077
    %7191 = vmatmul.mubr.f32.gmra.mxu0 %v7015
    %v7192 = vpop.f32.mrf.mxu0
    %v7193 = vadd.f32 %v7071, %v7192
    %v7194 = vpop.f32.mrf.mxu0
    %7195 = vmatprep.mubr.f32.mxu0 %v7080
    %7196 = vmatmul.mubr.f32.gmra.mxu0 %v7016
    %v7197 = vpop.f32.mrf.mxu0
    %v7198 = vadd.f32 %v7071, %v7197
    %v7199 = vpop.f32.mrf.mxu0
    %7200 = vmatprep.mubr.f32.mxu0 %v7083
    %7201 = vmatmul.mubr.f32.gmra.mxu0 %v7017
    %v7202 = vpop.f32.mrf.mxu0
    %v7203 = vadd.f32 %v7071, %v7202
    %v7204 = vpop.f32.mrf.mxu0
    %7205 = vmatprep.mubr.f32.mxu0 %v7086
    %7206 = vmatmul.mubr.f32.gmra.mxu0 %v7018
    %v7207 = vpop.f32.mrf.mxu0
    %v7208 = vadd.f32 %v7071, %v7207
    %v7209 = vpop.f32.mrf.mxu0
    %7210 = vmatprep.mubr.f32.mxu0 %v7089
    %7211 = vmatmul.mubr.f32.gmra.mxu0 %v7019
    %v7212 = vpop.f32.mrf.mxu0
    %v7213 = vadd.f32 %v7071, %v7212
    %v7214 = vpop.f32.mrf.mxu0
    %7215 = vmatprep.mubr.f32.mxu0 %v7092
    %7216 = vmatmul.mubr.f32.gmra.mxu0 %v7020
    %v7217 = vpop.f32.mrf.mxu0
    %v7218 = vadd.f32 %v7071, %v7217
    %v7219 = vpop.f32.mrf.mxu0
    %7220 = vmatprep.mubr.f32.mxu0 %v7095
    %7221 = vmatmul.mubr.f32.gmra.mxu0 %v7021
    %v7222 = vpop.f32.mrf.mxu0
    %v7223 = vadd.f32 %v7071, %v7222
    %v7224 = vpop.f32.mrf.mxu0
    %7225 = vmatprep.mubr.f32.mxu0 %v7098
    %7226 = vmatmul.mubr.f32.gmra.mxu0 %v7022
    %v7227 = vpop.f32.mrf.mxu0
    %v7228 = vadd.f32 %v7071, %v7227
    %v7229 = vpop.f32.mrf.mxu0
    %7230 = vmatprep.mubr.f32.mxu0 %v7101
    %7231 = vmatmul.mubr.f32.gmra.mxu0 %v7023
    %v7232 = vpop.f32.mrf.mxu0
    %v7233 = vadd.f32 %v7071, %v7232
    %v7234 = vpop.f32.mrf.mxu0
    %7235 = vmatprep.mubr.f32.mxu0 %v7104
    %7236 = vmatmul.mubr.f32.gmra.mxu0 %v7024
    %v7237 = vpop.f32.mrf.mxu0
    %v7238 = vadd.f32 %v7071, %v7237
    %v7239 = vpop.f32.mrf.mxu0
    %7240 = vmatprep.mubr.f32.mxu0 %v7107
    %7241 = vmatmul.mubr.f32.gmra.mxu0 %v7025
    %v7242 = vpop.f32.mrf.mxu0
    %v7243 = vadd.f32 %v7071, %v7242
    %v7244 = vpop.f32.mrf.mxu0
    %7245 = vmatprep.mubr.f32.mxu0 %v7110
    %7246 = vmatmul.mubr.f32.gmra.mxu0 %v7026
    %v7247 = vpop.f32.mrf.mxu0
    %v7248 = vadd.f32 %v7071, %v7247
    %v7249 = vpop.f32.mrf.mxu0
    %7250 = vmatprep.mubr.f32.mxu0 %v7113
    %7251 = vmatmul.mubr.f32.gmra.mxu0 %v7027
    %v7252 = vpop.f32.mrf.mxu0
    %v7253 = vadd.f32 %v7071, %v7252
    %v7254 = vpop.f32.mrf.mxu0
    %7255 = vmatprep.mubr.f32.mxu0 %v7116
    %7256 = vmatmul.mubr.f32.gmra.mxu0 %v7028
    %v7257 = vpop.f32.mrf.mxu0
    %v7258 = vadd.f32 %v7071, %v7257
    %v7259 = vpop.f32.mrf.mxu0
    %7260 = vmatprep.mubr.f32.mxu0 %v7119
    %7261 = vmatmul.mubr.f32.gmra.mxu0 %v7029
    %v7262 = vpop.f32.mrf.mxu0
    %v7263 = vadd.f32 %v7071, %v7262
    %v7264 = vpop.f32.mrf.mxu0
    %7265 = vdwg.mxu0
    %7266 = vst [vmem:[#allocation10] sm:$0xff] %v7188
    %7267 = vst [vmem:[#allocation10 + $0x8] sm:$0xff] %v7193
    %7268 = vst [vmem:[#allocation10 + $0x10] sm:$0xff] %v7198
    %7269 = vst [vmem:[#allocation10 + $0x18] sm:$0xff] %v7203
    %7270 = vst [vmem:[#allocation10 + $0x20] sm:$0xff] %v7208
    %7271 = vst [vmem:[#allocation10 + $0x28] sm:$0xff] %v7213
    %7272 = vst [vmem:[#allocation10 + $0x30] sm:$0xff] %v7218
    %7273 = vst [vmem:[#allocation10 + $0x38] sm:$0xff] %v7223
    %7274 = vst [vmem:[#allocation10 + $0x40] sm:$0xff] %v7228
    %7275 = vst [vmem:[#allocation10 + $0x48] sm:$0xff] %v7233
    %7276 = vst [vmem:[#allocation10 + $0x50] sm:$0xff] %v7238
    %7277 = vst [vmem:[#allocation10 + $0x58] sm:$0xff] %v7243
    %7278 = vst [vmem:[#allocation10 + $0x60] sm:$0xff] %v7248
    %7279 = vst [vmem:[#allocation10 + $0x68] sm:$0xff] %v7253
    %7280 = vst [vmem:[#allocation10 + $0x70] sm:$0xff] %v7258
    %7281 = vst [vmem:[#allocation10 + $0x78] sm:$0xff] %v7263
    // Predicated region
    $region58: #{tpu_custom_call.1} parent=1 // pred_check
      _
    $region59: #{tpu_custom_call.1} parent=1 // pred_check_branch
      %7283 = sbr.rel (0) target = $region61
    $region60: #{tpu_custom_call.1} parent=1 // pred_region
      %s7285 = ssub.s32 2048, 2048
      %7286 = vsyncadd [#allocation4], %s7285
      %s7287 = sshll.u32 [#allocation10], 4
      %s7288 = int_to_ptr.vmem [resolvable:$true] %s7287
      %7293 = dma.vmem_to_hbm [thread:$0]  %s7288, 2048, %s10, [#allocation4], 128, 128, 8
    $region61: #{tpu_custom_call.1} parent=1 // pred_fallthru
      _
    // Predicated region
    $region62: #{tpu_custom_call.1} parent=1 // pred_check
      _
    $region63: #{tpu_custom_call.1} parent=1 // pred_check_branch
      %7295 = sbr.rel (0) target = $region65
    $region64: #{tpu_custom_call.1} parent=1 // pred_region
      %7296 = dma.done [#allocation4], 2048
    $region65: #{tpu_custom_call.1} parent=1 // pred_fallthru
      _
    %7297 = vsyncpa [#allocation3], 1
    %7298 = vsyncpa [#allocation6], 1
    %7299 = vsyncpa [#allocation9], 1
    %7300 = vsyncpa [#allocation4], 1

</llo_original>
